<compile_context>
chip_gen: v5e
topology: v5e:2x2
jax: 0.10.0
libtpu: 0.0.40
codegen_flags: <defaults>
</compile_context>

<pallas_src>
import functools
import itertools

import jax
import jax.numpy as jnp
from jax.experimental import pallas as pl
from jax.experimental.pallas import tpu as pltpu


def _round_up(x, m):
    return (x + m - 1) // m * m


# ----------------------------- Pallas kernel --------------------------------
def _resblock3d_kernel(cur_ref, nxt_ref, w1_ref, w2_ref, sc_ref, out_ref,
                       xact_ref, stk_ref, *, tap_offsets, center_off, tile,
                       mm_dtype):
    # cur_ref : (1, Cr, T)        current flat-spatial tile of padded x (f32)
    # nxt_ref : (1, Cr, HALO)     halo from the next tile (f32)
    # w1_ref  : (Cr, 27*Cr)       K-stacked 3x3x3 conv weights [c_out, tap*Cr+c_in]
    # w2_ref  : (Cr, Cr)          1x1x1 conv weights [c_out, c_in]
    # sc_ref  : (Cr, 4)           folded BN scale/shift: [s1, t1, s2, t2]
    # out_ref : (1, Cr, T)
    # xact_ref: (Cr, T+HALO)      VMEM scratch: ReLU'd input slab in mm_dtype
    # stk_ref : (27*Cr, T)        VMEM scratch: K-stacked im2col slab in mm_dtype
    Cr, T = out_ref.shape[1], tile

    # --- ReLU + cast applied ONCE while assembling the resident slab ---------
    xact_ref[:, :T] = jnp.maximum(cur_ref[0], 0.0).astype(mm_dtype)
    xact_ref[:, T:] = jnp.maximum(nxt_ref[0], 0.0).astype(mm_dtype)

    # --- build the K-stacked slab: one shifted lane slice per tap ------------
    for i, off in enumerate(tap_offsets):                    # static offsets
        stk_ref[i * Cr:(i + 1) * Cr, :] = xact_ref[:, off:off + T]

    # --- Conv3d(3x3x3) as a single MXU matmul, f32 accumulation --------------
    acc = jnp.dot(w1_ref[...], stk_ref[...], preferred_element_type=jnp.float32)

    # --- folded BatchNorm3d #1 (conv1 bias folded into t1) + ReLU, f32 -------
    s1, t1 = sc_ref[:, 0:1], sc_ref[:, 1:2]
    s2, t2 = sc_ref[:, 2:3], sc_ref[:, 3:4]
    h = jnp.maximum(acc * s1 + t1, 0.0).astype(mm_dtype)

    # --- Conv3d(1x1x1) + folded BatchNorm3d #2 (conv2 bias folded into t2) ---
    y = jnp.dot(w2_ref[...], h, preferred_element_type=jnp.float32)
    y = y * s2 + t2

    # --- residual: un-activated f32 x at the conv center, taken directly from
    #     the already-loaded cur/nxt blocks (shifted by center_off) ------------
    res = jnp.concatenate(
        [cur_ref[0, :, center_off:], nxt_ref[0, :, :center_off]], axis=-1)
    out_ref[0] = res + y


# ------------------------------ JAX wrapper ----------------------------------
def resblock3d_pallas(x, params, *, eps=1e-5, mm_dtype=jnp.bfloat16):
    """x: [N, C, D, H, W] float32 (PyTorch NCDHW).  Returns same shape/dtype."""
    (w1, b1, g1, be1, rm1, rv1, w2, b2, g2, be2, rm2, rv2) = params
    N, C, D, H, W = x.shape
    Dp, Hp, Wp = D + 2, H + 2, W + 2
    S = Dp * Hp * Wp

    mmb = jnp.dtype(mm_dtype).itemsize
    pack = 8 * 4 // mmb                 # sublane-tile height for mm_dtype
    Cr = _round_up(C, pack)             # channel pad -> every sublane slice aligned

    # Tap offsets in the flattened padded volume; output p reads inputs p + off.
    tap_offsets = tuple(kd * Hp * Wp + kh * Wp + kw
                        for kd, kh, kw in itertools.product(range(3), repeat=3))
    max_off = tap_offsets[-1]               # 2*Hp*Wp + 2*Wp + 2
    center_off = Hp * Wp + Wp + 1           # tap (1,1,1) == original x

    halo = _round_up(max_off, 128)          # >= largest tap shift, lane-aligned

    def vmem_need(T):                       # conservative per-step VMEM estimate
        return (2 * Cr * T * 4 + 2 * Cr * halo * 4          # cur + halo (dbuf, f32)
                + 2 * Cr * T * 4                            # out (dbuf, f32)
                + 2 * (27 * Cr * Cr + Cr * Cr + Cr * 4) * 4 # weights / scales
                + Cr * (T + halo) * mmb                     # activated slab
                + 27 * Cr * T * mmb)                        # K-stacked im2col slab

    # Tile = k * halo (k up to 8): amortizes per-step overhead and keeps halo
    # traffic small; clamped by the data size and a cross-generation VMEM budget
    # (v7x: 64 MiB per TensorCore, v5e/v6e: 128 MiB physical).
    budget = 40 * 1024 * 1024
    k_cap = min(8, max(1, -(-S // halo)))
    k = 1
    while k < k_cap and vmem_need((k + 1) * halo) <= budget:
        k += 1
    T = k * halo
    num_tiles = -(-S // T)                  # cdiv
    hb = k                                  # halo block-index stride (= T // halo)

    # Single fused pad: channel pad to Cr, spatial "same" pad, plus enough extra
    # depth slices that the flattened array covers the last tile + halo.
    flat_needed = num_tiles * T + halo
    extra_d = max(0, -(-(flat_needed - S) // (Hp * Wp)))
    xflat = jnp.pad(x, ((0, 0), (0, Cr - C), (1, 1 + extra_d),
                        (1, 1), (1, 1))).reshape(N, Cr, -1)

    # Lane-dense K-stacked conv1 weights (c_out, tap*Cr + c_in); 1x1x1 as (Cr, Cr).
    w1p = jnp.pad(jnp.transpose(w1, (0, 2, 3, 4, 1)),
                  ((0, Cr - C), (0, 0), (0, 0), (0, 0), (0, Cr - C)))
    w1k = w1p.reshape(Cr, 27 * Cr).astype(mm_dtype)
    w2m = jnp.pad(w2[:, :, 0, 0, 0], ((0, Cr - C), (0, Cr - C))).astype(mm_dtype)

    # Fold BN running stats + conv biases into per-channel scale/shift, packed (Cr, 4).
    s1 = g1 / jnp.sqrt(rv1 + eps)
    t1 = be1 + (b1 - rm1) * s1
    s2 = g2 / jnp.sqrt(rv2 + eps)
    t2 = be2 + (b2 - rm2) * s2
    sc = jnp.pad(jnp.stack([s1, t1, s2, t2], axis=1),
                 ((0, Cr - C), (0, 0))).astype(jnp.float32)

    kernel = functools.partial(_resblock3d_kernel, tap_offsets=tap_offsets,
                               center_off=center_off, tile=T, mm_dtype=mm_dtype)

    vmem_limit = int(max(32 << 20, min(vmem_need(T) + (8 << 20), 100 << 20)))

    # Grid axes are both "parallel"; on v7x the (tiles, N) product gives the two
    # TensorCores balanced work as long as num_tiles*N >= 2.
    y_full = pl.pallas_call(
        kernel,
        out_shape=jax.ShapeDtypeStruct((N, Cr, num_tiles * T), jnp.float32),
        grid=(num_tiles, N),
        in_specs=[
            pl.BlockSpec((1, Cr, T), lambda t, n: (n, 0, t)),                 # tile
            pl.BlockSpec((1, Cr, halo), lambda t, n: (n, 0, (t + 1) * hb)),   # halo
            pl.BlockSpec((Cr, 27 * Cr), lambda t, n: (0, 0)),                 # w1 (stacked)
            pl.BlockSpec((Cr, Cr), lambda t, n: (0, 0)),                      # w2
            pl.BlockSpec((Cr, 4), lambda t, n: (0, 0)),                       # BN scale/shift
        ],
        out_specs=pl.BlockSpec((1, Cr, T), lambda t, n: (n, 0, t)),
        scratch_shapes=[pltpu.VMEM((Cr, T + halo), mm_dtype),
                        pltpu.VMEM((27 * Cr, T), mm_dtype)],
        compiler_params=pltpu.CompilerParams(
            dimension_semantics=("parallel", "parallel"),
            vmem_limit_bytes=vmem_limit),
    )(xflat, xflat, w1k, w2m, sc)

    # Valid outputs live at flat index d*Hp*Wp + h*Wp + w -> leading-corner slice.
    return y_full[:, :C, :S].reshape(N, C, Dp, Hp, Wp)[:, :, :D, :H, :W]


# --------------------------- pure-JAX reference -------------------------------
def resblock3d_ref(x, params, eps=1e-5, conv_dtype=jnp.float32):
    (w1, b1, g1, be1, rm1, rv1, w2, b2, g2, be2, rm2, rv2) = params
    dn = ("NCDHW", "OIDHW", "NCDHW")
    bc = lambda v: v[None, :, None, None, None]
    q = lambda v: v.astype(conv_dtype).astype(jnp.float32)   # precision-match convs
    a = q(jnp.maximum(x, 0.0))
    y = jax.lax.conv_general_dilated(a, q(w1), (1, 1, 1),
                                     ((1, 1), (1, 1), (1, 1)),
                                     dimension_numbers=dn) + bc(b1)
    y = (y - bc(rm1)) / jnp.sqrt(bc(rv1) + eps) * bc(g1) + bc(be1)
    y = q(jnp.maximum(y, 0.0))
    y = jax.lax.conv_general_dilated(y, q(w2), (1, 1, 1), "VALID",
                                     dimension_numbers=dn) + bc(b2)
    y = (y - bc(rm2)) / jnp.sqrt(bc(rv2) + eps) * bc(g2) + bc(be2)
    return x + y


# --------------------------------- main ---------------------------------------
if __name__ == "__main__":
    N, C, D, H, W = 2, 8, 4, 8, 16
    key = jax.random.PRNGKey(0)
    ks = jax.random.split(key, 13)

    x = jax.random.normal(ks[0], (N, C, D, H, W), jnp.float32)

    # deterministic synthetic parameters (shapes match nn.Conv3d / nn.BatchNorm3d)
    w1 = 0.1 * jax.random.normal(ks[1], (C, C, 3, 3, 3), jnp.float32)
    b1 = 0.05 * jax.random.normal(ks[2], (C,), jnp.float32)
    g1 = 1.0 + 0.1 * jax.random.normal(ks[3], (C,), jnp.float32)
    be1 = 0.1 * jax.random.normal(ks[4], (C,), jnp.float32)
    rm1 = 0.1 * jax.random.normal(ks[5], (C,), jnp.float32)
    rv1 = 1.0 + 0.1 * jax.random.uniform(ks[6], (C,), jnp.float32)
    w2 = 0.1 * jax.random.normal(ks[7], (C, C, 1, 1, 1), jnp.float32)
    b2 = 0.05 * jax.random.normal(ks[8], (C,), jnp.float32)
    g2 = 1.0 + 0.1 * jax.random.normal(ks[9], (C,), jnp.float32)
    be2 = 0.1 * jax.random.normal(ks[10], (C,), jnp.float32)
    rm2 = 0.1 * jax.random.normal(ks[11], (C,), jnp.float32)
    rv2 = 1.0 + 0.1 * jax.random.uniform(ks[12], (C,), jnp.float32)

    params = (w1, b1, g1, be1, rm1, rv1, w2, b2, g2, be2, rm2, rv2)

    # f32-matmul path: exact semantics of the PyTorch module.
    out_f32 = jax.block_until_ready(
        jax.jit(functools.partial(resblock3d_pallas, mm_dtype=jnp.float32))(x, params))
    ref_f32 = jax.block_until_ready(resblock3d_ref(x, params))
    assert out_f32.shape == x.shape and out_f32.dtype == x.dtype
    if not jnp.allclose(out_f32, ref_f32, atol=2e-4, rtol=2e-4):
        raise AssertionError("Pallas ResBlock3D (f32 matmuls) does not match reference")

    # bf16-matmul path (MXU fast path), f32 accumulation & f32 elementwise.
    # Checked against a reference whose conv inputs/weights are rounded to bf16
    # the same way; tolerance absorbs rounding-boundary / summation-order effects.
    out_bf16 = jax.block_until_ready(
        jax.jit(functools.partial(resblock3d_pallas, mm_dtype=jnp.bfloat16))(x, params))
    ref_bf16 = jax.block_until_ready(
        resblock3d_ref(x, params, conv_dtype=jnp.bfloat16))
    if not jnp.allclose(out_bf16, ref_bf16, atol=1e-2, rtol=1e-2):
        raise AssertionError("Pallas ResBlock3D (bf16 matmuls) does not match reference")

    print("KERNEL_OK")
</pallas_src>

<mosaic_0001>
module attributes {stable_mosaic.version = 11 : i64} {
  func.func @_resblock3d_kernel(%arg0: i32, %arg1: i32, %arg2: memref<1x8x1536xf32, #tpu.memory_space<vmem>>, %arg3: memref<1x8x512xf32, #tpu.memory_space<vmem>>, %arg4: memref<8x216xf32, #tpu.memory_space<vmem>>, %arg5: memref<8x8xf32, #tpu.memory_space<vmem>>, %arg6: memref<8x4xf32, #tpu.memory_space<vmem>>, %arg7: memref<1x8x1536xf32, #tpu.memory_space<vmem>>, %arg8: memref<8x2048xf32, #tpu.memory_space<vmem>>, %arg9: memref<216x1536xf32, #tpu.memory_space<vmem>>) attributes {dimension_semantics = [#tpu.dimension_semantics<parallel>, #tpu.dimension_semantics<parallel>], iteration_bounds = array<i64: 1, 2>, scalar_prefetch = 0 : i64, scratch_operands = 2 : i64, tpu.core_type = #tpu.core_type<tc>, window_params = [{transform_indices = @transform_0, window_bounds = array<i64: 1, 8, 1536>}, {transform_indices = @transform_1, window_bounds = array<i64: 1, 8, 512>}, {pipeline_mode = #tpu.pipeline_mode<synchronous>, transform_indices = @transform_2, window_bounds = array<i64: 8, 216>}, {pipeline_mode = #tpu.pipeline_mode<synchronous>, transform_indices = @transform_3, window_bounds = array<i64: 8, 8>}, {pipeline_mode = #tpu.pipeline_mode<synchronous>, transform_indices = @transform_4, window_bounds = array<i64: 8, 4>}, {transform_indices = @transform_5, window_bounds = array<i64: 1, 8, 1536>}]} {
    %c0 = arith.constant 0 : index
    %c0_0 = arith.constant 0 : index
    %c0_1 = arith.constant 0 : index
    %0 = vector.load %arg2[%c0, %c0_0, %c0_1] : memref<1x8x1536xf32, #tpu.memory_space<vmem>>, vector<1x8x1536xf32>
    %1 = vector.shape_cast %0 : vector<1x8x1536xf32> to vector<8x1536xf32>
    %cst = arith.constant 0.000000e+00 : f32
    %2 = vector.broadcast %cst : f32 to vector<8x1536xf32>
    %3 = arith.maximumf %1, %2 : vector<8x1536xf32>
    %c0_2 = arith.constant 0 : index
    %c0_3 = arith.constant 0 : index
    %4 = vector.load %arg8[%c0_2, %c0_3] : memref<8x2048xf32, #tpu.memory_space<vmem>>, vector<8x1536xf32>
    tpu.vector_store %arg8[%c0_2, %c0_3], %3 {strides = array<i32>} : memref<8x2048xf32, #tpu.memory_space<vmem>>, vector<8x1536xf32>,
    %c0_4 = arith.constant 0 : index
    %c0_5 = arith.constant 0 : index
    %c0_6 = arith.constant 0 : index
    %5 = vector.load %arg3[%c0_4, %c0_5, %c0_6] : memref<1x8x512xf32, #tpu.memory_space<vmem>>, vector<1x8x512xf32>
    %6 = vector.shape_cast %5 : vector<1x8x512xf32> to vector<8x512xf32>
    %cst_7 = arith.constant 0.000000e+00 : f32
    %7 = vector.broadcast %cst_7 : f32 to vector<8x512xf32>
    %8 = arith.maximumf %6, %7 : vector<8x512xf32>
    %c0_8 = arith.constant 0 : index
    %c1536 = arith.constant 1536 : index
    %9 = vector.load %arg8[%c0_8, %c1536] : memref<8x2048xf32, #tpu.memory_space<vmem>>, vector<8x512xf32>
    tpu.vector_store %arg8[%c0_8, %c1536], %8 {strides = array<i32>} : memref<8x2048xf32, #tpu.memory_space<vmem>>, vector<8x512xf32>,
    %c0_9 = arith.constant 0 : index
    %c0_10 = arith.constant 0 : index
    %10 = vector.load %arg8[%c0_9, %c0_10] : memref<8x2048xf32, #tpu.memory_space<vmem>>, vector<8x1536xf32>
    %c0_11 = arith.constant 0 : index
    %c0_12 = arith.constant 0 : index
    %11 = vector.load %arg9[%c0_11, %c0_12] : memref<216x1536xf32, #tpu.memory_space<vmem>>, vector<8x1536xf32>
    tpu.vector_store %arg9[%c0_11, %c0_12], %10 {strides = array<i32>} : memref<216x1536xf32, #tpu.memory_space<vmem>>, vector<8x1536xf32>,
    %c0_13 = arith.constant 0 : index
    %c1 = arith.constant 1 : index
    %12 = vector.load %arg8[%c0_13, %c1] : memref<8x2048xf32, #tpu.memory_space<vmem>>, vector<8x1536xf32>
    %c8 = arith.constant 8 : index
    %c0_14 = arith.constant 0 : index
    %13 = vector.load %arg9[%c8, %c0_14] : memref<216x1536xf32, #tpu.memory_space<vmem>>, vector<8x1536xf32>
    tpu.vector_store %arg9[%c8, %c0_14], %12 {strides = array<i32>} : memref<216x1536xf32, #tpu.memory_space<vmem>>, vector<8x1536xf32>,
    %c0_15 = arith.constant 0 : index
    %c2 = arith.constant 2 : index
    %14 = vector.load %arg8[%c0_15, %c2] : memref<8x2048xf32, #tpu.memory_space<vmem>>, vector<8x1536xf32>
    %c16 = arith.constant 16 : index
    %c0_16 = arith.constant 0 : index
    %15 = vector.load %arg9[%c16, %c0_16] : memref<216x1536xf32, #tpu.memory_space<vmem>>, vector<8x1536xf32>
    tpu.vector_store %arg9[%c16, %c0_16], %14 {strides = array<i32>} : memref<216x1536xf32, #tpu.memory_space<vmem>>, vector<8x1536xf32>,
    %c0_17 = arith.constant 0 : index
    %c18 = arith.constant 18 : index
    %16 = vector.load %arg8[%c0_17, %c18] : memref<8x2048xf32, #tpu.memory_space<vmem>>, vector<8x1536xf32>
    %c24 = arith.constant 24 : index
    %c0_18 = arith.constant 0 : index
    %17 = vector.load %arg9[%c24, %c0_18] : memref<216x1536xf32, #tpu.memory_space<vmem>>, vector<8x1536xf32>
    tpu.vector_store %arg9[%c24, %c0_18], %16 {strides = array<i32>} : memref<216x1536xf32, #tpu.memory_space<vmem>>, vector<8x1536xf32>,
    %c0_19 = arith.constant 0 : index
    %c19 = arith.constant 19 : index
    %18 = vector.load %arg8[%c0_19, %c19] : memref<8x2048xf32, #tpu.memory_space<vmem>>, vector<8x1536xf32>
    %c32 = arith.constant 32 : index
    %c0_20 = arith.constant 0 : index
    %19 = vector.load %arg9[%c32, %c0_20] : memref<216x1536xf32, #tpu.memory_space<vmem>>, vector<8x1536xf32>
    tpu.vector_store %arg9[%c32, %c0_20], %18 {strides = array<i32>} : memref<216x1536xf32, #tpu.memory_space<vmem>>, vector<8x1536xf32>,
    %c0_21 = arith.constant 0 : index
    %c20 = arith.constant 20 : index
    %20 = vector.load %arg8[%c0_21, %c20] : memref<8x2048xf32, #tpu.memory_space<vmem>>, vector<8x1536xf32>
    %c40 = arith.constant 40 : index
    %c0_22 = arith.constant 0 : index
    %21 = vector.load %arg9[%c40, %c0_22] : memref<216x1536xf32, #tpu.memory_space<vmem>>, vector<8x1536xf32>
    tpu.vector_store %arg9[%c40, %c0_22], %20 {strides = array<i32>} : memref<216x1536xf32, #tpu.memory_space<vmem>>, vector<8x1536xf32>,
    %c0_23 = arith.constant 0 : index
    %c36 = arith.constant 36 : index
    %22 = vector.load %arg8[%c0_23, %c36] : memref<8x2048xf32, #tpu.memory_space<vmem>>, vector<8x1536xf32>
    %c48 = arith.constant 48 : index
    %c0_24 = arith.constant 0 : index
    %23 = vector.load %arg9[%c48, %c0_24] : memref<216x1536xf32, #tpu.memory_space<vmem>>, vector<8x1536xf32>
    tpu.vector_store %arg9[%c48, %c0_24], %22 {strides = array<i32>} : memref<216x1536xf32, #tpu.memory_space<vmem>>, vector<8x1536xf32>,
    %c0_25 = arith.constant 0 : index
    %c37 = arith.constant 37 : index
    %24 = vector.load %arg8[%c0_25, %c37] : memref<8x2048xf32, #tpu.memory_space<vmem>>, vector<8x1536xf32>
    %c56 = arith.constant 56 : index
    %c0_26 = arith.constant 0 : index
    %25 = vector.load %arg9[%c56, %c0_26] : memref<216x1536xf32, #tpu.memory_space<vmem>>, vector<8x1536xf32>
    tpu.vector_store %arg9[%c56, %c0_26], %24 {strides = array<i32>} : memref<216x1536xf32, #tpu.memory_space<vmem>>, vector<8x1536xf32>,
    %c0_27 = arith.constant 0 : index
    %c38 = arith.constant 38 : index
    %26 = vector.load %arg8[%c0_27, %c38] : memref<8x2048xf32, #tpu.memory_space<vmem>>, vector<8x1536xf32>
    %c64 = arith.constant 64 : index
    %c0_28 = arith.constant 0 : index
    %27 = vector.load %arg9[%c64, %c0_28] : memref<216x1536xf32, #tpu.memory_space<vmem>>, vector<8x1536xf32>
    tpu.vector_store %arg9[%c64, %c0_28], %26 {strides = array<i32>} : memref<216x1536xf32, #tpu.memory_space<vmem>>, vector<8x1536xf32>,
    %c0_29 = arith.constant 0 : index
    %c180 = arith.constant 180 : index
    %28 = vector.load %arg8[%c0_29, %c180] : memref<8x2048xf32, #tpu.memory_space<vmem>>, vector<8x1536xf32>
    %c72 = arith.constant 72 : index
    %c0_30 = arith.constant 0 : index
    %29 = vector.load %arg9[%c72, %c0_30] : memref<216x1536xf32, #tpu.memory_space<vmem>>, vector<8x1536xf32>
    tpu.vector_store %arg9[%c72, %c0_30], %28 {strides = array<i32>} : memref<216x1536xf32, #tpu.memory_space<vmem>>, vector<8x1536xf32>,
    %c0_31 = arith.constant 0 : index
    %c181 = arith.constant 181 : index
    %30 = vector.load %arg8[%c0_31, %c181] : memref<8x2048xf32, #tpu.memory_space<vmem>>, vector<8x1536xf32>
    %c80 = arith.constant 80 : index
    %c0_32 = arith.constant 0 : index
    %31 = vector.load %arg9[%c80, %c0_32] : memref<216x1536xf32, #tpu.memory_space<vmem>>, vector<8x1536xf32>
    tpu.vector_store %arg9[%c80, %c0_32], %30 {strides = array<i32>} : memref<216x1536xf32, #tpu.memory_space<vmem>>, vector<8x1536xf32>,
    %c0_33 = arith.constant 0 : index
    %c182 = arith.constant 182 : index
    %32 = vector.load %arg8[%c0_33, %c182] : memref<8x2048xf32, #tpu.memory_space<vmem>>, vector<8x1536xf32>
    %c88 = arith.constant 88 : index
    %c0_34 = arith.constant 0 : index
    %33 = vector.load %arg9[%c88, %c0_34] : memref<216x1536xf32, #tpu.memory_space<vmem>>, vector<8x1536xf32>
    tpu.vector_store %arg9[%c88, %c0_34], %32 {strides = array<i32>} : memref<216x1536xf32, #tpu.memory_space<vmem>>, vector<8x1536xf32>,
    %c0_35 = arith.constant 0 : index
    %c198 = arith.constant 198 : index
    %34 = vector.load %arg8[%c0_35, %c198] : memref<8x2048xf32, #tpu.memory_space<vmem>>, vector<8x1536xf32>
    %c96 = arith.constant 96 : index
    %c0_36 = arith.constant 0 : index
    %35 = vector.load %arg9[%c96, %c0_36] : memref<216x1536xf32, #tpu.memory_space<vmem>>, vector<8x1536xf32>
    tpu.vector_store %arg9[%c96, %c0_36], %34 {strides = array<i32>} : memref<216x1536xf32, #tpu.memory_space<vmem>>, vector<8x1536xf32>,
    %c0_37 = arith.constant 0 : index
    %c199 = arith.constant 199 : index
    %36 = vector.load %arg8[%c0_37, %c199] : memref<8x2048xf32, #tpu.memory_space<vmem>>, vector<8x1536xf32>
    %c104 = arith.constant 104 : index
    %c0_38 = arith.constant 0 : index
    %37 = vector.load %arg9[%c104, %c0_38] : memref<216x1536xf32, #tpu.memory_space<vmem>>, vector<8x1536xf32>
    tpu.vector_store %arg9[%c104, %c0_38], %36 {strides = array<i32>} : memref<216x1536xf32, #tpu.memory_space<vmem>>, vector<8x1536xf32>,
    %c0_39 = arith.constant 0 : index
    %c200 = arith.constant 200 : index
    %38 = vector.load %arg8[%c0_39, %c200] : memref<8x2048xf32, #tpu.memory_space<vmem>>, vector<8x1536xf32>
    %c112 = arith.constant 112 : index
    %c0_40 = arith.constant 0 : index
    %39 = vector.load %arg9[%c112, %c0_40] : memref<216x1536xf32, #tpu.memory_space<vmem>>, vector<8x1536xf32>
    tpu.vector_store %arg9[%c112, %c0_40], %38 {strides = array<i32>} : memref<216x1536xf32, #tpu.memory_space<vmem>>, vector<8x1536xf32>,
    %c0_41 = arith.constant 0 : index
    %c216 = arith.constant 216 : index
    %40 = vector.load %arg8[%c0_41, %c216] : memref<8x2048xf32, #tpu.memory_space<vmem>>, vector<8x1536xf32>
    %c120 = arith.constant 120 : index
    %c0_42 = arith.constant 0 : index
    %41 = vector.load %arg9[%c120, %c0_42] : memref<216x1536xf32, #tpu.memory_space<vmem>>, vector<8x1536xf32>
    tpu.vector_store %arg9[%c120, %c0_42], %40 {strides = array<i32>} : memref<216x1536xf32, #tpu.memory_space<vmem>>, vector<8x1536xf32>,
    %c0_43 = arith.constant 0 : index
    %c217 = arith.constant 217 : index
    %42 = vector.load %arg8[%c0_43, %c217] : memref<8x2048xf32, #tpu.memory_space<vmem>>, vector<8x1536xf32>
    %c128 = arith.constant 128 : index
    %c0_44 = arith.constant 0 : index
    %43 = vector.load %arg9[%c128, %c0_44] : memref<216x1536xf32, #tpu.memory_space<vmem>>, vector<8x1536xf32>
    tpu.vector_store %arg9[%c128, %c0_44], %42 {strides = array<i32>} : memref<216x1536xf32, #tpu.memory_space<vmem>>, vector<8x1536xf32>,
    %c0_45 = arith.constant 0 : index
    %c218 = arith.constant 218 : index
    %44 = vector.load %arg8[%c0_45, %c218] : memref<8x2048xf32, #tpu.memory_space<vmem>>, vector<8x1536xf32>
    %c136 = arith.constant 136 : index
    %c0_46 = arith.constant 0 : index
    %45 = vector.load %arg9[%c136, %c0_46] : memref<216x1536xf32, #tpu.memory_space<vmem>>, vector<8x1536xf32>
    tpu.vector_store %arg9[%c136, %c0_46], %44 {strides = array<i32>} : memref<216x1536xf32, #tpu.memory_space<vmem>>, vector<8x1536xf32>,
    %c0_47 = arith.constant 0 : index
    %c360 = arith.constant 360 : index
    %46 = vector.load %arg8[%c0_47, %c360] : memref<8x2048xf32, #tpu.memory_space<vmem>>, vector<8x1536xf32>
    %c144 = arith.constant 144 : index
    %c0_48 = arith.constant 0 : index
    %47 = vector.load %arg9[%c144, %c0_48] : memref<216x1536xf32, #tpu.memory_space<vmem>>, vector<8x1536xf32>
    tpu.vector_store %arg9[%c144, %c0_48], %46 {strides = array<i32>} : memref<216x1536xf32, #tpu.memory_space<vmem>>, vector<8x1536xf32>,
    %c0_49 = arith.constant 0 : index
    %c361 = arith.constant 361 : index
    %48 = vector.load %arg8[%c0_49, %c361] : memref<8x2048xf32, #tpu.memory_space<vmem>>, vector<8x1536xf32>
    %c152 = arith.constant 152 : index
    %c0_50 = arith.constant 0 : index
    %49 = vector.load %arg9[%c152, %c0_50] : memref<216x1536xf32, #tpu.memory_space<vmem>>, vector<8x1536xf32>
    tpu.vector_store %arg9[%c152, %c0_50], %48 {strides = array<i32>} : memref<216x1536xf32, #tpu.memory_space<vmem>>, vector<8x1536xf32>,
    %c0_51 = arith.constant 0 : index
    %c362 = arith.constant 362 : index
    %50 = vector.load %arg8[%c0_51, %c362] : memref<8x2048xf32, #tpu.memory_space<vmem>>, vector<8x1536xf32>
    %c160 = arith.constant 160 : index
    %c0_52 = arith.constant 0 : index
    %51 = vector.load %arg9[%c160, %c0_52] : memref<216x1536xf32, #tpu.memory_space<vmem>>, vector<8x1536xf32>
    tpu.vector_store %arg9[%c160, %c0_52], %50 {strides = array<i32>} : memref<216x1536xf32, #tpu.memory_space<vmem>>, vector<8x1536xf32>,
    %c0_53 = arith.constant 0 : index
    %c378 = arith.constant 378 : index
    %52 = vector.load %arg8[%c0_53, %c378] : memref<8x2048xf32, #tpu.memory_space<vmem>>, vector<8x1536xf32>
    %c168 = arith.constant 168 : index
    %c0_54 = arith.constant 0 : index
    %53 = vector.load %arg9[%c168, %c0_54] : memref<216x1536xf32, #tpu.memory_space<vmem>>, vector<8x1536xf32>
    tpu.vector_store %arg9[%c168, %c0_54], %52 {strides = array<i32>} : memref<216x1536xf32, #tpu.memory_space<vmem>>, vector<8x1536xf32>,
    %c0_55 = arith.constant 0 : index
    %c379 = arith.constant 379 : index
    %54 = vector.load %arg8[%c0_55, %c379] : memref<8x2048xf32, #tpu.memory_space<vmem>>, vector<8x1536xf32>
    %c176 = arith.constant 176 : index
    %c0_56 = arith.constant 0 : index
    %55 = vector.load %arg9[%c176, %c0_56] : memref<216x1536xf32, #tpu.memory_space<vmem>>, vector<8x1536xf32>
    tpu.vector_store %arg9[%c176, %c0_56], %54 {strides = array<i32>} : memref<216x1536xf32, #tpu.memory_space<vmem>>, vector<8x1536xf32>,
    %c0_57 = arith.constant 0 : index
    %c380 = arith.constant 380 : index
    %56 = vector.load %arg8[%c0_57, %c380] : memref<8x2048xf32, #tpu.memory_space<vmem>>, vector<8x1536xf32>
    %c184 = arith.constant 184 : index
    %c0_58 = arith.constant 0 : index
    %57 = vector.load %arg9[%c184, %c0_58] : memref<216x1536xf32, #tpu.memory_space<vmem>>, vector<8x1536xf32>
    tpu.vector_store %arg9[%c184, %c0_58], %56 {strides = array<i32>} : memref<216x1536xf32, #tpu.memory_space<vmem>>, vector<8x1536xf32>,
    %c0_59 = arith.constant 0 : index
    %c396 = arith.constant 396 : index
    %58 = vector.load %arg8[%c0_59, %c396] : memref<8x2048xf32, #tpu.memory_space<vmem>>, vector<8x1536xf32>
    %c192 = arith.constant 192 : index
    %c0_60 = arith.constant 0 : index
    %59 = vector.load %arg9[%c192, %c0_60] : memref<216x1536xf32, #tpu.memory_space<vmem>>, vector<8x1536xf32>
    tpu.vector_store %arg9[%c192, %c0_60], %58 {strides = array<i32>} : memref<216x1536xf32, #tpu.memory_space<vmem>>, vector<8x1536xf32>,
    %c0_61 = arith.constant 0 : index
    %c397 = arith.constant 397 : index
    %60 = vector.load %arg8[%c0_61, %c397] : memref<8x2048xf32, #tpu.memory_space<vmem>>, vector<8x1536xf32>
    %c200_62 = arith.constant 200 : index
    %c0_63 = arith.constant 0 : index
    %61 = vector.load %arg9[%c200_62, %c0_63] : memref<216x1536xf32, #tpu.memory_space<vmem>>, vector<8x1536xf32>
    tpu.vector_store %arg9[%c200_62, %c0_63], %60 {strides = array<i32>} : memref<216x1536xf32, #tpu.memory_space<vmem>>, vector<8x1536xf32>,
    %c0_64 = arith.constant 0 : index
    %c398 = arith.constant 398 : index
    %62 = vector.load %arg8[%c0_64, %c398] : memref<8x2048xf32, #tpu.memory_space<vmem>>, vector<8x1536xf32>
    %c208 = arith.constant 208 : index
    %c0_65 = arith.constant 0 : index
    %63 = vector.load %arg9[%c208, %c0_65] : memref<216x1536xf32, #tpu.memory_space<vmem>>, vector<8x1536xf32>
    tpu.vector_store %arg9[%c208, %c0_65], %62 {strides = array<i32>} : memref<216x1536xf32, #tpu.memory_space<vmem>>, vector<8x1536xf32>,
    %c0_66 = arith.constant 0 : index
    %c0_67 = arith.constant 0 : index
    %64 = vector.load %arg4[%c0_66, %c0_67] : memref<8x216xf32, #tpu.memory_space<vmem>>, vector<8x216xf32>
    %c0_68 = arith.constant 0 : index
    %c0_69 = arith.constant 0 : index
    %65 = vector.load %arg9[%c0_68, %c0_69] : memref<216x1536xf32, #tpu.memory_space<vmem>>, vector<216x1536xf32>
    %cst_70 = arith.constant dense<0.000000e+00> : vector<8x1536xf32>
    %66 = tpu.matmul %64, %65, %cst_70 {dimension_numbers = #tpu.dot_dimension_numbers<[1], [0], [0], [1], [0, 0, 1, 1], [], []>} : vector<8x216xf32>, vector<216x1536xf32>, vector<8x1536xf32> -> vector<8x1536xf32>
    %c0_71 = arith.constant 0 : index
    %c0_72 = arith.constant 0 : index
    %67 = vector.load %arg6[%c0_71, %c0_72] : memref<8x4xf32, #tpu.memory_space<vmem>>, vector<8x1xf32>
    %c0_73 = arith.constant 0 : index
    %c1_74 = arith.constant 1 : index
    %68 = vector.load %arg6[%c0_73, %c1_74] : memref<8x4xf32, #tpu.memory_space<vmem>>, vector<8x1xf32>
    %c0_75 = arith.constant 0 : index
    %c2_76 = arith.constant 2 : index
    %69 = vector.load %arg6[%c0_75, %c2_76] : memref<8x4xf32, #tpu.memory_space<vmem>>, vector<8x1xf32>
    %c0_77 = arith.constant 0 : index
    %c3 = arith.constant 3 : index
    %70 = vector.load %arg6[%c0_77, %c3] : memref<8x4xf32, #tpu.memory_space<vmem>>, vector<8x1xf32>
    %71 = vector.broadcast %67 : vector<8x1xf32> to vector<8x1536xf32>
    %72 = arith.mulf %66, %71 : vector<8x1536xf32>
    %73 = vector.broadcast %68 : vector<8x1xf32> to vector<8x1536xf32>
    %74 = arith.addf %72, %73 : vector<8x1536xf32>
    %cst_78 = arith.constant 0.000000e+00 : f32
    %75 = vector.broadcast %cst_78 : f32 to vector<8x1536xf32>
    %76 = arith.maximumf %74, %75 : vector<8x1536xf32>
    %c0_79 = arith.constant 0 : index
    %c0_80 = arith.constant 0 : index
    %77 = vector.load %arg5[%c0_79, %c0_80] : memref<8x8xf32, #tpu.memory_space<vmem>>, vector<8x8xf32>
    %cst_81 = arith.constant dense<0.000000e+00> : vector<8x1536xf32>
    %78 = tpu.matmul %77, %76, %cst_81 {dimension_numbers = #tpu.dot_dimension_numbers<[1], [0], [0], [1], [0, 0, 1, 1], [], []>} : vector<8x8xf32>, vector<8x1536xf32>, vector<8x1536xf32> -> vector<8x1536xf32>
    %79 = vector.broadcast %69 : vector<8x1xf32> to vector<8x1536xf32>
    %80 = arith.mulf %78, %79 : vector<8x1536xf32>
    %81 = vector.broadcast %70 : vector<8x1xf32> to vector<8x1536xf32>
    %82 = arith.addf %80, %81 : vector<8x1536xf32>
    %c0_82 = arith.constant 0 : index
    %c0_83 = arith.constant 0 : index
    %c199_84 = arith.constant 199 : index
    %83 = vector.load %arg2[%c0_82, %c0_83, %c199_84] : memref<1x8x1536xf32, #tpu.memory_space<vmem>>, vector<1x8x1337xf32>
    %84 = vector.shape_cast %83 : vector<1x8x1337xf32> to vector<8x1337xf32>
    %c0_85 = arith.constant 0 : index
    %c0_86 = arith.constant 0 : index
    %c0_87 = arith.constant 0 : index
    %85 = vector.load %arg3[%c0_85, %c0_86, %c0_87] : memref<1x8x512xf32, #tpu.memory_space<vmem>>, vector<1x8x199xf32>
    %86 = vector.shape_cast %85 : vector<1x8x199xf32> to vector<8x199xf32>
    %87 = tpu.concatenate %84, %86 in 1 : vector<8x1337xf32>, vector<8x199xf32> -> vector<8x1536xf32>
    %88 = arith.addf %87, %82 : vector<8x1536xf32>
    %c0_88 = arith.constant 0 : index
    %c0_89 = arith.constant 0 : index
    %c0_90 = arith.constant 0 : index
    %89 = vector.load %arg7[%c0_88, %c0_89, %c0_90] : memref<1x8x1536xf32, #tpu.memory_space<vmem>>, vector<1x8x1536xf32>
    %90 = vector.shape_cast %89 : vector<1x8x1536xf32> to vector<8x1536xf32>
    %91 = vector.shape_cast %88 : vector<8x1536xf32> to vector<1x8x1536xf32>
    tpu.vector_store %arg7[%c0_88, %c0_89, %c0_90], %91 {strides = array<i32>} : memref<1x8x1536xf32, #tpu.memory_space<vmem>>, vector<1x8x1536xf32>,
    return
  }
  func.func @transform_0(%arg0: i32, %arg1: i32) -> (i32, i32, i32) {
    %c0_i32 = arith.constant 0 : i32
    %c0_i32_0 = arith.constant 0 : i32
    return %arg1, %c0_i32, %arg0 : i32, i32, i32
  }
  func.func @transform_1(%arg0: i32, %arg1: i32) -> (i32, i32, i32) {
    %c1_i32 = arith.constant 1 : i32
    %0 = arith.addi %arg0, %c1_i32 : i32
    %c3_i32 = arith.constant 3 : i32
    %1 = arith.muli %0, %c3_i32 : i32
    %c0_i32 = arith.constant 0 : i32
    %c0_i32_0 = arith.constant 0 : i32
    return %arg1, %c0_i32, %1 : i32, i32, i32
  }
  func.func @transform_2(%arg0: i32, %arg1: i32) -> (i32, i32) {
    %c0_i32 = arith.constant 0 : i32
    %c0_i32_0 = arith.constant 0 : i32
    %c0_i32_1 = arith.constant 0 : i32
    return %c0_i32, %c0_i32_0 : i32, i32
  }
  func.func @transform_3(%arg0: i32, %arg1: i32) -> (i32, i32) {
    %c0_i32 = arith.constant 0 : i32
    %c0_i32_0 = arith.constant 0 : i32
    %c0_i32_1 = arith.constant 0 : i32
    return %c0_i32, %c0_i32_0 : i32, i32
  }
  func.func @transform_4(%arg0: i32, %arg1: i32) -> (i32, i32) {
    %c0_i32 = arith.constant 0 : i32
    %c0_i32_0 = arith.constant 0 : i32
    %c0_i32_1 = arith.constant 0 : i32
    return %c0_i32, %c0_i32_0 : i32, i32
  }
  func.func @transform_5(%arg0: i32, %arg1: i32) -> (i32, i32, i32) {
    %c0_i32 = arith.constant 0 : i32
    %c0_i32_0 = arith.constant 0 : i32
    return %arg1, %c0_i32, %arg0 : i32, i32, i32
  }
}

</mosaic_0001>

<llo_original>
// kernel: resblock3d_pallas.1
$region0: #{resblock3d_pallas.1}
  #allocation0 [shape = 'u32[]', space=smem, size = 0x4, offset = 0x4, fixed_abs, tag = 'smem constant byte address 0x4 - core index']
  #allocation1 [shape = 'u32[72,128]{1,0:T(1,128)}', space=vmem, size = 0x9000, scoped, tag = 'internal scratch']
  #allocation2 [shape = 'f32[8,2048]{1,0:T(8,128)}', space=vmem, size = 0x10000, scoped, tag = 'scratch operand']
  #allocation3 [shape = 'f32[216,1536]{1,0:T(8,128)}', space=vmem, size = 0x144000, scoped, tag = 'scratch operand']
  %s0 = inlined_call_operand.vmem [shape: f32[2,8,2160], index: 0, kind: input, shape index: {}, may-alias: {0,1}]
  %s1 = inlined_call_operand.vmem [shape: f32[2,8,2160], index: 1, kind: input, shape index: {}, may-alias: {0,1}]
  %s2 = inlined_call_operand.vmem [shape: f32[8,216], index: 2, kind: input, shape index: {}]
  %s3 = inlined_call_operand.vmem [shape: f32[8,8], index: 3, kind: input, shape index: {}]
  %s4 = inlined_call_operand.vmem [shape: f32[8,4], index: 4, kind: input, shape index: {}]
  %s5 = inlined_call_operand.vmem [shape: f32[2,8,1536], index: 5, kind: output, shape index: {}]
  %s6 = sld [smem:[#allocation0]]
  $region53: #{resblock3d_pallas.1} parent=0
    _
  %s8 = ssub.s32 1, %s6
  %s9 = scalar_select 0, %s8, %s6
  loop: start=0, step=1, limit=4
  $region2: #{resblock3d_pallas.1} parent=0 // loop_pre_header
    _
  $region3: #{resblock3d_pallas.1} parent=0 // loop_header
    %s11 = sphi 0, %s15
    %p12 = scmp.ge.s32.totalorder %s11, 4
    %s18 = sphi 0, %s30
    %s19 = sphi 0, %s26
    %s20 = sphi 0, %s18
    %s21 = sphi 0, %s19
    %s22 = sphi 0, %s20
    %s23 = sphi 0, %s21
    %s35 = sphi 0, %s37
    %s38 = sphi 0, %s35
    %s39 = sphi 0, %s38
    %s55 = sphi 0, %s39
    %s67 = sphi 0, %s69
    %s70 = sphi 0, %s67
    %s71 = sphi 0, %s70
    %s87 = sphi 0, %s71
    %s91 = sphi 0, %s91
    %s93 = sphi 0, %s91
    %s94 = sphi 0, %s93
    %s108 = sphi 0, %s94
    %s112 = sphi 0, %s112
    %s114 = sphi 0, %s112
    %s115 = sphi 0, %s114
    %s129 = sphi 0, %s115
    %s133 = sphi 0, %s133
    %s135 = sphi 0, %s133
    %s136 = sphi 0, %s135
    %s150 = sphi 0, %s136
    %s158 = sphi 0, %s160
    %s161 = sphi 0, %s158
    %s162 = sphi 0, %s161
    %s178 = sphi 0, %s162
  $region4: #{resblock3d_pallas.1} parent=0 // loop_header_branch
    %14 = sbr.rel (%p12) target = $region8
  $region5: #{resblock3d_pallas.1} parent=0 // loop_body
    %s16 = ssub.s32 %s11, 1
    %s17 = ssub.s32 %s11, 2
    %s24 = sadd.s32 1, %s19
    %p25 = scmp.ge.s32.totalorder %s24, 2
    %s26 = scalar_select %p25, 0, %s24
    %s27 = sadd.s32 1, %s18
    %s28 = scalar_select %p25, %s27, %s18
    %p29 = scmp.ge.s32.totalorder %s28, 1
    %s30 = scalar_select %p29, 0, %s28
    %s31 = ssub.s32 %s19, %s26
    %s32 = ssub.s32 %s18, %s30
    %s33 = sor.u32 %s31, %s32
    %p34 = scmp.eq.s32.totalorder %s33, 0
    %s36 = sadd.s32 %s35, 1
    %s37 = scalar_select %p34, %s35, %s36
    %p40 = pneg %p34
    %p41 = scmp.eq.s32.totalorder %s11, 1
    %p42 = por %p40, %p41
    %p43 = scmp.ne.s32.totalorder %s35, %s38
    %p44 = scmp.eq.s32.totalorder %s11, 0
    %p45 = por %p43, %p44
    %p46 = scmp.ne.s32.totalorder %s35, %s38
    %p47 = scmp.eq.s32.totalorder %s16, 1
    %p48 = por %p46, %p47
    %p49 = scmp.ne.s32.totalorder %s38, %s39
    %p50 = scmp.eq.s32.totalorder %s16, 0
    %p51 = por %p49, %p50
    %p52 = scmp.ne.s32.totalorder %s38, %s39
    %p53 = scmp.eq.s32.totalorder %s17, 1
    %p54 = por %p52, %p53
    %p56 = scmp.ne.s32.totalorder %s39, %s55
    %p57 = scmp.eq.s32.totalorder %s17, 0
    %p58 = por %p56, %p57
    %s59 = sadd.s32 %s18, 1
    %s60 = smul.u32 %s59, 3
    %s61 = sadd.s32 %s30, 1
    %s62 = smul.u32 %s61, 3
    %s63 = ssub.s32 %s19, %s26
    %s64 = ssub.s32 %s60, %s62
    %s65 = sor.u32 %s63, %s64
    %p66 = scmp.eq.s32.totalorder %s65, 0
    %s68 = sadd.s32 %s67, 1
    %s69 = scalar_select %p66, %s67, %s68
    %p72 = pneg %p66
    %p73 = scmp.eq.s32.totalorder %s11, 1
    %p74 = por %p72, %p73
    %p75 = scmp.ne.s32.totalorder %s67, %s70
    %p76 = scmp.eq.s32.totalorder %s11, 0
    %p77 = por %p75, %p76
    %p78 = scmp.ne.s32.totalorder %s67, %s70
    %p79 = scmp.eq.s32.totalorder %s16, 1
    %p80 = por %p78, %p79
    %p81 = scmp.ne.s32.totalorder %s70, %s71
    %p82 = scmp.eq.s32.totalorder %s16, 0
    %p83 = por %p81, %p82
    %p84 = scmp.ne.s32.totalorder %s70, %s71
    %p85 = scmp.eq.s32.totalorder %s17, 1
    %p86 = por %p84, %p85
    %p88 = scmp.ne.s32.totalorder %s71, %s87
    %p89 = scmp.eq.s32.totalorder %s17, 0
    %p90 = por %p88, %p89
    %s92 = sadd.s32 %s91, 1
    %p95 = scmp.eq.s32.totalorder %s11, 1
    %p96 = scmp.ne.s32.totalorder %s91, %s93
    %p97 = scmp.eq.s32.totalorder %s11, 0
    %p98 = por %p96, %p97
    %p99 = scmp.ne.s32.totalorder %s91, %s93
    %p100 = scmp.eq.s32.totalorder %s16, 1
    %p101 = por %p99, %p100
    %p102 = scmp.ne.s32.totalorder %s93, %s94
    %p103 = scmp.eq.s32.totalorder %s16, 0
    %p104 = por %p102, %p103
    %p105 = scmp.ne.s32.totalorder %s93, %s94
    %p106 = scmp.eq.s32.totalorder %s17, 1
    %p107 = por %p105, %p106
    %p109 = scmp.ne.s32.totalorder %s94, %s108
    %p110 = scmp.eq.s32.totalorder %s17, 0
    %p111 = por %p109, %p110
    %s113 = sadd.s32 %s112, 1
    %p116 = scmp.eq.s32.totalorder %s11, 1
    %p117 = scmp.ne.s32.totalorder %s112, %s114
    %p118 = scmp.eq.s32.totalorder %s11, 0
    %p119 = por %p117, %p118
    %p120 = scmp.ne.s32.totalorder %s112, %s114
    %p121 = scmp.eq.s32.totalorder %s16, 1
    %p122 = por %p120, %p121
    %p123 = scmp.ne.s32.totalorder %s114, %s115
    %p124 = scmp.eq.s32.totalorder %s16, 0
    %p125 = por %p123, %p124
    %p126 = scmp.ne.s32.totalorder %s114, %s115
    %p127 = scmp.eq.s32.totalorder %s17, 1
    %p128 = por %p126, %p127
    %p130 = scmp.ne.s32.totalorder %s115, %s129
    %p131 = scmp.eq.s32.totalorder %s17, 0
    %p132 = por %p130, %p131
    %s134 = sadd.s32 %s133, 1
    %p137 = scmp.eq.s32.totalorder %s11, 1
    %p138 = scmp.ne.s32.totalorder %s133, %s135
    %p139 = scmp.eq.s32.totalorder %s11, 0
    %p140 = por %p138, %p139
    %p141 = scmp.ne.s32.totalorder %s133, %s135
    %p142 = scmp.eq.s32.totalorder %s16, 1
    %p143 = por %p141, %p142
    %p144 = scmp.ne.s32.totalorder %s135, %s136
    %p145 = scmp.eq.s32.totalorder %s16, 0
    %p146 = por %p144, %p145
    %p147 = scmp.ne.s32.totalorder %s135, %s136
    %p148 = scmp.eq.s32.totalorder %s17, 1
    %p149 = por %p147, %p148
    %p151 = scmp.ne.s32.totalorder %s136, %s150
    %p152 = scmp.eq.s32.totalorder %s17, 0
    %p153 = por %p151, %p152
    %s154 = ssub.s32 %s19, %s26
    %s155 = ssub.s32 %s18, %s30
    %s156 = sor.u32 %s154, %s155
    %p157 = scmp.eq.s32.totalorder %s156, 0
    %s159 = sadd.s32 %s158, 1
    %s160 = scalar_select %p157, %s158, %s159
    %p163 = pneg %p157
    %p164 = scmp.eq.s32.totalorder %s11, 1
    %p165 = por %p163, %p164
    %p166 = scmp.ne.s32.totalorder %s158, %s161
    %p167 = scmp.eq.s32.totalorder %s11, 0
    %p168 = por %p166, %p167
    %p169 = scmp.ne.s32.totalorder %s158, %s161
    %p170 = scmp.eq.s32.totalorder %s16, 1
    %p171 = por %p169, %p170
    %p172 = scmp.ne.s32.totalorder %s161, %s162
    %p173 = scmp.eq.s32.totalorder %s16, 0
    %p174 = por %p172, %p173
    %p175 = scmp.ne.s32.totalorder %s161, %s162
    %p176 = scmp.eq.s32.totalorder %s17, 1
    %p177 = por %p175, %p176
    %p179 = scmp.ne.s32.totalorder %s162, %s178
    %p180 = scmp.eq.s32.totalorder %s17, 0
    %p181 = por %p179, %p180
    %p182 = scmp.le.s32.totalorder 1, %s11
    %p183 = scmp.lt.s32.totalorder %s11, 3
    %p184 = pnand %p182, %p183
    %p185 = pneg %p184
    // Predicated region
    $region9: #{resblock3d_pallas.1} parent=5 // pred_check
      _
    $region10: #{resblock3d_pallas.1} parent=5 // pred_check_branch
      %187 = sbr.rel (%p184) target = $region12
    $region11: #{resblock3d_pallas.1} parent=5 // pred_region
      %s188 = ssub.s32 %s11, 1
      // Predicated region
      $region13: #{resblock3d_pallas.1} parent=11 // pred_check
        %p189 = pneg %p104
      $region14: #{resblock3d_pallas.1} parent=11 // pred_check_branch
        %191 = sbr.rel (%p189) target = $region16
      $region15: #{resblock3d_pallas.1} parent=11 // pred_region
        _
      $region16: #{resblock3d_pallas.1} parent=11 // pred_fallthru
        _
      // Predicated region
      $region17: #{resblock3d_pallas.1} parent=11 // pred_check
        %p192 = pneg %p125
      $region18: #{resblock3d_pallas.1} parent=11 // pred_check_branch
        %194 = sbr.rel (%p192) target = $region20
      $region19: #{resblock3d_pallas.1} parent=11 // pred_region
        _
      $region20: #{resblock3d_pallas.1} parent=11 // pred_fallthru
        _
      // Predicated region
      $region21: #{resblock3d_pallas.1} parent=11 // pred_check
        %p195 = pneg %p146
      $region22: #{resblock3d_pallas.1} parent=11 // pred_check_branch
        %197 = sbr.rel (%p195) target = $region24
      $region23: #{resblock3d_pallas.1} parent=11 // pred_region
        _
      $region24: #{resblock3d_pallas.1} parent=11 // pred_fallthru
        _
    $region12: #{resblock3d_pallas.1} parent=5 // pred_fallthru
      _
    %p198 = scmp.lt.s32.totalorder %s11, 2
    // Predicated region
    $region25: #{resblock3d_pallas.1} parent=5 // pred_check
      %p199 = pneg %p198
    $region26: #{resblock3d_pallas.1} parent=5 // pred_check_branch
      %201 = sbr.rel (%p199) target = $region28
    $region27: #{resblock3d_pallas.1} parent=5 // pred_region
      // Predicated region
      $region29: #{resblock3d_pallas.1} parent=27 // pred_check
        %p202 = pneg %p45
      $region30: #{resblock3d_pallas.1} parent=27 // pred_check_branch
        %204 = sbr.rel (%p202) target = $region32
      $region31: #{resblock3d_pallas.1} parent=27 // pred_region
        %s205 = smul.u32 12, %s18
        %s206 = ssub.s32 17, %s205
        %p207 = scmp.lt.s32.totalorder %s206, 12
        %s208 = scalar_select %p207, %s206, 12
        %s209 = smul.u32 8, %s208
        %p210 = scmp.lt.s32.totalorder %s19, 1
        %s211 = scalar_select %p210, %s19, 1
        %p212 = scmp.lt.s32.totalorder %s205, 16
        %s213 = scalar_select %p212, %s205, 16
        %s214 = smul.addr %s211, 17
        %s215 = sadd.s32 %s213, %s214
        %s216 = smul.addr %s215, 8
        %s217 = scalar_lea.vmem %s0, %s216
        %s218 = smul.u32 12, %s18
        %s219 = ssub.s32 17, %s218
        %p220 = scmp.lt.s32.totalorder %s219, 12
        %s221 = scalar_select %p220, %s219, 12
        %s222 = smul.u32 8, %s221
      $region32: #{resblock3d_pallas.1} parent=27 // pred_fallthru
        _
      // Predicated region
      $region33: #{resblock3d_pallas.1} parent=27 // pred_check
        %p223 = pneg %p77
      $region34: #{resblock3d_pallas.1} parent=27 // pred_check_branch
        %225 = sbr.rel (%p223) target = $region36
      $region35: #{resblock3d_pallas.1} parent=27 // pred_region
        %s226 = sadd.s32 %s18, 1
        %s227 = smul.u32 %s226, 3
        %s228 = smul.u32 4, %s227
        %s229 = ssub.s32 17, %s228
        %p230 = scmp.lt.s32.totalorder %s229, 4
        %s231 = scalar_select %p230, %s229, 4
        %s232 = smul.u32 8, %s231
        %p233 = scmp.lt.s32.totalorder %s19, 1
        %s234 = scalar_select %p233, %s19, 1
        %p235 = scmp.lt.s32.totalorder %s228, 16
        %s236 = scalar_select %p235, %s228, 16
        %s237 = smul.addr %s234, 17
        %s238 = sadd.s32 %s236, %s237
        %s239 = smul.addr %s238, 8
        %s240 = scalar_lea.vmem %s1, %s239
        %s241 = sadd.s32 %s18, 1
        %s242 = smul.u32 %s241, 3
        %s243 = smul.u32 4, %s242
        %s244 = ssub.s32 17, %s243
        %p245 = scmp.lt.s32.totalorder %s244, 4
        %s246 = scalar_select %p245, %s244, 4
        %s247 = smul.u32 8, %s246
      $region36: #{resblock3d_pallas.1} parent=27 // pred_fallthru
        _
    $region28: #{resblock3d_pallas.1} parent=5 // pred_fallthru
      _
    %p248 = scmp.le.s32.totalorder 1, %s11
    %p249 = scmp.lt.s32.totalorder %s11, 3
    %p250 = pnand %p248, %p249
    %p251 = pneg %p250
    // Predicated region
    $region37: #{resblock3d_pallas.1} parent=5 // pred_check
      _
    $region38: #{resblock3d_pallas.1} parent=5 // pred_check_branch
      %253 = sbr.rel (%p250) target = $region40
    $region39: #{resblock3d_pallas.1} parent=5 // pred_region
      %s254 = ssub.s32 %s11, 1
      %s255 = smul.u32 12, %s20
      %s256 = ssub.s32 17, %s255
      %p257 = scmp.lt.s32.totalorder %s256, 12
      %s258 = scalar_select %p257, %s256, 12
      %s259 = smul.u32 8, %s258
      %p260 = scmp.lt.s32.totalorder %s21, 1
      %s261 = scalar_select %p260, %s21, 1
      %p262 = scmp.lt.s32.totalorder %s255, 16
      %s263 = scalar_select %p262, %s255, 16
      %s264 = smul.addr %s261, 17
      %s265 = sadd.s32 %s263, %s264
      %s266 = smul.addr %s265, 8
      %s267 = scalar_lea.vmem %s0, %s266
      %p268 = pneg %p51
      %p269 = pneg %p48
      %s270 = sadd.s32 %s20, 1
      %s271 = smul.u32 %s270, 3
      %s272 = smul.u32 4, %s271
      %s273 = ssub.s32 17, %s272
      %p274 = scmp.lt.s32.totalorder %s273, 4
      %s275 = scalar_select %p274, %s273, 4
      %s276 = smul.u32 8, %s275
      %p277 = scmp.lt.s32.totalorder %s21, 1
      %s278 = scalar_select %p277, %s21, 1
      %p279 = scmp.lt.s32.totalorder %s272, 16
      %s280 = scalar_select %p279, %s272, 16
      %s281 = smul.addr %s278, 17
      %s282 = sadd.s32 %s280, %s281
      %s283 = smul.addr %s282, 8
      %s284 = scalar_lea.vmem %s1, %s283
      %p285 = pneg %p83
      %p286 = pneg %p80
      %p287 = pneg %p104
      %p288 = pneg %p101
      %p289 = pneg %p125
      %p290 = pneg %p122
      %p291 = pneg %p146
      %p292 = pneg %p143
      %p293 = pneg %p174
      %p294 = pneg %p171
      %s295 = smul.u32 12, %s20
      %p296 = scmp.lt.s32.totalorder %s21, 1
      %s297 = scalar_select %p296, %s21, 1
      %p298 = scmp.lt.s32.totalorder %s295, 11
      %s299 = scalar_select %p298, %s295, 11
      %s300 = smul.addr %s297, 12
      %s301 = sadd.s32 %s299, %s300
      %s302 = smul.addr %s301, 8
      %s303 = scalar_lea.vmem %s5, %s302
      %s304 = smul.u32 12, %s20
      %s305 = ssub.s32 17, %s304
      %p306 = scmp.lt.s32.totalorder %s305, 12
      %s307 = scalar_select %p306, %s305, 12
      %s308 = smul.u32 8, %s307
      %p309 = scmp.lt.s32.totalorder %s21, 1
      %s310 = scalar_select %p309, %s21, 1
      %p311 = scmp.lt.s32.totalorder %s304, 16
      %s312 = scalar_select %p311, %s304, 16
      %s313 = smul.addr %s310, 17
      %s314 = sadd.s32 %s312, %s313
      %s315 = smul.addr %s314, 8
      %s316 = scalar_lea.vmem %s0, %s315
      %s317 = smul.u32 12, %s20
      %s318 = ssub.s32 17, %s317
      %p319 = scmp.lt.s32.totalorder %s318, 12
      %s320 = scalar_select %p319, %s318, 12
      %s321 = smul.u32 8, %s320
      %s322 = sadd.s32 %s20, 1
      %s323 = smul.u32 %s322, 3
      %s324 = smul.u32 4, %s323
      %s325 = ssub.s32 17, %s324
      %p326 = scmp.lt.s32.totalorder %s325, 4
      %s327 = scalar_select %p326, %s325, 4
      %s328 = smul.u32 8, %s327
      %p329 = scmp.lt.s32.totalorder %s21, 1
      %s330 = scalar_select %p329, %s21, 1
      %p331 = scmp.lt.s32.totalorder %s324, 16
      %s332 = scalar_select %p331, %s324, 16
      %s333 = smul.addr %s330, 17
      %s334 = sadd.s32 %s332, %s333
      %s335 = smul.addr %s334, 8
      %s336 = scalar_lea.vmem %s1, %s335
      %s337 = sadd.s32 %s20, 1
      %s338 = smul.u32 %s337, 3
      %s339 = smul.u32 4, %s338
      %s340 = ssub.s32 17, %s339
      %p341 = scmp.lt.s32.totalorder %s340, 4
      %s342 = scalar_select %p341, %s340, 4
      %s343 = smul.u32 8, %s342
      %s344 = smul.u32 12, %s20
      %p345 = scmp.lt.s32.totalorder %s21, 1
      %s346 = scalar_select %p345, %s21, 1
      %p347 = scmp.lt.s32.totalorder %s344, 11
      %s348 = scalar_select %p347, %s344, 11
      %s349 = smul.addr %s346, 12
      %s350 = sadd.s32 %s348, %s349
      %s351 = smul.addr %s350, 8
      %s352 = scalar_lea.vmem %s5, %s351
      %s353 = smul.u32 12, %s20
      %v354 = vld [vmem:[%s316] sm:$0xff]
      %v355 = vld [vmem:[%s316 + $0x8] sm:$0xff]
      %v356 = vld [vmem:[%s316 + $0x10] sm:$0xff]
      %v357 = vld [vmem:[%s316 + $0x18] sm:$0xff]
      %v358 = vld [vmem:[%s316 + $0x20] sm:$0xff]
      %v359 = vld [vmem:[%s316 + $0x28] sm:$0xff]
      %v360 = vld [vmem:[%s316 + $0x30] sm:$0xff]
      %v361 = vld [vmem:[%s316 + $0x38] sm:$0xff]
      %v362 = vld [vmem:[%s316 + $0x40] sm:$0xff]
      %v363 = vld [vmem:[%s316 + $0x48] sm:$0xff]
      %v364 = vld [vmem:[%s316 + $0x50] sm:$0xff]
      %v365 = vld [vmem:[%s316 + $0x58] sm:$0xff]
      %v366 = vmax.f32 %v354, 0.0
      %v367 = vmax.f32 %v355, 0.0
      %v368 = vmax.f32 %v356, 0.0
      %v369 = vmax.f32 %v357, 0.0
      %v370 = vmax.f32 %v358, 0.0
      %v371 = vmax.f32 %v359, 0.0
      %v372 = vmax.f32 %v360, 0.0
      %v373 = vmax.f32 %v361, 0.0
      %v374 = vmax.f32 %v362, 0.0
      %v375 = vmax.f32 %v363, 0.0
      %v376 = vmax.f32 %v364, 0.0
      %v377 = vmax.f32 %v365, 0.0
      %378 = vst [vmem:[#allocation2] sm:$0xff] %v366
      %379 = vst [vmem:[#allocation2 + $0x8] sm:$0xff] %v367
      %380 = vst [vmem:[#allocation2 + $0x10] sm:$0xff] %v368
      %381 = vst [vmem:[#allocation2 + $0x18] sm:$0xff] %v369
      %382 = vst [vmem:[#allocation2 + $0x20] sm:$0xff] %v370
      %383 = vst [vmem:[#allocation2 + $0x28] sm:$0xff] %v371
      %384 = vst [vmem:[#allocation2 + $0x30] sm:$0xff] %v372
      %385 = vst [vmem:[#allocation2 + $0x38] sm:$0xff] %v373
      %386 = vst [vmem:[#allocation2 + $0x40] sm:$0xff] %v374
      %387 = vst [vmem:[#allocation2 + $0x48] sm:$0xff] %v375
      %388 = vst [vmem:[#allocation2 + $0x50] sm:$0xff] %v376
      %389 = vst [vmem:[#allocation2 + $0x58] sm:$0xff] %v377
      %v390 = vld [vmem:[%s336] sm:$0xff]
      %v391 = vld [vmem:[%s336 + $0x8] sm:$0xff]
      %v392 = vld [vmem:[%s336 + $0x10] sm:$0xff]
      %v393 = vld [vmem:[%s336 + $0x18] sm:$0xff]
      %v394 = vmax.f32 %v390, 0.0
      %v395 = vmax.f32 %v391, 0.0
      %v396 = vmax.f32 %v392, 0.0
      %v397 = vmax.f32 %v393, 0.0
      %398 = vst [vmem:[#allocation2 + $0x60] sm:$0xff] %v394
      %399 = vst [vmem:[#allocation2 + $0x68] sm:$0xff] %v395
      %400 = vst [vmem:[#allocation2 + $0x70] sm:$0xff] %v396
      %401 = vst [vmem:[#allocation2 + $0x78] sm:$0xff] %v397
      %v402 = vld [vmem:[#allocation2] sm:$0xff]
      %v403 = vld [vmem:[#allocation2 + $0x8] sm:$0xff]
      %v404 = vld [vmem:[#allocation2 + $0x10] sm:$0xff]
      %v405 = vld [vmem:[#allocation2 + $0x18] sm:$0xff]
      %v406 = vld [vmem:[#allocation2 + $0x20] sm:$0xff]
      %v407 = vld [vmem:[#allocation2 + $0x28] sm:$0xff]
      %v408 = vld [vmem:[#allocation2 + $0x30] sm:$0xff]
      %v409 = vld [vmem:[#allocation2 + $0x38] sm:$0xff]
      %v410 = vld [vmem:[#allocation2 + $0x40] sm:$0xff]
      %v411 = vld [vmem:[#allocation2 + $0x48] sm:$0xff]
      %v412 = vld [vmem:[#allocation2 + $0x50] sm:$0xff]
      %v413 = vld [vmem:[#allocation2 + $0x58] sm:$0xff]
      %414 = vst [vmem:[#allocation3] sm:$0xff] %v402
      %415 = vst [vmem:[#allocation3 + $0x8] sm:$0xff] %v403
      %416 = vst [vmem:[#allocation3 + $0x10] sm:$0xff] %v404
      %417 = vst [vmem:[#allocation3 + $0x18] sm:$0xff] %v405
      %418 = vst [vmem:[#allocation3 + $0x20] sm:$0xff] %v406
      %419 = vst [vmem:[#allocation3 + $0x28] sm:$0xff] %v407
      %420 = vst [vmem:[#allocation3 + $0x30] sm:$0xff] %v408
      %421 = vst [vmem:[#allocation3 + $0x38] sm:$0xff] %v409
      %422 = vst [vmem:[#allocation3 + $0x40] sm:$0xff] %v410
      %423 = vst [vmem:[#allocation3 + $0x48] sm:$0xff] %v411
      %424 = vst [vmem:[#allocation3 + $0x50] sm:$0xff] %v412
      %425 = vst [vmem:[#allocation3 + $0x58] sm:$0xff] %v413
      %v426 = vld [vmem:[#allocation2] sm:$0xff]
      %v427 = vld [vmem:[#allocation2 + $0x8] sm:$0xff]
      %v428 = vld [vmem:[#allocation2 + $0x10] sm:$0xff]
      %v429 = vld [vmem:[#allocation2 + $0x18] sm:$0xff]
      %v430 = vld [vmem:[#allocation2 + $0x20] sm:$0xff]
      %v431 = vld [vmem:[#allocation2 + $0x28] sm:$0xff]
      %v432 = vld [vmem:[#allocation2 + $0x30] sm:$0xff]
      %v433 = vld [vmem:[#allocation2 + $0x38] sm:$0xff]
      %v434 = vld [vmem:[#allocation2 + $0x40] sm:$0xff]
      %v435 = vld [vmem:[#allocation2 + $0x48] sm:$0xff]
      %v436 = vld [vmem:[#allocation2 + $0x50] sm:$0xff]
      %v437 = vld [vmem:[#allocation2 + $0x58] sm:$0xff]
      %v438 = vld [vmem:[#allocation2 + $0x60] sm:$0xff]
      %452 = vrot.lane.b32.xlu0 %v426, 127
      %v453 = vpop.permute.xlu0 %452
      %454 = vrot.lane.b32.xlu0 %v427, 127
      %v455 = vpop.permute.xlu0 %454
      %456 = vrot.lane.b32.xlu0 %v428, 127
      %v457 = vpop.permute.xlu0 %456
      %458 = vrot.lane.b32.xlu0 %v429, 127
      %v459 = vpop.permute.xlu0 %458
      %460 = vrot.lane.b32.xlu0 %v430, 127
      %v461 = vpop.permute.xlu0 %460
      %462 = vrot.lane.b32.xlu0 %v431, 127
      %v463 = vpop.permute.xlu0 %462
      %464 = vrot.lane.b32.xlu0 %v432, 127
      %v465 = vpop.permute.xlu0 %464
      %466 = vrot.lane.b32.xlu0 %v433, 127
      %v467 = vpop.permute.xlu0 %466
      %468 = vrot.lane.b32.xlu0 %v434, 127
      %v469 = vpop.permute.xlu0 %468
      %470 = vrot.lane.b32.xlu0 %v435, 127
      %v471 = vpop.permute.xlu0 %470
      %472 = vrot.lane.b32.xlu0 %v436, 127
      %v473 = vpop.permute.xlu0 %472
      %474 = vrot.lane.b32.xlu0 %v437, 127
      %v475 = vpop.permute.xlu0 %474
      %476 = vrot.lane.b32.xlu0 %v438, 127
      %v477 = vpop.permute.xlu0 %476
      %vm478 = vcmask 1039360
      %v479 = vsel %vm478, %v453, %v455
      %v480 = vsel %vm478, %v455, %v457
      %v481 = vsel %vm478, %v457, %v459
      %v482 = vsel %vm478, %v459, %v461
      %v483 = vsel %vm478, %v461, %v463
      %v484 = vsel %vm478, %v463, %v465
      %v485 = vsel %vm478, %v465, %v467
      %v486 = vsel %vm478, %v467, %v469
      %v487 = vsel %vm478, %v469, %v471
      %v488 = vsel %vm478, %v471, %v473
      %v489 = vsel %vm478, %v473, %v475
      %v490 = vsel %vm478, %v475, %v477
      %503 = vst [vmem:[#allocation3 + $0x60] sm:$0xff] %v479
      %504 = vst [vmem:[#allocation3 + $0x68] sm:$0xff] %v480
      %505 = vst [vmem:[#allocation3 + $0x70] sm:$0xff] %v481
      %506 = vst [vmem:[#allocation3 + $0x78] sm:$0xff] %v482
      %507 = vst [vmem:[#allocation3 + $0x80] sm:$0xff] %v483
      %508 = vst [vmem:[#allocation3 + $0x88] sm:$0xff] %v484
      %509 = vst [vmem:[#allocation3 + $0x90] sm:$0xff] %v485
      %510 = vst [vmem:[#allocation3 + $0x98] sm:$0xff] %v486
      %511 = vst [vmem:[#allocation3 + $0xa0] sm:$0xff] %v487
      %512 = vst [vmem:[#allocation3 + $0xa8] sm:$0xff] %v488
      %513 = vst [vmem:[#allocation3 + $0xb0] sm:$0xff] %v489
      %514 = vst [vmem:[#allocation3 + $0xb8] sm:$0xff] %v490
      %v515 = vld [vmem:[#allocation2] sm:$0xff]
      %v516 = vld [vmem:[#allocation2 + $0x8] sm:$0xff]
      %v517 = vld [vmem:[#allocation2 + $0x10] sm:$0xff]
      %v518 = vld [vmem:[#allocation2 + $0x18] sm:$0xff]
      %v519 = vld [vmem:[#allocation2 + $0x20] sm:$0xff]
      %v520 = vld [vmem:[#allocation2 + $0x28] sm:$0xff]
      %v521 = vld [vmem:[#allocation2 + $0x30] sm:$0xff]
      %v522 = vld [vmem:[#allocation2 + $0x38] sm:$0xff]
      %v523 = vld [vmem:[#allocation2 + $0x40] sm:$0xff]
      %v524 = vld [vmem:[#allocation2 + $0x48] sm:$0xff]
      %v525 = vld [vmem:[#allocation2 + $0x50] sm:$0xff]
      %v526 = vld [vmem:[#allocation2 + $0x58] sm:$0xff]
      %v527 = vld [vmem:[#allocation2 + $0x60] sm:$0xff]
      %541 = vrot.lane.b32.xlu0 %v515, 126
      %v542 = vpop.permute.xlu0 %541
      %543 = vrot.lane.b32.xlu0 %v516, 126
      %v544 = vpop.permute.xlu0 %543
      %545 = vrot.lane.b32.xlu0 %v517, 126
      %v546 = vpop.permute.xlu0 %545
      %547 = vrot.lane.b32.xlu0 %v518, 126
      %v548 = vpop.permute.xlu0 %547
      %549 = vrot.lane.b32.xlu0 %v519, 126
      %v550 = vpop.permute.xlu0 %549
      %551 = vrot.lane.b32.xlu0 %v520, 126
      %v552 = vpop.permute.xlu0 %551
      %553 = vrot.lane.b32.xlu0 %v521, 126
      %v554 = vpop.permute.xlu0 %553
      %555 = vrot.lane.b32.xlu0 %v522, 126
      %v556 = vpop.permute.xlu0 %555
      %557 = vrot.lane.b32.xlu0 %v523, 126
      %v558 = vpop.permute.xlu0 %557
      %559 = vrot.lane.b32.xlu0 %v524, 126
      %v560 = vpop.permute.xlu0 %559
      %561 = vrot.lane.b32.xlu0 %v525, 126
      %v562 = vpop.permute.xlu0 %561
      %563 = vrot.lane.b32.xlu0 %v526, 126
      %v564 = vpop.permute.xlu0 %563
      %565 = vrot.lane.b32.xlu0 %v527, 126
      %v566 = vpop.permute.xlu0 %565
      %vm567 = vcmask 1031168
      %v568 = vsel %vm567, %v542, %v544
      %v569 = vsel %vm567, %v544, %v546
      %v570 = vsel %vm567, %v546, %v548
      %v571 = vsel %vm567, %v548, %v550
      %v572 = vsel %vm567, %v550, %v552
      %v573 = vsel %vm567, %v552, %v554
      %v574 = vsel %vm567, %v554, %v556
      %v575 = vsel %vm567, %v556, %v558
      %v576 = vsel %vm567, %v558, %v560
      %v577 = vsel %vm567, %v560, %v562
      %v578 = vsel %vm567, %v562, %v564
      %v579 = vsel %vm567, %v564, %v566
      %592 = vst [vmem:[#allocation3 + $0xc0] sm:$0xff] %v568
      %593 = vst [vmem:[#allocation3 + $0xc8] sm:$0xff] %v569
      %594 = vst [vmem:[#allocation3 + $0xd0] sm:$0xff] %v570
      %595 = vst [vmem:[#allocation3 + $0xd8] sm:$0xff] %v571
      %596 = vst [vmem:[#allocation3 + $0xe0] sm:$0xff] %v572
      %597 = vst [vmem:[#allocation3 + $0xe8] sm:$0xff] %v573
      %598 = vst [vmem:[#allocation3 + $0xf0] sm:$0xff] %v574
      %599 = vst [vmem:[#allocation3 + $0xf8] sm:$0xff] %v575
      %600 = vst [vmem:[#allocation3 + $0x100] sm:$0xff] %v576
      %601 = vst [vmem:[#allocation3 + $0x108] sm:$0xff] %v577
      %602 = vst [vmem:[#allocation3 + $0x110] sm:$0xff] %v578
      %603 = vst [vmem:[#allocation3 + $0x118] sm:$0xff] %v579
      %v604 = vld [vmem:[#allocation2] sm:$0xff]
      %v605 = vld [vmem:[#allocation2 + $0x8] sm:$0xff]
      %v606 = vld [vmem:[#allocation2 + $0x10] sm:$0xff]
      %v607 = vld [vmem:[#allocation2 + $0x18] sm:$0xff]
      %v608 = vld [vmem:[#allocation2 + $0x20] sm:$0xff]
      %v609 = vld [vmem:[#allocation2 + $0x28] sm:$0xff]
      %v610 = vld [vmem:[#allocation2 + $0x30] sm:$0xff]
      %v611 = vld [vmem:[#allocation2 + $0x38] sm:$0xff]
      %v612 = vld [vmem:[#allocation2 + $0x40] sm:$0xff]
      %v613 = vld [vmem:[#allocation2 + $0x48] sm:$0xff]
      %v614 = vld [vmem:[#allocation2 + $0x50] sm:$0xff]
      %v615 = vld [vmem:[#allocation2 + $0x58] sm:$0xff]
      %v616 = vld [vmem:[#allocation2 + $0x60] sm:$0xff]
      %630 = vrot.lane.b32.xlu0 %v604, 110
      %v631 = vpop.permute.xlu0 %630
      %632 = vrot.lane.b32.xlu0 %v605, 110
      %v633 = vpop.permute.xlu0 %632
      %634 = vrot.lane.b32.xlu0 %v606, 110
      %v635 = vpop.permute.xlu0 %634
      %636 = vrot.lane.b32.xlu0 %v607, 110
      %v637 = vpop.permute.xlu0 %636
      %638 = vrot.lane.b32.xlu0 %v608, 110
      %v639 = vpop.permute.xlu0 %638
      %640 = vrot.lane.b32.xlu0 %v609, 110
      %v641 = vpop.permute.xlu0 %640
      %642 = vrot.lane.b32.xlu0 %v610, 110
      %v643 = vpop.permute.xlu0 %642
      %644 = vrot.lane.b32.xlu0 %v611, 110
      %v645 = vpop.permute.xlu0 %644
      %646 = vrot.lane.b32.xlu0 %v612, 110
      %v647 = vpop.permute.xlu0 %646
      %648 = vrot.lane.b32.xlu0 %v613, 110
      %v649 = vpop.permute.xlu0 %648
      %650 = vrot.lane.b32.xlu0 %v614, 110
      %v651 = vpop.permute.xlu0 %650
      %652 = vrot.lane.b32.xlu0 %v615, 110
      %v653 = vpop.permute.xlu0 %652
      %654 = vrot.lane.b32.xlu0 %v616, 110
      %v655 = vpop.permute.xlu0 %654
      %vm656 = vcmask 900096
      %v657 = vsel %vm656, %v631, %v633
      %v658 = vsel %vm656, %v633, %v635
      %v659 = vsel %vm656, %v635, %v637
      %v660 = vsel %vm656, %v637, %v639
      %v661 = vsel %vm656, %v639, %v641
      %v662 = vsel %vm656, %v641, %v643
      %v663 = vsel %vm656, %v643, %v645
      %v664 = vsel %vm656, %v645, %v647
      %v665 = vsel %vm656, %v647, %v649
      %v666 = vsel %vm656, %v649, %v651
      %v667 = vsel %vm656, %v651, %v653
      %v668 = vsel %vm656, %v653, %v655
      %681 = vst [vmem:[#allocation3 + $0x120] sm:$0xff] %v657
      %682 = vst [vmem:[#allocation3 + $0x128] sm:$0xff] %v658
      %683 = vst [vmem:[#allocation3 + $0x130] sm:$0xff] %v659
      %684 = vst [vmem:[#allocation3 + $0x138] sm:$0xff] %v660
      %685 = vst [vmem:[#allocation3 + $0x140] sm:$0xff] %v661
      %686 = vst [vmem:[#allocation3 + $0x148] sm:$0xff] %v662
      %687 = vst [vmem:[#allocation3 + $0x150] sm:$0xff] %v663
      %688 = vst [vmem:[#allocation3 + $0x158] sm:$0xff] %v664
      %689 = vst [vmem:[#allocation3 + $0x160] sm:$0xff] %v665
      %690 = vst [vmem:[#allocation3 + $0x168] sm:$0xff] %v666
      %691 = vst [vmem:[#allocation3 + $0x170] sm:$0xff] %v667
      %692 = vst [vmem:[#allocation3 + $0x178] sm:$0xff] %v668
      %v693 = vld [vmem:[#allocation2] sm:$0xff]
      %v694 = vld [vmem:[#allocation2 + $0x8] sm:$0xff]
      %v695 = vld [vmem:[#allocation2 + $0x10] sm:$0xff]
      %v696 = vld [vmem:[#allocation2 + $0x18] sm:$0xff]
      %v697 = vld [vmem:[#allocation2 + $0x20] sm:$0xff]
      %v698 = vld [vmem:[#allocation2 + $0x28] sm:$0xff]
      %v699 = vld [vmem:[#allocation2 + $0x30] sm:$0xff]
      %v700 = vld [vmem:[#allocation2 + $0x38] sm:$0xff]
      %v701 = vld [vmem:[#allocation2 + $0x40] sm:$0xff]
      %v702 = vld [vmem:[#allocation2 + $0x48] sm:$0xff]
      %v703 = vld [vmem:[#allocation2 + $0x50] sm:$0xff]
      %v704 = vld [vmem:[#allocation2 + $0x58] sm:$0xff]
      %v705 = vld [vmem:[#allocation2 + $0x60] sm:$0xff]
      %719 = vrot.lane.b32.xlu0 %v693, 109
      %v720 = vpop.permute.xlu0 %719
      %721 = vrot.lane.b32.xlu0 %v694, 109
      %v722 = vpop.permute.xlu0 %721
      %723 = vrot.lane.b32.xlu0 %v695, 109
      %v724 = vpop.permute.xlu0 %723
      %725 = vrot.lane.b32.xlu0 %v696, 109
      %v726 = vpop.permute.xlu0 %725
      %727 = vrot.lane.b32.xlu0 %v697, 109
      %v728 = vpop.permute.xlu0 %727
      %729 = vrot.lane.b32.xlu0 %v698, 109
      %v730 = vpop.permute.xlu0 %729
      %731 = vrot.lane.b32.xlu0 %v699, 109
      %v732 = vpop.permute.xlu0 %731
      %733 = vrot.lane.b32.xlu0 %v700, 109
      %v734 = vpop.permute.xlu0 %733
      %735 = vrot.lane.b32.xlu0 %v701, 109
      %v736 = vpop.permute.xlu0 %735
      %737 = vrot.lane.b32.xlu0 %v702, 109
      %v738 = vpop.permute.xlu0 %737
      %739 = vrot.lane.b32.xlu0 %v703, 109
      %v740 = vpop.permute.xlu0 %739
      %741 = vrot.lane.b32.xlu0 %v704, 109
      %v742 = vpop.permute.xlu0 %741
      %743 = vrot.lane.b32.xlu0 %v705, 109
      %v744 = vpop.permute.xlu0 %743
      %vm745 = vcmask 891904
      %v746 = vsel %vm745, %v720, %v722
      %v747 = vsel %vm745, %v722, %v724
      %v748 = vsel %vm745, %v724, %v726
      %v749 = vsel %vm745, %v726, %v728
      %v750 = vsel %vm745, %v728, %v730
      %v751 = vsel %vm745, %v730, %v732
      %v752 = vsel %vm745, %v732, %v734
      %v753 = vsel %vm745, %v734, %v736
      %v754 = vsel %vm745, %v736, %v738
      %v755 = vsel %vm745, %v738, %v740
      %v756 = vsel %vm745, %v740, %v742
      %v757 = vsel %vm745, %v742, %v744
      %770 = vst [vmem:[#allocation3 + $0x180] sm:$0xff] %v746
      %771 = vst [vmem:[#allocation3 + $0x188] sm:$0xff] %v747
      %772 = vst [vmem:[#allocation3 + $0x190] sm:$0xff] %v748
      %773 = vst [vmem:[#allocation3 + $0x198] sm:$0xff] %v749
      %774 = vst [vmem:[#allocation3 + $0x1a0] sm:$0xff] %v750
      %775 = vst [vmem:[#allocation3 + $0x1a8] sm:$0xff] %v751
      %776 = vst [vmem:[#allocation3 + $0x1b0] sm:$0xff] %v752
      %777 = vst [vmem:[#allocation3 + $0x1b8] sm:$0xff] %v753
      %778 = vst [vmem:[#allocation3 + $0x1c0] sm:$0xff] %v754
      %779 = vst [vmem:[#allocation3 + $0x1c8] sm:$0xff] %v755
      %780 = vst [vmem:[#allocation3 + $0x1d0] sm:$0xff] %v756
      %781 = vst [vmem:[#allocation3 + $0x1d8] sm:$0xff] %v757
      %v782 = vld [vmem:[#allocation2] sm:$0xff]
      %v783 = vld [vmem:[#allocation2 + $0x8] sm:$0xff]
      %v784 = vld [vmem:[#allocation2 + $0x10] sm:$0xff]
      %v785 = vld [vmem:[#allocation2 + $0x18] sm:$0xff]
      %v786 = vld [vmem:[#allocation2 + $0x20] sm:$0xff]
      %v787 = vld [vmem:[#allocation2 + $0x28] sm:$0xff]
      %v788 = vld [vmem:[#allocation2 + $0x30] sm:$0xff]
      %v789 = vld [vmem:[#allocation2 + $0x38] sm:$0xff]
      %v790 = vld [vmem:[#allocation2 + $0x40] sm:$0xff]
      %v791 = vld [vmem:[#allocation2 + $0x48] sm:$0xff]
      %v792 = vld [vmem:[#allocation2 + $0x50] sm:$0xff]
      %v793 = vld [vmem:[#allocation2 + $0x58] sm:$0xff]
      %v794 = vld [vmem:[#allocation2 + $0x60] sm:$0xff]
      %808 = vrot.lane.b32.xlu0 %v782, 108
      %v809 = vpop.permute.xlu0 %808
      %810 = vrot.lane.b32.xlu0 %v783, 108
      %v811 = vpop.permute.xlu0 %810
      %812 = vrot.lane.b32.xlu0 %v784, 108
      %v813 = vpop.permute.xlu0 %812
      %814 = vrot.lane.b32.xlu0 %v785, 108
      %v815 = vpop.permute.xlu0 %814
      %816 = vrot.lane.b32.xlu0 %v786, 108
      %v817 = vpop.permute.xlu0 %816
      %818 = vrot.lane.b32.xlu0 %v787, 108
      %v819 = vpop.permute.xlu0 %818
      %820 = vrot.lane.b32.xlu0 %v788, 108
      %v821 = vpop.permute.xlu0 %820
      %822 = vrot.lane.b32.xlu0 %v789, 108
      %v823 = vpop.permute.xlu0 %822
      %824 = vrot.lane.b32.xlu0 %v790, 108
      %v825 = vpop.permute.xlu0 %824
      %826 = vrot.lane.b32.xlu0 %v791, 108
      %v827 = vpop.permute.xlu0 %826
      %828 = vrot.lane.b32.xlu0 %v792, 108
      %v829 = vpop.permute.xlu0 %828
      %830 = vrot.lane.b32.xlu0 %v793, 108
      %v831 = vpop.permute.xlu0 %830
      %832 = vrot.lane.b32.xlu0 %v794, 108
      %v833 = vpop.permute.xlu0 %832
      %vm834 = vcmask 883712
      %v835 = vsel %vm834, %v809, %v811
      %v836 = vsel %vm834, %v811, %v813
      %v837 = vsel %vm834, %v813, %v815
      %v838 = vsel %vm834, %v815, %v817
      %v839 = vsel %vm834, %v817, %v819
      %v840 = vsel %vm834, %v819, %v821
      %v841 = vsel %vm834, %v821, %v823
      %v842 = vsel %vm834, %v823, %v825
      %v843 = vsel %vm834, %v825, %v827
      %v844 = vsel %vm834, %v827, %v829
      %v845 = vsel %vm834, %v829, %v831
      %v846 = vsel %vm834, %v831, %v833
      %859 = vst [vmem:[#allocation3 + $0x1e0] sm:$0xff] %v835
      %860 = vst [vmem:[#allocation3 + $0x1e8] sm:$0xff] %v836
      %861 = vst [vmem:[#allocation3 + $0x1f0] sm:$0xff] %v837
      %862 = vst [vmem:[#allocation3 + $0x1f8] sm:$0xff] %v838
      %863 = vst [vmem:[#allocation3 + $0x200] sm:$0xff] %v839
      %864 = vst [vmem:[#allocation3 + $0x208] sm:$0xff] %v840
      %865 = vst [vmem:[#allocation3 + $0x210] sm:$0xff] %v841
      %866 = vst [vmem:[#allocation3 + $0x218] sm:$0xff] %v842
      %867 = vst [vmem:[#allocation3 + $0x220] sm:$0xff] %v843
      %868 = vst [vmem:[#allocation3 + $0x228] sm:$0xff] %v844
      %869 = vst [vmem:[#allocation3 + $0x230] sm:$0xff] %v845
      %870 = vst [vmem:[#allocation3 + $0x238] sm:$0xff] %v846
      %v871 = vld [vmem:[#allocation2] sm:$0xff]
      %v872 = vld [vmem:[#allocation2 + $0x8] sm:$0xff]
      %v873 = vld [vmem:[#allocation2 + $0x10] sm:$0xff]
      %v874 = vld [vmem:[#allocation2 + $0x18] sm:$0xff]
      %v875 = vld [vmem:[#allocation2 + $0x20] sm:$0xff]
      %v876 = vld [vmem:[#allocation2 + $0x28] sm:$0xff]
      %v877 = vld [vmem:[#allocation2 + $0x30] sm:$0xff]
      %v878 = vld [vmem:[#allocation2 + $0x38] sm:$0xff]
      %v879 = vld [vmem:[#allocation2 + $0x40] sm:$0xff]
      %v880 = vld [vmem:[#allocation2 + $0x48] sm:$0xff]
      %v881 = vld [vmem:[#allocation2 + $0x50] sm:$0xff]
      %v882 = vld [vmem:[#allocation2 + $0x58] sm:$0xff]
      %v883 = vld [vmem:[#allocation2 + $0x60] sm:$0xff]
      %897 = vrot.lane.b32.xlu0 %v871, 92
      %v898 = vpop.permute.xlu0 %897
      %899 = vrot.lane.b32.xlu0 %v872, 92
      %v900 = vpop.permute.xlu0 %899
      %901 = vrot.lane.b32.xlu0 %v873, 92
      %v902 = vpop.permute.xlu0 %901
      %903 = vrot.lane.b32.xlu0 %v874, 92
      %v904 = vpop.permute.xlu0 %903
      %905 = vrot.lane.b32.xlu0 %v875, 92
      %v906 = vpop.permute.xlu0 %905
      %907 = vrot.lane.b32.xlu0 %v876, 92
      %v908 = vpop.permute.xlu0 %907
      %909 = vrot.lane.b32.xlu0 %v877, 92
      %v910 = vpop.permute.xlu0 %909
      %911 = vrot.lane.b32.xlu0 %v878, 92
      %v912 = vpop.permute.xlu0 %911
      %913 = vrot.lane.b32.xlu0 %v879, 92
      %v914 = vpop.permute.xlu0 %913
      %915 = vrot.lane.b32.xlu0 %v880, 92
      %v916 = vpop.permute.xlu0 %915
      %917 = vrot.lane.b32.xlu0 %v881, 92
      %v918 = vpop.permute.xlu0 %917
      %919 = vrot.lane.b32.xlu0 %v882, 92
      %v920 = vpop.permute.xlu0 %919
      %921 = vrot.lane.b32.xlu0 %v883, 92
      %v922 = vpop.permute.xlu0 %921
      %vm923 = vcmask 752640
      %v924 = vsel %vm923, %v898, %v900
      %v925 = vsel %vm923, %v900, %v902
      %v926 = vsel %vm923, %v902, %v904
      %v927 = vsel %vm923, %v904, %v906
      %v928 = vsel %vm923, %v906, %v908
      %v929 = vsel %vm923, %v908, %v910
      %v930 = vsel %vm923, %v910, %v912
      %v931 = vsel %vm923, %v912, %v914
      %v932 = vsel %vm923, %v914, %v916
      %v933 = vsel %vm923, %v916, %v918
      %v934 = vsel %vm923, %v918, %v920
      %v935 = vsel %vm923, %v920, %v922
      %948 = vst [vmem:[#allocation3 + $0x240] sm:$0xff] %v924
      %949 = vst [vmem:[#allocation3 + $0x248] sm:$0xff] %v925
      %950 = vst [vmem:[#allocation3 + $0x250] sm:$0xff] %v926
      %951 = vst [vmem:[#allocation3 + $0x258] sm:$0xff] %v927
      %952 = vst [vmem:[#allocation3 + $0x260] sm:$0xff] %v928
      %953 = vst [vmem:[#allocation3 + $0x268] sm:$0xff] %v929
      %954 = vst [vmem:[#allocation3 + $0x270] sm:$0xff] %v930
      %955 = vst [vmem:[#allocation3 + $0x278] sm:$0xff] %v931
      %956 = vst [vmem:[#allocation3 + $0x280] sm:$0xff] %v932
      %957 = vst [vmem:[#allocation3 + $0x288] sm:$0xff] %v933
      %958 = vst [vmem:[#allocation3 + $0x290] sm:$0xff] %v934
      %959 = vst [vmem:[#allocation3 + $0x298] sm:$0xff] %v935
      %v960 = vld [vmem:[#allocation2] sm:$0xff]
      %v961 = vld [vmem:[#allocation2 + $0x8] sm:$0xff]
      %v962 = vld [vmem:[#allocation2 + $0x10] sm:$0xff]
      %v963 = vld [vmem:[#allocation2 + $0x18] sm:$0xff]
      %v964 = vld [vmem:[#allocation2 + $0x20] sm:$0xff]
      %v965 = vld [vmem:[#allocation2 + $0x28] sm:$0xff]
      %v966 = vld [vmem:[#allocation2 + $0x30] sm:$0xff]
      %v967 = vld [vmem:[#allocation2 + $0x38] sm:$0xff]
      %v968 = vld [vmem:[#allocation2 + $0x40] sm:$0xff]
      %v969 = vld [vmem:[#allocation2 + $0x48] sm:$0xff]
      %v970 = vld [vmem:[#allocation2 + $0x50] sm:$0xff]
      %v971 = vld [vmem:[#allocation2 + $0x58] sm:$0xff]
      %v972 = vld [vmem:[#allocation2 + $0x60] sm:$0xff]
      %986 = vrot.lane.b32.xlu0 %v960, 91
      %v987 = vpop.permute.xlu0 %986
      %988 = vrot.lane.b32.xlu0 %v961, 91
      %v989 = vpop.permute.xlu0 %988
      %990 = vrot.lane.b32.xlu0 %v962, 91
      %v991 = vpop.permute.xlu0 %990
      %992 = vrot.lane.b32.xlu0 %v963, 91
      %v993 = vpop.permute.xlu0 %992
      %994 = vrot.lane.b32.xlu0 %v964, 91
      %v995 = vpop.permute.xlu0 %994
      %996 = vrot.lane.b32.xlu0 %v965, 91
      %v997 = vpop.permute.xlu0 %996
      %998 = vrot.lane.b32.xlu0 %v966, 91
      %v999 = vpop.permute.xlu0 %998
      %1000 = vrot.lane.b32.xlu0 %v967, 91
      %v1001 = vpop.permute.xlu0 %1000
      %1002 = vrot.lane.b32.xlu0 %v968, 91
      %v1003 = vpop.permute.xlu0 %1002
      %1004 = vrot.lane.b32.xlu0 %v969, 91
      %v1005 = vpop.permute.xlu0 %1004
      %1006 = vrot.lane.b32.xlu0 %v970, 91
      %v1007 = vpop.permute.xlu0 %1006
      %1008 = vrot.lane.b32.xlu0 %v971, 91
      %v1009 = vpop.permute.xlu0 %1008
      %1010 = vrot.lane.b32.xlu0 %v972, 91
      %v1011 = vpop.permute.xlu0 %1010
      %vm1012 = vcmask 744448
      %v1013 = vsel %vm1012, %v987, %v989
      %v1014 = vsel %vm1012, %v989, %v991
      %v1015 = vsel %vm1012, %v991, %v993
      %v1016 = vsel %vm1012, %v993, %v995
      %v1017 = vsel %vm1012, %v995, %v997
      %v1018 = vsel %vm1012, %v997, %v999
      %v1019 = vsel %vm1012, %v999, %v1001
      %v1020 = vsel %vm1012, %v1001, %v1003
      %v1021 = vsel %vm1012, %v1003, %v1005
      %v1022 = vsel %vm1012, %v1005, %v1007
      %v1023 = vsel %vm1012, %v1007, %v1009
      %v1024 = vsel %vm1012, %v1009, %v1011
      %1037 = vst [vmem:[#allocation3 + $0x2a0] sm:$0xff] %v1013
      %1038 = vst [vmem:[#allocation3 + $0x2a8] sm:$0xff] %v1014
      %1039 = vst [vmem:[#allocation3 + $0x2b0] sm:$0xff] %v1015
      %1040 = vst [vmem:[#allocation3 + $0x2b8] sm:$0xff] %v1016
      %1041 = vst [vmem:[#allocation3 + $0x2c0] sm:$0xff] %v1017
      %1042 = vst [vmem:[#allocation3 + $0x2c8] sm:$0xff] %v1018
      %1043 = vst [vmem:[#allocation3 + $0x2d0] sm:$0xff] %v1019
      %1044 = vst [vmem:[#allocation3 + $0x2d8] sm:$0xff] %v1020
      %1045 = vst [vmem:[#allocation3 + $0x2e0] sm:$0xff] %v1021
      %1046 = vst [vmem:[#allocation3 + $0x2e8] sm:$0xff] %v1022
      %1047 = vst [vmem:[#allocation3 + $0x2f0] sm:$0xff] %v1023
      %1048 = vst [vmem:[#allocation3 + $0x2f8] sm:$0xff] %v1024
      %v1049 = vld [vmem:[#allocation2] sm:$0xff]
      %v1050 = vld [vmem:[#allocation2 + $0x8] sm:$0xff]
      %v1051 = vld [vmem:[#allocation2 + $0x10] sm:$0xff]
      %v1052 = vld [vmem:[#allocation2 + $0x18] sm:$0xff]
      %v1053 = vld [vmem:[#allocation2 + $0x20] sm:$0xff]
      %v1054 = vld [vmem:[#allocation2 + $0x28] sm:$0xff]
      %v1055 = vld [vmem:[#allocation2 + $0x30] sm:$0xff]
      %v1056 = vld [vmem:[#allocation2 + $0x38] sm:$0xff]
      %v1057 = vld [vmem:[#allocation2 + $0x40] sm:$0xff]
      %v1058 = vld [vmem:[#allocation2 + $0x48] sm:$0xff]
      %v1059 = vld [vmem:[#allocation2 + $0x50] sm:$0xff]
      %v1060 = vld [vmem:[#allocation2 + $0x58] sm:$0xff]
      %v1061 = vld [vmem:[#allocation2 + $0x60] sm:$0xff]
      %1075 = vrot.lane.b32.xlu0 %v1049, 90
      %v1076 = vpop.permute.xlu0 %1075
      %1077 = vrot.lane.b32.xlu0 %v1050, 90
      %v1078 = vpop.permute.xlu0 %1077
      %1079 = vrot.lane.b32.xlu0 %v1051, 90
      %v1080 = vpop.permute.xlu0 %1079
      %1081 = vrot.lane.b32.xlu0 %v1052, 90
      %v1082 = vpop.permute.xlu0 %1081
      %1083 = vrot.lane.b32.xlu0 %v1053, 90
      %v1084 = vpop.permute.xlu0 %1083
      %1085 = vrot.lane.b32.xlu0 %v1054, 90
      %v1086 = vpop.permute.xlu0 %1085
      %1087 = vrot.lane.b32.xlu0 %v1055, 90
      %v1088 = vpop.permute.xlu0 %1087
      %1089 = vrot.lane.b32.xlu0 %v1056, 90
      %v1090 = vpop.permute.xlu0 %1089
      %1091 = vrot.lane.b32.xlu0 %v1057, 90
      %v1092 = vpop.permute.xlu0 %1091
      %1093 = vrot.lane.b32.xlu0 %v1058, 90
      %v1094 = vpop.permute.xlu0 %1093
      %1095 = vrot.lane.b32.xlu0 %v1059, 90
      %v1096 = vpop.permute.xlu0 %1095
      %1097 = vrot.lane.b32.xlu0 %v1060, 90
      %v1098 = vpop.permute.xlu0 %1097
      %1099 = vrot.lane.b32.xlu0 %v1061, 90
      %v1100 = vpop.permute.xlu0 %1099
      %vm1101 = vcmask 736256
      %v1102 = vsel %vm1101, %v1076, %v1078
      %v1103 = vsel %vm1101, %v1078, %v1080
      %v1104 = vsel %vm1101, %v1080, %v1082
      %v1105 = vsel %vm1101, %v1082, %v1084
      %v1106 = vsel %vm1101, %v1084, %v1086
      %v1107 = vsel %vm1101, %v1086, %v1088
      %v1108 = vsel %vm1101, %v1088, %v1090
      %v1109 = vsel %vm1101, %v1090, %v1092
      %v1110 = vsel %vm1101, %v1092, %v1094
      %v1111 = vsel %vm1101, %v1094, %v1096
      %v1112 = vsel %vm1101, %v1096, %v1098
      %v1113 = vsel %vm1101, %v1098, %v1100
      %1126 = vst [vmem:[#allocation3 + $0x300] sm:$0xff] %v1102
      %1127 = vst [vmem:[#allocation3 + $0x308] sm:$0xff] %v1103
      %1128 = vst [vmem:[#allocation3 + $0x310] sm:$0xff] %v1104
      %1129 = vst [vmem:[#allocation3 + $0x318] sm:$0xff] %v1105
      %1130 = vst [vmem:[#allocation3 + $0x320] sm:$0xff] %v1106
      %1131 = vst [vmem:[#allocation3 + $0x328] sm:$0xff] %v1107
      %1132 = vst [vmem:[#allocation3 + $0x330] sm:$0xff] %v1108
      %1133 = vst [vmem:[#allocation3 + $0x338] sm:$0xff] %v1109
      %1134 = vst [vmem:[#allocation3 + $0x340] sm:$0xff] %v1110
      %1135 = vst [vmem:[#allocation3 + $0x348] sm:$0xff] %v1111
      %1136 = vst [vmem:[#allocation3 + $0x350] sm:$0xff] %v1112
      %1137 = vst [vmem:[#allocation3 + $0x358] sm:$0xff] %v1113
      %v1138 = vld [vmem:[#allocation2 + $0x8] sm:$0xff]
      %v1139 = vld [vmem:[#allocation2 + $0x10] sm:$0xff]
      %v1140 = vld [vmem:[#allocation2 + $0x18] sm:$0xff]
      %v1141 = vld [vmem:[#allocation2 + $0x20] sm:$0xff]
      %v1142 = vld [vmem:[#allocation2 + $0x28] sm:$0xff]
      %v1143 = vld [vmem:[#allocation2 + $0x30] sm:$0xff]
      %v1144 = vld [vmem:[#allocation2 + $0x38] sm:$0xff]
      %v1145 = vld [vmem:[#allocation2 + $0x40] sm:$0xff]
      %v1146 = vld [vmem:[#allocation2 + $0x48] sm:$0xff]
      %v1147 = vld [vmem:[#allocation2 + $0x50] sm:$0xff]
      %v1148 = vld [vmem:[#allocation2 + $0x58] sm:$0xff]
      %v1149 = vld [vmem:[#allocation2 + $0x60] sm:$0xff]
      %v1150 = vld [vmem:[#allocation2 + $0x68] sm:$0xff]
      %1164 = vrot.lane.b32.xlu0 %v1138, 76
      %v1165 = vpop.permute.xlu0 %1164
      %1166 = vrot.lane.b32.xlu0 %v1139, 76
      %v1167 = vpop.permute.xlu0 %1166
      %1168 = vrot.lane.b32.xlu0 %v1140, 76
      %v1169 = vpop.permute.xlu0 %1168
      %1170 = vrot.lane.b32.xlu0 %v1141, 76
      %v1171 = vpop.permute.xlu0 %1170
      %1172 = vrot.lane.b32.xlu0 %v1142, 76
      %v1173 = vpop.permute.xlu0 %1172
      %1174 = vrot.lane.b32.xlu0 %v1143, 76
      %v1175 = vpop.permute.xlu0 %1174
      %1176 = vrot.lane.b32.xlu0 %v1144, 76
      %v1177 = vpop.permute.xlu0 %1176
      %1178 = vrot.lane.b32.xlu0 %v1145, 76
      %v1179 = vpop.permute.xlu0 %1178
      %1180 = vrot.lane.b32.xlu0 %v1146, 76
      %v1181 = vpop.permute.xlu0 %1180
      %1182 = vrot.lane.b32.xlu0 %v1147, 76
      %v1183 = vpop.permute.xlu0 %1182
      %1184 = vrot.lane.b32.xlu0 %v1148, 76
      %v1185 = vpop.permute.xlu0 %1184
      %1186 = vrot.lane.b32.xlu0 %v1149, 76
      %v1187 = vpop.permute.xlu0 %1186
      %1188 = vrot.lane.b32.xlu0 %v1150, 76
      %v1189 = vpop.permute.xlu0 %1188
      %vm1190 = vcmask 621568
      %v1191 = vsel %vm1190, %v1165, %v1167
      %v1192 = vsel %vm1190, %v1167, %v1169
      %v1193 = vsel %vm1190, %v1169, %v1171
      %v1194 = vsel %vm1190, %v1171, %v1173
      %v1195 = vsel %vm1190, %v1173, %v1175
      %v1196 = vsel %vm1190, %v1175, %v1177
      %v1197 = vsel %vm1190, %v1177, %v1179
      %v1198 = vsel %vm1190, %v1179, %v1181
      %v1199 = vsel %vm1190, %v1181, %v1183
      %v1200 = vsel %vm1190, %v1183, %v1185
      %v1201 = vsel %vm1190, %v1185, %v1187
      %v1202 = vsel %vm1190, %v1187, %v1189
      %1215 = vst [vmem:[#allocation3 + $0x360] sm:$0xff] %v1191
      %1216 = vst [vmem:[#allocation3 + $0x368] sm:$0xff] %v1192
      %1217 = vst [vmem:[#allocation3 + $0x370] sm:$0xff] %v1193
      %1218 = vst [vmem:[#allocation3 + $0x378] sm:$0xff] %v1194
      %1219 = vst [vmem:[#allocation3 + $0x380] sm:$0xff] %v1195
      %1220 = vst [vmem:[#allocation3 + $0x388] sm:$0xff] %v1196
      %1221 = vst [vmem:[#allocation3 + $0x390] sm:$0xff] %v1197
      %1222 = vst [vmem:[#allocation3 + $0x398] sm:$0xff] %v1198
      %1223 = vst [vmem:[#allocation3 + $0x3a0] sm:$0xff] %v1199
      %1224 = vst [vmem:[#allocation3 + $0x3a8] sm:$0xff] %v1200
      %1225 = vst [vmem:[#allocation3 + $0x3b0] sm:$0xff] %v1201
      %1226 = vst [vmem:[#allocation3 + $0x3b8] sm:$0xff] %v1202
      %v1227 = vld [vmem:[#allocation2 + $0x8] sm:$0xff]
      %v1228 = vld [vmem:[#allocation2 + $0x10] sm:$0xff]
      %v1229 = vld [vmem:[#allocation2 + $0x18] sm:$0xff]
      %v1230 = vld [vmem:[#allocation2 + $0x20] sm:$0xff]
      %v1231 = vld [vmem:[#allocation2 + $0x28] sm:$0xff]
      %v1232 = vld [vmem:[#allocation2 + $0x30] sm:$0xff]
      %v1233 = vld [vmem:[#allocation2 + $0x38] sm:$0xff]
      %v1234 = vld [vmem:[#allocation2 + $0x40] sm:$0xff]
      %v1235 = vld [vmem:[#allocation2 + $0x48] sm:$0xff]
      %v1236 = vld [vmem:[#allocation2 + $0x50] sm:$0xff]
      %v1237 = vld [vmem:[#allocation2 + $0x58] sm:$0xff]
      %v1238 = vld [vmem:[#allocation2 + $0x60] sm:$0xff]
      %v1239 = vld [vmem:[#allocation2 + $0x68] sm:$0xff]
      %1253 = vrot.lane.b32.xlu0 %v1227, 75
      %v1254 = vpop.permute.xlu0 %1253
      %1255 = vrot.lane.b32.xlu0 %v1228, 75
      %v1256 = vpop.permute.xlu0 %1255
      %1257 = vrot.lane.b32.xlu0 %v1229, 75
      %v1258 = vpop.permute.xlu0 %1257
      %1259 = vrot.lane.b32.xlu0 %v1230, 75
      %v1260 = vpop.permute.xlu0 %1259
      %1261 = vrot.lane.b32.xlu0 %v1231, 75
      %v1262 = vpop.permute.xlu0 %1261
      %1263 = vrot.lane.b32.xlu0 %v1232, 75
      %v1264 = vpop.permute.xlu0 %1263
      %1265 = vrot.lane.b32.xlu0 %v1233, 75
      %v1266 = vpop.permute.xlu0 %1265
      %1267 = vrot.lane.b32.xlu0 %v1234, 75
      %v1268 = vpop.permute.xlu0 %1267
      %1269 = vrot.lane.b32.xlu0 %v1235, 75
      %v1270 = vpop.permute.xlu0 %1269
      %1271 = vrot.lane.b32.xlu0 %v1236, 75
      %v1272 = vpop.permute.xlu0 %1271
      %1273 = vrot.lane.b32.xlu0 %v1237, 75
      %v1274 = vpop.permute.xlu0 %1273
      %1275 = vrot.lane.b32.xlu0 %v1238, 75
      %v1276 = vpop.permute.xlu0 %1275
      %1277 = vrot.lane.b32.xlu0 %v1239, 75
      %v1278 = vpop.permute.xlu0 %1277
      %vm1279 = vcmask 613376
      %v1280 = vsel %vm1279, %v1254, %v1256
      %v1281 = vsel %vm1279, %v1256, %v1258
      %v1282 = vsel %vm1279, %v1258, %v1260
      %v1283 = vsel %vm1279, %v1260, %v1262
      %v1284 = vsel %vm1279, %v1262, %v1264
      %v1285 = vsel %vm1279, %v1264, %v1266
      %v1286 = vsel %vm1279, %v1266, %v1268
      %v1287 = vsel %vm1279, %v1268, %v1270
      %v1288 = vsel %vm1279, %v1270, %v1272
      %v1289 = vsel %vm1279, %v1272, %v1274
      %v1290 = vsel %vm1279, %v1274, %v1276
      %v1291 = vsel %vm1279, %v1276, %v1278
      %1304 = vst [vmem:[#allocation3 + $0x3c0] sm:$0xff] %v1280
      %1305 = vst [vmem:[#allocation3 + $0x3c8] sm:$0xff] %v1281
      %1306 = vst [vmem:[#allocation3 + $0x3d0] sm:$0xff] %v1282
      %1307 = vst [vmem:[#allocation3 + $0x3d8] sm:$0xff] %v1283
      %1308 = vst [vmem:[#allocation3 + $0x3e0] sm:$0xff] %v1284
      %1309 = vst [vmem:[#allocation3 + $0x3e8] sm:$0xff] %v1285
      %1310 = vst [vmem:[#allocation3 + $0x3f0] sm:$0xff] %v1286
      %1311 = vst [vmem:[#allocation3 + $0x3f8] sm:$0xff] %v1287
      %1312 = vst [vmem:[#allocation3 + $0x400] sm:$0xff] %v1288
      %1313 = vst [vmem:[#allocation3 + $0x408] sm:$0xff] %v1289
      %1314 = vst [vmem:[#allocation3 + $0x410] sm:$0xff] %v1290
      %1315 = vst [vmem:[#allocation3 + $0x418] sm:$0xff] %v1291
      %v1316 = vld [vmem:[#allocation2 + $0x8] sm:$0xff]
      %v1317 = vld [vmem:[#allocation2 + $0x10] sm:$0xff]
      %v1318 = vld [vmem:[#allocation2 + $0x18] sm:$0xff]
      %v1319 = vld [vmem:[#allocation2 + $0x20] sm:$0xff]
      %v1320 = vld [vmem:[#allocation2 + $0x28] sm:$0xff]
      %v1321 = vld [vmem:[#allocation2 + $0x30] sm:$0xff]
      %v1322 = vld [vmem:[#allocation2 + $0x38] sm:$0xff]
      %v1323 = vld [vmem:[#allocation2 + $0x40] sm:$0xff]
      %v1324 = vld [vmem:[#allocation2 + $0x48] sm:$0xff]
      %v1325 = vld [vmem:[#allocation2 + $0x50] sm:$0xff]
      %v1326 = vld [vmem:[#allocation2 + $0x58] sm:$0xff]
      %v1327 = vld [vmem:[#allocation2 + $0x60] sm:$0xff]
      %v1328 = vld [vmem:[#allocation2 + $0x68] sm:$0xff]
      %1342 = vrot.lane.b32.xlu0 %v1316, 74
      %v1343 = vpop.permute.xlu0 %1342
      %1344 = vrot.lane.b32.xlu0 %v1317, 74
      %v1345 = vpop.permute.xlu0 %1344
      %1346 = vrot.lane.b32.xlu0 %v1318, 74
      %v1347 = vpop.permute.xlu0 %1346
      %1348 = vrot.lane.b32.xlu0 %v1319, 74
      %v1349 = vpop.permute.xlu0 %1348
      %1350 = vrot.lane.b32.xlu0 %v1320, 74
      %v1351 = vpop.permute.xlu0 %1350
      %1352 = vrot.lane.b32.xlu0 %v1321, 74
      %v1353 = vpop.permute.xlu0 %1352
      %1354 = vrot.lane.b32.xlu0 %v1322, 74
      %v1355 = vpop.permute.xlu0 %1354
      %1356 = vrot.lane.b32.xlu0 %v1323, 74
      %v1357 = vpop.permute.xlu0 %1356
      %1358 = vrot.lane.b32.xlu0 %v1324, 74
      %v1359 = vpop.permute.xlu0 %1358
      %1360 = vrot.lane.b32.xlu0 %v1325, 74
      %v1361 = vpop.permute.xlu0 %1360
      %1362 = vrot.lane.b32.xlu0 %v1326, 74
      %v1363 = vpop.permute.xlu0 %1362
      %1364 = vrot.lane.b32.xlu0 %v1327, 74
      %v1365 = vpop.permute.xlu0 %1364
      %1366 = vrot.lane.b32.xlu0 %v1328, 74
      %v1367 = vpop.permute.xlu0 %1366
      %vm1368 = vcmask 605184
      %v1369 = vsel %vm1368, %v1343, %v1345
      %v1370 = vsel %vm1368, %v1345, %v1347
      %v1371 = vsel %vm1368, %v1347, %v1349
      %v1372 = vsel %vm1368, %v1349, %v1351
      %v1373 = vsel %vm1368, %v1351, %v1353
      %v1374 = vsel %vm1368, %v1353, %v1355
      %v1375 = vsel %vm1368, %v1355, %v1357
      %v1376 = vsel %vm1368, %v1357, %v1359
      %v1377 = vsel %vm1368, %v1359, %v1361
      %v1378 = vsel %vm1368, %v1361, %v1363
      %v1379 = vsel %vm1368, %v1363, %v1365
      %v1380 = vsel %vm1368, %v1365, %v1367
      %1393 = vst [vmem:[#allocation3 + $0x420] sm:$0xff] %v1369
      %1394 = vst [vmem:[#allocation3 + $0x428] sm:$0xff] %v1370
      %1395 = vst [vmem:[#allocation3 + $0x430] sm:$0xff] %v1371
      %1396 = vst [vmem:[#allocation3 + $0x438] sm:$0xff] %v1372
      %1397 = vst [vmem:[#allocation3 + $0x440] sm:$0xff] %v1373
      %1398 = vst [vmem:[#allocation3 + $0x448] sm:$0xff] %v1374
      %1399 = vst [vmem:[#allocation3 + $0x450] sm:$0xff] %v1375
      %1400 = vst [vmem:[#allocation3 + $0x458] sm:$0xff] %v1376
      %1401 = vst [vmem:[#allocation3 + $0x460] sm:$0xff] %v1377
      %1402 = vst [vmem:[#allocation3 + $0x468] sm:$0xff] %v1378
      %1403 = vst [vmem:[#allocation3 + $0x470] sm:$0xff] %v1379
      %1404 = vst [vmem:[#allocation3 + $0x478] sm:$0xff] %v1380
      %v1405 = vld [vmem:[#allocation2 + $0x8] sm:$0xff]
      %v1406 = vld [vmem:[#allocation2 + $0x10] sm:$0xff]
      %v1407 = vld [vmem:[#allocation2 + $0x18] sm:$0xff]
      %v1408 = vld [vmem:[#allocation2 + $0x20] sm:$0xff]
      %v1409 = vld [vmem:[#allocation2 + $0x28] sm:$0xff]
      %v1410 = vld [vmem:[#allocation2 + $0x30] sm:$0xff]
      %v1411 = vld [vmem:[#allocation2 + $0x38] sm:$0xff]
      %v1412 = vld [vmem:[#allocation2 + $0x40] sm:$0xff]
      %v1413 = vld [vmem:[#allocation2 + $0x48] sm:$0xff]
      %v1414 = vld [vmem:[#allocation2 + $0x50] sm:$0xff]
      %v1415 = vld [vmem:[#allocation2 + $0x58] sm:$0xff]
      %v1416 = vld [vmem:[#allocation2 + $0x60] sm:$0xff]
      %v1417 = vld [vmem:[#allocation2 + $0x68] sm:$0xff]
      %1431 = vrot.lane.b32.xlu0 %v1405, 58
      %v1432 = vpop.permute.xlu0 %1431
      %1433 = vrot.lane.b32.xlu0 %v1406, 58
      %v1434 = vpop.permute.xlu0 %1433
      %1435 = vrot.lane.b32.xlu0 %v1407, 58
      %v1436 = vpop.permute.xlu0 %1435
      %1437 = vrot.lane.b32.xlu0 %v1408, 58
      %v1438 = vpop.permute.xlu0 %1437
      %1439 = vrot.lane.b32.xlu0 %v1409, 58
      %v1440 = vpop.permute.xlu0 %1439
      %1441 = vrot.lane.b32.xlu0 %v1410, 58
      %v1442 = vpop.permute.xlu0 %1441
      %1443 = vrot.lane.b32.xlu0 %v1411, 58
      %v1444 = vpop.permute.xlu0 %1443
      %1445 = vrot.lane.b32.xlu0 %v1412, 58
      %v1446 = vpop.permute.xlu0 %1445
      %1447 = vrot.lane.b32.xlu0 %v1413, 58
      %v1448 = vpop.permute.xlu0 %1447
      %1449 = vrot.lane.b32.xlu0 %v1414, 58
      %v1450 = vpop.permute.xlu0 %1449
      %1451 = vrot.lane.b32.xlu0 %v1415, 58
      %v1452 = vpop.permute.xlu0 %1451
      %1453 = vrot.lane.b32.xlu0 %v1416, 58
      %v1454 = vpop.permute.xlu0 %1453
      %1455 = vrot.lane.b32.xlu0 %v1417, 58
      %v1456 = vpop.permute.xlu0 %1455
      %vm1457 = vcmask 474112
      %v1458 = vsel %vm1457, %v1432, %v1434
      %v1459 = vsel %vm1457, %v1434, %v1436
      %v1460 = vsel %vm1457, %v1436, %v1438
      %v1461 = vsel %vm1457, %v1438, %v1440
      %v1462 = vsel %vm1457, %v1440, %v1442
      %v1463 = vsel %vm1457, %v1442, %v1444
      %v1464 = vsel %vm1457, %v1444, %v1446
      %v1465 = vsel %vm1457, %v1446, %v1448
      %v1466 = vsel %vm1457, %v1448, %v1450
      %v1467 = vsel %vm1457, %v1450, %v1452
      %v1468 = vsel %vm1457, %v1452, %v1454
      %v1469 = vsel %vm1457, %v1454, %v1456
      %1482 = vst [vmem:[#allocation3 + $0x480] sm:$0xff] %v1458
      %1483 = vst [vmem:[#allocation3 + $0x488] sm:$0xff] %v1459
      %1484 = vst [vmem:[#allocation3 + $0x490] sm:$0xff] %v1460
      %1485 = vst [vmem:[#allocation3 + $0x498] sm:$0xff] %v1461
      %1486 = vst [vmem:[#allocation3 + $0x4a0] sm:$0xff] %v1462
      %1487 = vst [vmem:[#allocation3 + $0x4a8] sm:$0xff] %v1463
      %1488 = vst [vmem:[#allocation3 + $0x4b0] sm:$0xff] %v1464
      %1489 = vst [vmem:[#allocation3 + $0x4b8] sm:$0xff] %v1465
      %1490 = vst [vmem:[#allocation3 + $0x4c0] sm:$0xff] %v1466
      %1491 = vst [vmem:[#allocation3 + $0x4c8] sm:$0xff] %v1467
      %1492 = vst [vmem:[#allocation3 + $0x4d0] sm:$0xff] %v1468
      %1493 = vst [vmem:[#allocation3 + $0x4d8] sm:$0xff] %v1469
      %v1494 = vld [vmem:[#allocation2 + $0x8] sm:$0xff]
      %v1495 = vld [vmem:[#allocation2 + $0x10] sm:$0xff]
      %v1496 = vld [vmem:[#allocation2 + $0x18] sm:$0xff]
      %v1497 = vld [vmem:[#allocation2 + $0x20] sm:$0xff]
      %v1498 = vld [vmem:[#allocation2 + $0x28] sm:$0xff]
      %v1499 = vld [vmem:[#allocation2 + $0x30] sm:$0xff]
      %v1500 = vld [vmem:[#allocation2 + $0x38] sm:$0xff]
      %v1501 = vld [vmem:[#allocation2 + $0x40] sm:$0xff]
      %v1502 = vld [vmem:[#allocation2 + $0x48] sm:$0xff]
      %v1503 = vld [vmem:[#allocation2 + $0x50] sm:$0xff]
      %v1504 = vld [vmem:[#allocation2 + $0x58] sm:$0xff]
      %v1505 = vld [vmem:[#allocation2 + $0x60] sm:$0xff]
      %v1506 = vld [vmem:[#allocation2 + $0x68] sm:$0xff]
      %1520 = vrot.lane.b32.xlu0 %v1494, 57
      %v1521 = vpop.permute.xlu0 %1520
      %1522 = vrot.lane.b32.xlu0 %v1495, 57
      %v1523 = vpop.permute.xlu0 %1522
      %1524 = vrot.lane.b32.xlu0 %v1496, 57
      %v1525 = vpop.permute.xlu0 %1524
      %1526 = vrot.lane.b32.xlu0 %v1497, 57
      %v1527 = vpop.permute.xlu0 %1526
      %1528 = vrot.lane.b32.xlu0 %v1498, 57
      %v1529 = vpop.permute.xlu0 %1528
      %1530 = vrot.lane.b32.xlu0 %v1499, 57
      %v1531 = vpop.permute.xlu0 %1530
      %1532 = vrot.lane.b32.xlu0 %v1500, 57
      %v1533 = vpop.permute.xlu0 %1532
      %1534 = vrot.lane.b32.xlu0 %v1501, 57
      %v1535 = vpop.permute.xlu0 %1534
      %1536 = vrot.lane.b32.xlu0 %v1502, 57
      %v1537 = vpop.permute.xlu0 %1536
      %1538 = vrot.lane.b32.xlu0 %v1503, 57
      %v1539 = vpop.permute.xlu0 %1538
      %1540 = vrot.lane.b32.xlu0 %v1504, 57
      %v1541 = vpop.permute.xlu0 %1540
      %1542 = vrot.lane.b32.xlu0 %v1505, 57
      %v1543 = vpop.permute.xlu0 %1542
      %1544 = vrot.lane.b32.xlu0 %v1506, 57
      %v1545 = vpop.permute.xlu0 %1544
      %vm1546 = vcmask 465920
      %v1547 = vsel %vm1546, %v1521, %v1523
      %v1548 = vsel %vm1546, %v1523, %v1525
      %v1549 = vsel %vm1546, %v1525, %v1527
      %v1550 = vsel %vm1546, %v1527, %v1529
      %v1551 = vsel %vm1546, %v1529, %v1531
      %v1552 = vsel %vm1546, %v1531, %v1533
      %v1553 = vsel %vm1546, %v1533, %v1535
      %v1554 = vsel %vm1546, %v1535, %v1537
      %v1555 = vsel %vm1546, %v1537, %v1539
      %v1556 = vsel %vm1546, %v1539, %v1541
      %v1557 = vsel %vm1546, %v1541, %v1543
      %v1558 = vsel %vm1546, %v1543, %v1545
      %1571 = vst [vmem:[#allocation3 + $0x4e0] sm:$0xff] %v1547
      %1572 = vst [vmem:[#allocation3 + $0x4e8] sm:$0xff] %v1548
      %1573 = vst [vmem:[#allocation3 + $0x4f0] sm:$0xff] %v1549
      %1574 = vst [vmem:[#allocation3 + $0x4f8] sm:$0xff] %v1550
      %1575 = vst [vmem:[#allocation3 + $0x500] sm:$0xff] %v1551
      %1576 = vst [vmem:[#allocation3 + $0x508] sm:$0xff] %v1552
      %1577 = vst [vmem:[#allocation3 + $0x510] sm:$0xff] %v1553
      %1578 = vst [vmem:[#allocation3 + $0x518] sm:$0xff] %v1554
      %1579 = vst [vmem:[#allocation3 + $0x520] sm:$0xff] %v1555
      %1580 = vst [vmem:[#allocation3 + $0x528] sm:$0xff] %v1556
      %1581 = vst [vmem:[#allocation3 + $0x530] sm:$0xff] %v1557
      %1582 = vst [vmem:[#allocation3 + $0x538] sm:$0xff] %v1558
      %v1583 = vld [vmem:[#allocation2 + $0x8] sm:$0xff]
      %v1584 = vld [vmem:[#allocation2 + $0x10] sm:$0xff]
      %v1585 = vld [vmem:[#allocation2 + $0x18] sm:$0xff]
      %v1586 = vld [vmem:[#allocation2 + $0x20] sm:$0xff]
      %v1587 = vld [vmem:[#allocation2 + $0x28] sm:$0xff]
      %v1588 = vld [vmem:[#allocation2 + $0x30] sm:$0xff]
      %v1589 = vld [vmem:[#allocation2 + $0x38] sm:$0xff]
      %v1590 = vld [vmem:[#allocation2 + $0x40] sm:$0xff]
      %v1591 = vld [vmem:[#allocation2 + $0x48] sm:$0xff]
      %v1592 = vld [vmem:[#allocation2 + $0x50] sm:$0xff]
      %v1593 = vld [vmem:[#allocation2 + $0x58] sm:$0xff]
      %v1594 = vld [vmem:[#allocation2 + $0x60] sm:$0xff]
      %v1595 = vld [vmem:[#allocation2 + $0x68] sm:$0xff]
      %1609 = vrot.lane.b32.xlu0 %v1583, 56
      %v1610 = vpop.permute.xlu0 %1609
      %1611 = vrot.lane.b32.xlu0 %v1584, 56
      %v1612 = vpop.permute.xlu0 %1611
      %1613 = vrot.lane.b32.xlu0 %v1585, 56
      %v1614 = vpop.permute.xlu0 %1613
      %1615 = vrot.lane.b32.xlu0 %v1586, 56
      %v1616 = vpop.permute.xlu0 %1615
      %1617 = vrot.lane.b32.xlu0 %v1587, 56
      %v1618 = vpop.permute.xlu0 %1617
      %1619 = vrot.lane.b32.xlu0 %v1588, 56
      %v1620 = vpop.permute.xlu0 %1619
      %1621 = vrot.lane.b32.xlu0 %v1589, 56
      %v1622 = vpop.permute.xlu0 %1621
      %1623 = vrot.lane.b32.xlu0 %v1590, 56
      %v1624 = vpop.permute.xlu0 %1623
      %1625 = vrot.lane.b32.xlu0 %v1591, 56
      %v1626 = vpop.permute.xlu0 %1625
      %1627 = vrot.lane.b32.xlu0 %v1592, 56
      %v1628 = vpop.permute.xlu0 %1627
      %1629 = vrot.lane.b32.xlu0 %v1593, 56
      %v1630 = vpop.permute.xlu0 %1629
      %1631 = vrot.lane.b32.xlu0 %v1594, 56
      %v1632 = vpop.permute.xlu0 %1631
      %1633 = vrot.lane.b32.xlu0 %v1595, 56
      %v1634 = vpop.permute.xlu0 %1633
      %vm1635 = vcmask 457728
      %v1636 = vsel %vm1635, %v1610, %v1612
      %v1637 = vsel %vm1635, %v1612, %v1614
      %v1638 = vsel %vm1635, %v1614, %v1616
      %v1639 = vsel %vm1635, %v1616, %v1618
      %v1640 = vsel %vm1635, %v1618, %v1620
      %v1641 = vsel %vm1635, %v1620, %v1622
      %v1642 = vsel %vm1635, %v1622, %v1624
      %v1643 = vsel %vm1635, %v1624, %v1626
      %v1644 = vsel %vm1635, %v1626, %v1628
      %v1645 = vsel %vm1635, %v1628, %v1630
      %v1646 = vsel %vm1635, %v1630, %v1632
      %v1647 = vsel %vm1635, %v1632, %v1634
      %1660 = vst [vmem:[#allocation3 + $0x540] sm:$0xff] %v1636
      %1661 = vst [vmem:[#allocation3 + $0x548] sm:$0xff] %v1637
      %1662 = vst [vmem:[#allocation3 + $0x550] sm:$0xff] %v1638
      %1663 = vst [vmem:[#allocation3 + $0x558] sm:$0xff] %v1639
      %1664 = vst [vmem:[#allocation3 + $0x560] sm:$0xff] %v1640
      %1665 = vst [vmem:[#allocation3 + $0x568] sm:$0xff] %v1641
      %1666 = vst [vmem:[#allocation3 + $0x570] sm:$0xff] %v1642
      %1667 = vst [vmem:[#allocation3 + $0x578] sm:$0xff] %v1643
      %1668 = vst [vmem:[#allocation3 + $0x580] sm:$0xff] %v1644
      %1669 = vst [vmem:[#allocation3 + $0x588] sm:$0xff] %v1645
      %1670 = vst [vmem:[#allocation3 + $0x590] sm:$0xff] %v1646
      %1671 = vst [vmem:[#allocation3 + $0x598] sm:$0xff] %v1647
      %v1672 = vld [vmem:[#allocation2 + $0x8] sm:$0xff]
      %v1673 = vld [vmem:[#allocation2 + $0x10] sm:$0xff]
      %v1674 = vld [vmem:[#allocation2 + $0x18] sm:$0xff]
      %v1675 = vld [vmem:[#allocation2 + $0x20] sm:$0xff]
      %v1676 = vld [vmem:[#allocation2 + $0x28] sm:$0xff]
      %v1677 = vld [vmem:[#allocation2 + $0x30] sm:$0xff]
      %v1678 = vld [vmem:[#allocation2 + $0x38] sm:$0xff]
      %v1679 = vld [vmem:[#allocation2 + $0x40] sm:$0xff]
      %v1680 = vld [vmem:[#allocation2 + $0x48] sm:$0xff]
      %v1681 = vld [vmem:[#allocation2 + $0x50] sm:$0xff]
      %v1682 = vld [vmem:[#allocation2 + $0x58] sm:$0xff]
      %v1683 = vld [vmem:[#allocation2 + $0x60] sm:$0xff]
      %v1684 = vld [vmem:[#allocation2 + $0x68] sm:$0xff]
      %1698 = vrot.lane.b32.xlu0 %v1672, 40
      %v1699 = vpop.permute.xlu0 %1698
      %1700 = vrot.lane.b32.xlu0 %v1673, 40
      %v1701 = vpop.permute.xlu0 %1700
      %1702 = vrot.lane.b32.xlu0 %v1674, 40
      %v1703 = vpop.permute.xlu0 %1702
      %1704 = vrot.lane.b32.xlu0 %v1675, 40
      %v1705 = vpop.permute.xlu0 %1704
      %1706 = vrot.lane.b32.xlu0 %v1676, 40
      %v1707 = vpop.permute.xlu0 %1706
      %1708 = vrot.lane.b32.xlu0 %v1677, 40
      %v1709 = vpop.permute.xlu0 %1708
      %1710 = vrot.lane.b32.xlu0 %v1678, 40
      %v1711 = vpop.permute.xlu0 %1710
      %1712 = vrot.lane.b32.xlu0 %v1679, 40
      %v1713 = vpop.permute.xlu0 %1712
      %1714 = vrot.lane.b32.xlu0 %v1680, 40
      %v1715 = vpop.permute.xlu0 %1714
      %1716 = vrot.lane.b32.xlu0 %v1681, 40
      %v1717 = vpop.permute.xlu0 %1716
      %1718 = vrot.lane.b32.xlu0 %v1682, 40
      %v1719 = vpop.permute.xlu0 %1718
      %1720 = vrot.lane.b32.xlu0 %v1683, 40
      %v1721 = vpop.permute.xlu0 %1720
      %1722 = vrot.lane.b32.xlu0 %v1684, 40
      %v1723 = vpop.permute.xlu0 %1722
      %vm1724 = vcmask 326656
      %v1725 = vsel %vm1724, %v1699, %v1701
      %v1726 = vsel %vm1724, %v1701, %v1703
      %v1727 = vsel %vm1724, %v1703, %v1705
      %v1728 = vsel %vm1724, %v1705, %v1707
      %v1729 = vsel %vm1724, %v1707, %v1709
      %v1730 = vsel %vm1724, %v1709, %v1711
      %v1731 = vsel %vm1724, %v1711, %v1713
      %v1732 = vsel %vm1724, %v1713, %v1715
      %v1733 = vsel %vm1724, %v1715, %v1717
      %v1734 = vsel %vm1724, %v1717, %v1719
      %v1735 = vsel %vm1724, %v1719, %v1721
      %v1736 = vsel %vm1724, %v1721, %v1723
      %1749 = vst [vmem:[#allocation3 + $0x5a0] sm:$0xff] %v1725
      %1750 = vst [vmem:[#allocation3 + $0x5a8] sm:$0xff] %v1726
      %1751 = vst [vmem:[#allocation3 + $0x5b0] sm:$0xff] %v1727
      %1752 = vst [vmem:[#allocation3 + $0x5b8] sm:$0xff] %v1728
      %1753 = vst [vmem:[#allocation3 + $0x5c0] sm:$0xff] %v1729
      %1754 = vst [vmem:[#allocation3 + $0x5c8] sm:$0xff] %v1730
      %1755 = vst [vmem:[#allocation3 + $0x5d0] sm:$0xff] %v1731
      %1756 = vst [vmem:[#allocation3 + $0x5d8] sm:$0xff] %v1732
      %1757 = vst [vmem:[#allocation3 + $0x5e0] sm:$0xff] %v1733
      %1758 = vst [vmem:[#allocation3 + $0x5e8] sm:$0xff] %v1734
      %1759 = vst [vmem:[#allocation3 + $0x5f0] sm:$0xff] %v1735
      %1760 = vst [vmem:[#allocation3 + $0x5f8] sm:$0xff] %v1736
      %v1761 = vld [vmem:[#allocation2 + $0x8] sm:$0xff]
      %v1762 = vld [vmem:[#allocation2 + $0x10] sm:$0xff]
      %v1763 = vld [vmem:[#allocation2 + $0x18] sm:$0xff]
      %v1764 = vld [vmem:[#allocation2 + $0x20] sm:$0xff]
      %v1765 = vld [vmem:[#allocation2 + $0x28] sm:$0xff]
      %v1766 = vld [vmem:[#allocation2 + $0x30] sm:$0xff]
      %v1767 = vld [vmem:[#allocation2 + $0x38] sm:$0xff]
      %v1768 = vld [vmem:[#allocation2 + $0x40] sm:$0xff]
      %v1769 = vld [vmem:[#allocation2 + $0x48] sm:$0xff]
      %v1770 = vld [vmem:[#allocation2 + $0x50] sm:$0xff]
      %v1771 = vld [vmem:[#allocation2 + $0x58] sm:$0xff]
      %v1772 = vld [vmem:[#allocation2 + $0x60] sm:$0xff]
      %v1773 = vld [vmem:[#allocation2 + $0x68] sm:$0xff]
      %1787 = vrot.lane.b32.xlu0 %v1761, 39
      %v1788 = vpop.permute.xlu0 %1787
      %1789 = vrot.lane.b32.xlu0 %v1762, 39
      %v1790 = vpop.permute.xlu0 %1789
      %1791 = vrot.lane.b32.xlu0 %v1763, 39
      %v1792 = vpop.permute.xlu0 %1791
      %1793 = vrot.lane.b32.xlu0 %v1764, 39
      %v1794 = vpop.permute.xlu0 %1793
      %1795 = vrot.lane.b32.xlu0 %v1765, 39
      %v1796 = vpop.permute.xlu0 %1795
      %1797 = vrot.lane.b32.xlu0 %v1766, 39
      %v1798 = vpop.permute.xlu0 %1797
      %1799 = vrot.lane.b32.xlu0 %v1767, 39
      %v1800 = vpop.permute.xlu0 %1799
      %1801 = vrot.lane.b32.xlu0 %v1768, 39
      %v1802 = vpop.permute.xlu0 %1801
      %1803 = vrot.lane.b32.xlu0 %v1769, 39
      %v1804 = vpop.permute.xlu0 %1803
      %1805 = vrot.lane.b32.xlu0 %v1770, 39
      %v1806 = vpop.permute.xlu0 %1805
      %1807 = vrot.lane.b32.xlu0 %v1771, 39
      %v1808 = vpop.permute.xlu0 %1807
      %1809 = vrot.lane.b32.xlu0 %v1772, 39
      %v1810 = vpop.permute.xlu0 %1809
      %1811 = vrot.lane.b32.xlu0 %v1773, 39
      %v1812 = vpop.permute.xlu0 %1811
      %vm1813 = vcmask 318464
      %v1814 = vsel %vm1813, %v1788, %v1790
      %v1815 = vsel %vm1813, %v1790, %v1792
      %v1816 = vsel %vm1813, %v1792, %v1794
      %v1817 = vsel %vm1813, %v1794, %v1796
      %v1818 = vsel %vm1813, %v1796, %v1798
      %v1819 = vsel %vm1813, %v1798, %v1800
      %v1820 = vsel %vm1813, %v1800, %v1802
      %v1821 = vsel %vm1813, %v1802, %v1804
      %v1822 = vsel %vm1813, %v1804, %v1806
      %v1823 = vsel %vm1813, %v1806, %v1808
      %v1824 = vsel %vm1813, %v1808, %v1810
      %v1825 = vsel %vm1813, %v1810, %v1812
      %1838 = vst [vmem:[#allocation3 + $0x600] sm:$0xff] %v1814
      %1839 = vst [vmem:[#allocation3 + $0x608] sm:$0xff] %v1815
      %1840 = vst [vmem:[#allocation3 + $0x610] sm:$0xff] %v1816
      %1841 = vst [vmem:[#allocation3 + $0x618] sm:$0xff] %v1817
      %1842 = vst [vmem:[#allocation3 + $0x620] sm:$0xff] %v1818
      %1843 = vst [vmem:[#allocation3 + $0x628] sm:$0xff] %v1819
      %1844 = vst [vmem:[#allocation3 + $0x630] sm:$0xff] %v1820
      %1845 = vst [vmem:[#allocation3 + $0x638] sm:$0xff] %v1821
      %1846 = vst [vmem:[#allocation3 + $0x640] sm:$0xff] %v1822
      %1847 = vst [vmem:[#allocation3 + $0x648] sm:$0xff] %v1823
      %1848 = vst [vmem:[#allocation3 + $0x650] sm:$0xff] %v1824
      %1849 = vst [vmem:[#allocation3 + $0x658] sm:$0xff] %v1825
      %v1850 = vld [vmem:[#allocation2 + $0x8] sm:$0xff]
      %v1851 = vld [vmem:[#allocation2 + $0x10] sm:$0xff]
      %v1852 = vld [vmem:[#allocation2 + $0x18] sm:$0xff]
      %v1853 = vld [vmem:[#allocation2 + $0x20] sm:$0xff]
      %v1854 = vld [vmem:[#allocation2 + $0x28] sm:$0xff]
      %v1855 = vld [vmem:[#allocation2 + $0x30] sm:$0xff]
      %v1856 = vld [vmem:[#allocation2 + $0x38] sm:$0xff]
      %v1857 = vld [vmem:[#allocation2 + $0x40] sm:$0xff]
      %v1858 = vld [vmem:[#allocation2 + $0x48] sm:$0xff]
      %v1859 = vld [vmem:[#allocation2 + $0x50] sm:$0xff]
      %v1860 = vld [vmem:[#allocation2 + $0x58] sm:$0xff]
      %v1861 = vld [vmem:[#allocation2 + $0x60] sm:$0xff]
      %v1862 = vld [vmem:[#allocation2 + $0x68] sm:$0xff]
      %1876 = vrot.lane.b32.xlu0 %v1850, 38
      %v1877 = vpop.permute.xlu0 %1876
      %1878 = vrot.lane.b32.xlu0 %v1851, 38
      %v1879 = vpop.permute.xlu0 %1878
      %1880 = vrot.lane.b32.xlu0 %v1852, 38
      %v1881 = vpop.permute.xlu0 %1880
      %1882 = vrot.lane.b32.xlu0 %v1853, 38
      %v1883 = vpop.permute.xlu0 %1882
      %1884 = vrot.lane.b32.xlu0 %v1854, 38
      %v1885 = vpop.permute.xlu0 %1884
      %1886 = vrot.lane.b32.xlu0 %v1855, 38
      %v1887 = vpop.permute.xlu0 %1886
      %1888 = vrot.lane.b32.xlu0 %v1856, 38
      %v1889 = vpop.permute.xlu0 %1888
      %1890 = vrot.lane.b32.xlu0 %v1857, 38
      %v1891 = vpop.permute.xlu0 %1890
      %1892 = vrot.lane.b32.xlu0 %v1858, 38
      %v1893 = vpop.permute.xlu0 %1892
      %1894 = vrot.lane.b32.xlu0 %v1859, 38
      %v1895 = vpop.permute.xlu0 %1894
      %1896 = vrot.lane.b32.xlu0 %v1860, 38
      %v1897 = vpop.permute.xlu0 %1896
      %1898 = vrot.lane.b32.xlu0 %v1861, 38
      %v1899 = vpop.permute.xlu0 %1898
      %1900 = vrot.lane.b32.xlu0 %v1862, 38
      %v1901 = vpop.permute.xlu0 %1900
      %vm1902 = vcmask 310272
      %v1903 = vsel %vm1902, %v1877, %v1879
      %v1904 = vsel %vm1902, %v1879, %v1881
      %v1905 = vsel %vm1902, %v1881, %v1883
      %v1906 = vsel %vm1902, %v1883, %v1885
      %v1907 = vsel %vm1902, %v1885, %v1887
      %v1908 = vsel %vm1902, %v1887, %v1889
      %v1909 = vsel %vm1902, %v1889, %v1891
      %v1910 = vsel %vm1902, %v1891, %v1893
      %v1911 = vsel %vm1902, %v1893, %v1895
      %v1912 = vsel %vm1902, %v1895, %v1897
      %v1913 = vsel %vm1902, %v1897, %v1899
      %v1914 = vsel %vm1902, %v1899, %v1901
      %1927 = vst [vmem:[#allocation3 + $0x660] sm:$0xff] %v1903
      %1928 = vst [vmem:[#allocation3 + $0x668] sm:$0xff] %v1904
      %1929 = vst [vmem:[#allocation3 + $0x670] sm:$0xff] %v1905
      %1930 = vst [vmem:[#allocation3 + $0x678] sm:$0xff] %v1906
      %1931 = vst [vmem:[#allocation3 + $0x680] sm:$0xff] %v1907
      %1932 = vst [vmem:[#allocation3 + $0x688] sm:$0xff] %v1908
      %1933 = vst [vmem:[#allocation3 + $0x690] sm:$0xff] %v1909
      %1934 = vst [vmem:[#allocation3 + $0x698] sm:$0xff] %v1910
      %1935 = vst [vmem:[#allocation3 + $0x6a0] sm:$0xff] %v1911
      %1936 = vst [vmem:[#allocation3 + $0x6a8] sm:$0xff] %v1912
      %1937 = vst [vmem:[#allocation3 + $0x6b0] sm:$0xff] %v1913
      %1938 = vst [vmem:[#allocation3 + $0x6b8] sm:$0xff] %v1914
      %v1939 = vld [vmem:[#allocation2 + $0x10] sm:$0xff]
      %v1940 = vld [vmem:[#allocation2 + $0x18] sm:$0xff]
      %v1941 = vld [vmem:[#allocation2 + $0x20] sm:$0xff]
      %v1942 = vld [vmem:[#allocation2 + $0x28] sm:$0xff]
      %v1943 = vld [vmem:[#allocation2 + $0x30] sm:$0xff]
      %v1944 = vld [vmem:[#allocation2 + $0x38] sm:$0xff]
      %v1945 = vld [vmem:[#allocation2 + $0x40] sm:$0xff]
      %v1946 = vld [vmem:[#allocation2 + $0x48] sm:$0xff]
      %v1947 = vld [vmem:[#allocation2 + $0x50] sm:$0xff]
      %v1948 = vld [vmem:[#allocation2 + $0x58] sm:$0xff]
      %v1949 = vld [vmem:[#allocation2 + $0x60] sm:$0xff]
      %v1950 = vld [vmem:[#allocation2 + $0x68] sm:$0xff]
      %v1951 = vld [vmem:[#allocation2 + $0x70] sm:$0xff]
      %1965 = vrot.lane.b32.xlu0 %v1939, 24
      %v1966 = vpop.permute.xlu0 %1965
      %1967 = vrot.lane.b32.xlu0 %v1940, 24
      %v1968 = vpop.permute.xlu0 %1967
      %1969 = vrot.lane.b32.xlu0 %v1941, 24
      %v1970 = vpop.permute.xlu0 %1969
      %1971 = vrot.lane.b32.xlu0 %v1942, 24
      %v1972 = vpop.permute.xlu0 %1971
      %1973 = vrot.lane.b32.xlu0 %v1943, 24
      %v1974 = vpop.permute.xlu0 %1973
      %1975 = vrot.lane.b32.xlu0 %v1944, 24
      %v1976 = vpop.permute.xlu0 %1975
      %1977 = vrot.lane.b32.xlu0 %v1945, 24
      %v1978 = vpop.permute.xlu0 %1977
      %1979 = vrot.lane.b32.xlu0 %v1946, 24
      %v1980 = vpop.permute.xlu0 %1979
      %1981 = vrot.lane.b32.xlu0 %v1947, 24
      %v1982 = vpop.permute.xlu0 %1981
      %1983 = vrot.lane.b32.xlu0 %v1948, 24
      %v1984 = vpop.permute.xlu0 %1983
      %1985 = vrot.lane.b32.xlu0 %v1949, 24
      %v1986 = vpop.permute.xlu0 %1985
      %1987 = vrot.lane.b32.xlu0 %v1950, 24
      %v1988 = vpop.permute.xlu0 %1987
      %1989 = vrot.lane.b32.xlu0 %v1951, 24
      %v1990 = vpop.permute.xlu0 %1989
      %vm1991 = vcmask 195584
      %v1992 = vsel %vm1991, %v1966, %v1968
      %v1993 = vsel %vm1991, %v1968, %v1970
      %v1994 = vsel %vm1991, %v1970, %v1972
      %v1995 = vsel %vm1991, %v1972, %v1974
      %v1996 = vsel %vm1991, %v1974, %v1976
      %v1997 = vsel %vm1991, %v1976, %v1978
      %v1998 = vsel %vm1991, %v1978, %v1980
      %v1999 = vsel %vm1991, %v1980, %v1982
      %v2000 = vsel %vm1991, %v1982, %v1984
      %v2001 = vsel %vm1991, %v1984, %v1986
      %v2002 = vsel %vm1991, %v1986, %v1988
      %v2003 = vsel %vm1991, %v1988, %v1990
      %2016 = vst [vmem:[#allocation3 + $0x6c0] sm:$0xff] %v1992
      %2017 = vst [vmem:[#allocation3 + $0x6c8] sm:$0xff] %v1993
      %2018 = vst [vmem:[#allocation3 + $0x6d0] sm:$0xff] %v1994
      %2019 = vst [vmem:[#allocation3 + $0x6d8] sm:$0xff] %v1995
      %2020 = vst [vmem:[#allocation3 + $0x6e0] sm:$0xff] %v1996
      %2021 = vst [vmem:[#allocation3 + $0x6e8] sm:$0xff] %v1997
      %2022 = vst [vmem:[#allocation3 + $0x6f0] sm:$0xff] %v1998
      %2023 = vst [vmem:[#allocation3 + $0x6f8] sm:$0xff] %v1999
      %2024 = vst [vmem:[#allocation3 + $0x700] sm:$0xff] %v2000
      %2025 = vst [vmem:[#allocation3 + $0x708] sm:$0xff] %v2001
      %2026 = vst [vmem:[#allocation3 + $0x710] sm:$0xff] %v2002
      %2027 = vst [vmem:[#allocation3 + $0x718] sm:$0xff] %v2003
      %v2028 = vld [vmem:[#allocation2 + $0x10] sm:$0xff]
      %v2029 = vld [vmem:[#allocation2 + $0x18] sm:$0xff]
      %v2030 = vld [vmem:[#allocation2 + $0x20] sm:$0xff]
      %v2031 = vld [vmem:[#allocation2 + $0x28] sm:$0xff]
      %v2032 = vld [vmem:[#allocation2 + $0x30] sm:$0xff]
      %v2033 = vld [vmem:[#allocation2 + $0x38] sm:$0xff]
      %v2034 = vld [vmem:[#allocation2 + $0x40] sm:$0xff]
      %v2035 = vld [vmem:[#allocation2 + $0x48] sm:$0xff]
      %v2036 = vld [vmem:[#allocation2 + $0x50] sm:$0xff]
      %v2037 = vld [vmem:[#allocation2 + $0x58] sm:$0xff]
      %v2038 = vld [vmem:[#allocation2 + $0x60] sm:$0xff]
      %v2039 = vld [vmem:[#allocation2 + $0x68] sm:$0xff]
      %v2040 = vld [vmem:[#allocation2 + $0x70] sm:$0xff]
      %2054 = vrot.lane.b32.xlu0 %v2028, 23
      %v2055 = vpop.permute.xlu0 %2054
      %2056 = vrot.lane.b32.xlu0 %v2029, 23
      %v2057 = vpop.permute.xlu0 %2056
      %2058 = vrot.lane.b32.xlu0 %v2030, 23
      %v2059 = vpop.permute.xlu0 %2058
      %2060 = vrot.lane.b32.xlu0 %v2031, 23
      %v2061 = vpop.permute.xlu0 %2060
      %2062 = vrot.lane.b32.xlu0 %v2032, 23
      %v2063 = vpop.permute.xlu0 %2062
      %2064 = vrot.lane.b32.xlu0 %v2033, 23
      %v2065 = vpop.permute.xlu0 %2064
      %2066 = vrot.lane.b32.xlu0 %v2034, 23
      %v2067 = vpop.permute.xlu0 %2066
      %2068 = vrot.lane.b32.xlu0 %v2035, 23
      %v2069 = vpop.permute.xlu0 %2068
      %2070 = vrot.lane.b32.xlu0 %v2036, 23
      %v2071 = vpop.permute.xlu0 %2070
      %2072 = vrot.lane.b32.xlu0 %v2037, 23
      %v2073 = vpop.permute.xlu0 %2072
      %2074 = vrot.lane.b32.xlu0 %v2038, 23
      %v2075 = vpop.permute.xlu0 %2074
      %2076 = vrot.lane.b32.xlu0 %v2039, 23
      %v2077 = vpop.permute.xlu0 %2076
      %2078 = vrot.lane.b32.xlu0 %v2040, 23
      %v2079 = vpop.permute.xlu0 %2078
      %vm2080 = vcmask 187392
      %v2081 = vsel %vm2080, %v2055, %v2057
      %v2082 = vsel %vm2080, %v2057, %v2059
      %v2083 = vsel %vm2080, %v2059, %v2061
      %v2084 = vsel %vm2080, %v2061, %v2063
      %v2085 = vsel %vm2080, %v2063, %v2065
      %v2086 = vsel %vm2080, %v2065, %v2067
      %v2087 = vsel %vm2080, %v2067, %v2069
      %v2088 = vsel %vm2080, %v2069, %v2071
      %v2089 = vsel %vm2080, %v2071, %v2073
      %v2090 = vsel %vm2080, %v2073, %v2075
      %v2091 = vsel %vm2080, %v2075, %v2077
      %v2092 = vsel %vm2080, %v2077, %v2079
      %2105 = vst [vmem:[#allocation3 + $0x720] sm:$0xff] %v2081
      %2106 = vst [vmem:[#allocation3 + $0x728] sm:$0xff] %v2082
      %2107 = vst [vmem:[#allocation3 + $0x730] sm:$0xff] %v2083
      %2108 = vst [vmem:[#allocation3 + $0x738] sm:$0xff] %v2084
      %2109 = vst [vmem:[#allocation3 + $0x740] sm:$0xff] %v2085
      %2110 = vst [vmem:[#allocation3 + $0x748] sm:$0xff] %v2086
      %2111 = vst [vmem:[#allocation3 + $0x750] sm:$0xff] %v2087
      %2112 = vst [vmem:[#allocation3 + $0x758] sm:$0xff] %v2088
      %2113 = vst [vmem:[#allocation3 + $0x760] sm:$0xff] %v2089
      %2114 = vst [vmem:[#allocation3 + $0x768] sm:$0xff] %v2090
      %2115 = vst [vmem:[#allocation3 + $0x770] sm:$0xff] %v2091
      %2116 = vst [vmem:[#allocation3 + $0x778] sm:$0xff] %v2092
      %v2117 = vld [vmem:[#allocation2 + $0x10] sm:$0xff]
      %v2118 = vld [vmem:[#allocation2 + $0x18] sm:$0xff]
      %v2119 = vld [vmem:[#allocation2 + $0x20] sm:$0xff]
      %v2120 = vld [vmem:[#allocation2 + $0x28] sm:$0xff]
      %v2121 = vld [vmem:[#allocation2 + $0x30] sm:$0xff]
      %v2122 = vld [vmem:[#allocation2 + $0x38] sm:$0xff]
      %v2123 = vld [vmem:[#allocation2 + $0x40] sm:$0xff]
      %v2124 = vld [vmem:[#allocation2 + $0x48] sm:$0xff]
      %v2125 = vld [vmem:[#allocation2 + $0x50] sm:$0xff]
      %v2126 = vld [vmem:[#allocation2 + $0x58] sm:$0xff]
      %v2127 = vld [vmem:[#allocation2 + $0x60] sm:$0xff]
      %v2128 = vld [vmem:[#allocation2 + $0x68] sm:$0xff]
      %v2129 = vld [vmem:[#allocation2 + $0x70] sm:$0xff]
      %2143 = vrot.lane.b32.xlu0 %v2117, 22
      %v2144 = vpop.permute.xlu0 %2143
      %2145 = vrot.lane.b32.xlu0 %v2118, 22
      %v2146 = vpop.permute.xlu0 %2145
      %2147 = vrot.lane.b32.xlu0 %v2119, 22
      %v2148 = vpop.permute.xlu0 %2147
      %2149 = vrot.lane.b32.xlu0 %v2120, 22
      %v2150 = vpop.permute.xlu0 %2149
      %2151 = vrot.lane.b32.xlu0 %v2121, 22
      %v2152 = vpop.permute.xlu0 %2151
      %2153 = vrot.lane.b32.xlu0 %v2122, 22
      %v2154 = vpop.permute.xlu0 %2153
      %2155 = vrot.lane.b32.xlu0 %v2123, 22
      %v2156 = vpop.permute.xlu0 %2155
      %2157 = vrot.lane.b32.xlu0 %v2124, 22
      %v2158 = vpop.permute.xlu0 %2157
      %2159 = vrot.lane.b32.xlu0 %v2125, 22
      %v2160 = vpop.permute.xlu0 %2159
      %2161 = vrot.lane.b32.xlu0 %v2126, 22
      %v2162 = vpop.permute.xlu0 %2161
      %2163 = vrot.lane.b32.xlu0 %v2127, 22
      %v2164 = vpop.permute.xlu0 %2163
      %2165 = vrot.lane.b32.xlu0 %v2128, 22
      %v2166 = vpop.permute.xlu0 %2165
      %2167 = vrot.lane.b32.xlu0 %v2129, 22
      %v2168 = vpop.permute.xlu0 %2167
      %vm2169 = vcmask 179200
      %v2170 = vsel %vm2169, %v2144, %v2146
      %v2171 = vsel %vm2169, %v2146, %v2148
      %v2172 = vsel %vm2169, %v2148, %v2150
      %v2173 = vsel %vm2169, %v2150, %v2152
      %v2174 = vsel %vm2169, %v2152, %v2154
      %v2175 = vsel %vm2169, %v2154, %v2156
      %v2176 = vsel %vm2169, %v2156, %v2158
      %v2177 = vsel %vm2169, %v2158, %v2160
      %v2178 = vsel %vm2169, %v2160, %v2162
      %v2179 = vsel %vm2169, %v2162, %v2164
      %v2180 = vsel %vm2169, %v2164, %v2166
      %v2181 = vsel %vm2169, %v2166, %v2168
      %2194 = vst [vmem:[#allocation3 + $0x780] sm:$0xff] %v2170
      %2195 = vst [vmem:[#allocation3 + $0x788] sm:$0xff] %v2171
      %2196 = vst [vmem:[#allocation3 + $0x790] sm:$0xff] %v2172
      %2197 = vst [vmem:[#allocation3 + $0x798] sm:$0xff] %v2173
      %2198 = vst [vmem:[#allocation3 + $0x7a0] sm:$0xff] %v2174
      %2199 = vst [vmem:[#allocation3 + $0x7a8] sm:$0xff] %v2175
      %2200 = vst [vmem:[#allocation3 + $0x7b0] sm:$0xff] %v2176
      %2201 = vst [vmem:[#allocation3 + $0x7b8] sm:$0xff] %v2177
      %2202 = vst [vmem:[#allocation3 + $0x7c0] sm:$0xff] %v2178
      %2203 = vst [vmem:[#allocation3 + $0x7c8] sm:$0xff] %v2179
      %2204 = vst [vmem:[#allocation3 + $0x7d0] sm:$0xff] %v2180
      %2205 = vst [vmem:[#allocation3 + $0x7d8] sm:$0xff] %v2181
      %v2206 = vld [vmem:[#allocation2 + $0x10] sm:$0xff]
      %v2207 = vld [vmem:[#allocation2 + $0x18] sm:$0xff]
      %v2208 = vld [vmem:[#allocation2 + $0x20] sm:$0xff]
      %v2209 = vld [vmem:[#allocation2 + $0x28] sm:$0xff]
      %v2210 = vld [vmem:[#allocation2 + $0x30] sm:$0xff]
      %v2211 = vld [vmem:[#allocation2 + $0x38] sm:$0xff]
      %v2212 = vld [vmem:[#allocation2 + $0x40] sm:$0xff]
      %v2213 = vld [vmem:[#allocation2 + $0x48] sm:$0xff]
      %v2214 = vld [vmem:[#allocation2 + $0x50] sm:$0xff]
      %v2215 = vld [vmem:[#allocation2 + $0x58] sm:$0xff]
      %v2216 = vld [vmem:[#allocation2 + $0x60] sm:$0xff]
      %v2217 = vld [vmem:[#allocation2 + $0x68] sm:$0xff]
      %v2218 = vld [vmem:[#allocation2 + $0x70] sm:$0xff]
      %2232 = vrot.lane.b32.xlu0 %v2206, 6
      %v2233 = vpop.permute.xlu0 %2232
      %2234 = vrot.lane.b32.xlu0 %v2207, 6
      %v2235 = vpop.permute.xlu0 %2234
      %2236 = vrot.lane.b32.xlu0 %v2208, 6
      %v2237 = vpop.permute.xlu0 %2236
      %2238 = vrot.lane.b32.xlu0 %v2209, 6
      %v2239 = vpop.permute.xlu0 %2238
      %2240 = vrot.lane.b32.xlu0 %v2210, 6
      %v2241 = vpop.permute.xlu0 %2240
      %2242 = vrot.lane.b32.xlu0 %v2211, 6
      %v2243 = vpop.permute.xlu0 %2242
      %2244 = vrot.lane.b32.xlu0 %v2212, 6
      %v2245 = vpop.permute.xlu0 %2244
      %2246 = vrot.lane.b32.xlu0 %v2213, 6
      %v2247 = vpop.permute.xlu0 %2246
      %2248 = vrot.lane.b32.xlu0 %v2214, 6
      %v2249 = vpop.permute.xlu0 %2248
      %2250 = vrot.lane.b32.xlu0 %v2215, 6
      %v2251 = vpop.permute.xlu0 %2250
      %2252 = vrot.lane.b32.xlu0 %v2216, 6
      %v2253 = vpop.permute.xlu0 %2252
      %2254 = vrot.lane.b32.xlu0 %v2217, 6
      %v2255 = vpop.permute.xlu0 %2254
      %2256 = vrot.lane.b32.xlu0 %v2218, 6
      %v2257 = vpop.permute.xlu0 %2256
      %vm2258 = vcmask 48128
      %v2259 = vsel %vm2258, %v2233, %v2235
      %v2260 = vsel %vm2258, %v2235, %v2237
      %v2261 = vsel %vm2258, %v2237, %v2239
      %v2262 = vsel %vm2258, %v2239, %v2241
      %v2263 = vsel %vm2258, %v2241, %v2243
      %v2264 = vsel %vm2258, %v2243, %v2245
      %v2265 = vsel %vm2258, %v2245, %v2247
      %v2266 = vsel %vm2258, %v2247, %v2249
      %v2267 = vsel %vm2258, %v2249, %v2251
      %v2268 = vsel %vm2258, %v2251, %v2253
      %v2269 = vsel %vm2258, %v2253, %v2255
      %v2270 = vsel %vm2258, %v2255, %v2257
      %2283 = vst [vmem:[#allocation3 + $0x7e0] sm:$0xff] %v2259
      %2284 = vst [vmem:[#allocation3 + $0x7e8] sm:$0xff] %v2260
      %2285 = vst [vmem:[#allocation3 + $0x7f0] sm:$0xff] %v2261
      %2286 = vst [vmem:[#allocation3 + $0x7f8] sm:$0xff] %v2262
      %2287 = vst [vmem:[#allocation3 + $0x800] sm:$0xff] %v2263
      %2288 = vst [vmem:[#allocation3 + $0x808] sm:$0xff] %v2264
      %2289 = vst [vmem:[#allocation3 + $0x810] sm:$0xff] %v2265
      %2290 = vst [vmem:[#allocation3 + $0x818] sm:$0xff] %v2266
      %2291 = vst [vmem:[#allocation3 + $0x820] sm:$0xff] %v2267
      %2292 = vst [vmem:[#allocation3 + $0x828] sm:$0xff] %v2268
      %2293 = vst [vmem:[#allocation3 + $0x830] sm:$0xff] %v2269
      %2294 = vst [vmem:[#allocation3 + $0x838] sm:$0xff] %v2270
      %v2295 = vld [vmem:[#allocation2 + $0x10] sm:$0xff]
      %v2296 = vld [vmem:[#allocation2 + $0x18] sm:$0xff]
      %v2297 = vld [vmem:[#allocation2 + $0x20] sm:$0xff]
      %v2298 = vld [vmem:[#allocation2 + $0x28] sm:$0xff]
      %v2299 = vld [vmem:[#allocation2 + $0x30] sm:$0xff]
      %v2300 = vld [vmem:[#allocation2 + $0x38] sm:$0xff]
      %v2301 = vld [vmem:[#allocation2 + $0x40] sm:$0xff]
      %v2302 = vld [vmem:[#allocation2 + $0x48] sm:$0xff]
      %v2303 = vld [vmem:[#allocation2 + $0x50] sm:$0xff]
      %v2304 = vld [vmem:[#allocation2 + $0x58] sm:$0xff]
      %v2305 = vld [vmem:[#allocation2 + $0x60] sm:$0xff]
      %v2306 = vld [vmem:[#allocation2 + $0x68] sm:$0xff]
      %v2307 = vld [vmem:[#allocation2 + $0x70] sm:$0xff]
      %2321 = vrot.lane.b32.xlu0 %v2295, 5
      %v2322 = vpop.permute.xlu0 %2321
      %2323 = vrot.lane.b32.xlu0 %v2296, 5
      %v2324 = vpop.permute.xlu0 %2323
      %2325 = vrot.lane.b32.xlu0 %v2297, 5
      %v2326 = vpop.permute.xlu0 %2325
      %2327 = vrot.lane.b32.xlu0 %v2298, 5
      %v2328 = vpop.permute.xlu0 %2327
      %2329 = vrot.lane.b32.xlu0 %v2299, 5
      %v2330 = vpop.permute.xlu0 %2329
      %2331 = vrot.lane.b32.xlu0 %v2300, 5
      %v2332 = vpop.permute.xlu0 %2331
      %2333 = vrot.lane.b32.xlu0 %v2301, 5
      %v2334 = vpop.permute.xlu0 %2333
      %2335 = vrot.lane.b32.xlu0 %v2302, 5
      %v2336 = vpop.permute.xlu0 %2335
      %2337 = vrot.lane.b32.xlu0 %v2303, 5
      %v2338 = vpop.permute.xlu0 %2337
      %2339 = vrot.lane.b32.xlu0 %v2304, 5
      %v2340 = vpop.permute.xlu0 %2339
      %2341 = vrot.lane.b32.xlu0 %v2305, 5
      %v2342 = vpop.permute.xlu0 %2341
      %2343 = vrot.lane.b32.xlu0 %v2306, 5
      %v2344 = vpop.permute.xlu0 %2343
      %2345 = vrot.lane.b32.xlu0 %v2307, 5
      %v2346 = vpop.permute.xlu0 %2345
      %vm2347 = vcmask 39936
      %v2348 = vsel %vm2347, %v2322, %v2324
      %v2349 = vsel %vm2347, %v2324, %v2326
      %v2350 = vsel %vm2347, %v2326, %v2328
      %v2351 = vsel %vm2347, %v2328, %v2330
      %v2352 = vsel %vm2347, %v2330, %v2332
      %v2353 = vsel %vm2347, %v2332, %v2334
      %v2354 = vsel %vm2347, %v2334, %v2336
      %v2355 = vsel %vm2347, %v2336, %v2338
      %v2356 = vsel %vm2347, %v2338, %v2340
      %v2357 = vsel %vm2347, %v2340, %v2342
      %v2358 = vsel %vm2347, %v2342, %v2344
      %v2359 = vsel %vm2347, %v2344, %v2346
      %2372 = vst [vmem:[#allocation3 + $0x840] sm:$0xff] %v2348
      %2373 = vst [vmem:[#allocation3 + $0x848] sm:$0xff] %v2349
      %2374 = vst [vmem:[#allocation3 + $0x850] sm:$0xff] %v2350
      %2375 = vst [vmem:[#allocation3 + $0x858] sm:$0xff] %v2351
      %2376 = vst [vmem:[#allocation3 + $0x860] sm:$0xff] %v2352
      %2377 = vst [vmem:[#allocation3 + $0x868] sm:$0xff] %v2353
      %2378 = vst [vmem:[#allocation3 + $0x870] sm:$0xff] %v2354
      %2379 = vst [vmem:[#allocation3 + $0x878] sm:$0xff] %v2355
      %2380 = vst [vmem:[#allocation3 + $0x880] sm:$0xff] %v2356
      %2381 = vst [vmem:[#allocation3 + $0x888] sm:$0xff] %v2357
      %2382 = vst [vmem:[#allocation3 + $0x890] sm:$0xff] %v2358
      %2383 = vst [vmem:[#allocation3 + $0x898] sm:$0xff] %v2359
      %v2384 = vld [vmem:[#allocation2 + $0x10] sm:$0xff]
      %v2385 = vld [vmem:[#allocation2 + $0x18] sm:$0xff]
      %v2386 = vld [vmem:[#allocation2 + $0x20] sm:$0xff]
      %v2387 = vld [vmem:[#allocation2 + $0x28] sm:$0xff]
      %v2388 = vld [vmem:[#allocation2 + $0x30] sm:$0xff]
      %v2389 = vld [vmem:[#allocation2 + $0x38] sm:$0xff]
      %v2390 = vld [vmem:[#allocation2 + $0x40] sm:$0xff]
      %v2391 = vld [vmem:[#allocation2 + $0x48] sm:$0xff]
      %v2392 = vld [vmem:[#allocation2 + $0x50] sm:$0xff]
      %v2393 = vld [vmem:[#allocation2 + $0x58] sm:$0xff]
      %v2394 = vld [vmem:[#allocation2 + $0x60] sm:$0xff]
      %v2395 = vld [vmem:[#allocation2 + $0x68] sm:$0xff]
      %v2396 = vld [vmem:[#allocation2 + $0x70] sm:$0xff]
      %2410 = vrot.lane.b32.xlu0 %v2384, 4
      %v2411 = vpop.permute.xlu0 %2410
      %2412 = vrot.lane.b32.xlu0 %v2385, 4
      %v2413 = vpop.permute.xlu0 %2412
      %2414 = vrot.lane.b32.xlu0 %v2386, 4
      %v2415 = vpop.permute.xlu0 %2414
      %2416 = vrot.lane.b32.xlu0 %v2387, 4
      %v2417 = vpop.permute.xlu0 %2416
      %2418 = vrot.lane.b32.xlu0 %v2388, 4
      %v2419 = vpop.permute.xlu0 %2418
      %2420 = vrot.lane.b32.xlu0 %v2389, 4
      %v2421 = vpop.permute.xlu0 %2420
      %2422 = vrot.lane.b32.xlu0 %v2390, 4
      %v2423 = vpop.permute.xlu0 %2422
      %2424 = vrot.lane.b32.xlu0 %v2391, 4
      %v2425 = vpop.permute.xlu0 %2424
      %2426 = vrot.lane.b32.xlu0 %v2392, 4
      %v2427 = vpop.permute.xlu0 %2426
      %2428 = vrot.lane.b32.xlu0 %v2393, 4
      %v2429 = vpop.permute.xlu0 %2428
      %2430 = vrot.lane.b32.xlu0 %v2394, 4
      %v2431 = vpop.permute.xlu0 %2430
      %2432 = vrot.lane.b32.xlu0 %v2395, 4
      %v2433 = vpop.permute.xlu0 %2432
      %2434 = vrot.lane.b32.xlu0 %v2396, 4
      %v2435 = vpop.permute.xlu0 %2434
      %vm2436 = vcmask 31744
      %v2437 = vsel %vm2436, %v2411, %v2413
      %v2438 = vsel %vm2436, %v2413, %v2415
      %v2439 = vsel %vm2436, %v2415, %v2417
      %v2440 = vsel %vm2436, %v2417, %v2419
      %v2441 = vsel %vm2436, %v2419, %v2421
      %v2442 = vsel %vm2436, %v2421, %v2423
      %v2443 = vsel %vm2436, %v2423, %v2425
      %v2444 = vsel %vm2436, %v2425, %v2427
      %v2445 = vsel %vm2436, %v2427, %v2429
      %v2446 = vsel %vm2436, %v2429, %v2431
      %v2447 = vsel %vm2436, %v2431, %v2433
      %v2448 = vsel %vm2436, %v2433, %v2435
      %2461 = vst [vmem:[#allocation3 + $0x8a0] sm:$0xff] %v2437
      %2462 = vst [vmem:[#allocation3 + $0x8a8] sm:$0xff] %v2438
      %2463 = vst [vmem:[#allocation3 + $0x8b0] sm:$0xff] %v2439
      %2464 = vst [vmem:[#allocation3 + $0x8b8] sm:$0xff] %v2440
      %2465 = vst [vmem:[#allocation3 + $0x8c0] sm:$0xff] %v2441
      %2466 = vst [vmem:[#allocation3 + $0x8c8] sm:$0xff] %v2442
      %2467 = vst [vmem:[#allocation3 + $0x8d0] sm:$0xff] %v2443
      %2468 = vst [vmem:[#allocation3 + $0x8d8] sm:$0xff] %v2444
      %2469 = vst [vmem:[#allocation3 + $0x8e0] sm:$0xff] %v2445
      %2470 = vst [vmem:[#allocation3 + $0x8e8] sm:$0xff] %v2446
      %2471 = vst [vmem:[#allocation3 + $0x8f0] sm:$0xff] %v2447
      %2472 = vst [vmem:[#allocation3 + $0x8f8] sm:$0xff] %v2448
      %v2473 = vld [vmem:[#allocation2 + $0x18] sm:$0xff]
      %v2474 = vld [vmem:[#allocation2 + $0x20] sm:$0xff]
      %v2475 = vld [vmem:[#allocation2 + $0x28] sm:$0xff]
      %v2476 = vld [vmem:[#allocation2 + $0x30] sm:$0xff]
      %v2477 = vld [vmem:[#allocation2 + $0x38] sm:$0xff]
      %v2478 = vld [vmem:[#allocation2 + $0x40] sm:$0xff]
      %v2479 = vld [vmem:[#allocation2 + $0x48] sm:$0xff]
      %v2480 = vld [vmem:[#allocation2 + $0x50] sm:$0xff]
      %v2481 = vld [vmem:[#allocation2 + $0x58] sm:$0xff]
      %v2482 = vld [vmem:[#allocation2 + $0x60] sm:$0xff]
      %v2483 = vld [vmem:[#allocation2 + $0x68] sm:$0xff]
      %v2484 = vld [vmem:[#allocation2 + $0x70] sm:$0xff]
      %v2485 = vld [vmem:[#allocation2 + $0x78] sm:$0xff]
      %2499 = vrot.lane.b32.xlu0 %v2473, 116
      %v2500 = vpop.permute.xlu0 %2499
      %2501 = vrot.lane.b32.xlu0 %v2474, 116
      %v2502 = vpop.permute.xlu0 %2501
      %2503 = vrot.lane.b32.xlu0 %v2475, 116
      %v2504 = vpop.permute.xlu0 %2503
      %2505 = vrot.lane.b32.xlu0 %v2476, 116
      %v2506 = vpop.permute.xlu0 %2505
      %2507 = vrot.lane.b32.xlu0 %v2477, 116
      %v2508 = vpop.permute.xlu0 %2507
      %2509 = vrot.lane.b32.xlu0 %v2478, 116
      %v2510 = vpop.permute.xlu0 %2509
      %2511 = vrot.lane.b32.xlu0 %v2479, 116
      %v2512 = vpop.permute.xlu0 %2511
      %2513 = vrot.lane.b32.xlu0 %v2480, 116
      %v2514 = vpop.permute.xlu0 %2513
      %2515 = vrot.lane.b32.xlu0 %v2481, 116
      %v2516 = vpop.permute.xlu0 %2515
      %2517 = vrot.lane.b32.xlu0 %v2482, 116
      %v2518 = vpop.permute.xlu0 %2517
      %2519 = vrot.lane.b32.xlu0 %v2483, 116
      %v2520 = vpop.permute.xlu0 %2519
      %2521 = vrot.lane.b32.xlu0 %v2484, 116
      %v2522 = vpop.permute.xlu0 %2521
      %2523 = vrot.lane.b32.xlu0 %v2485, 116
      %v2524 = vpop.permute.xlu0 %2523
      %vm2525 = vcmask 949248
      %v2526 = vsel %vm2525, %v2500, %v2502
      %v2527 = vsel %vm2525, %v2502, %v2504
      %v2528 = vsel %vm2525, %v2504, %v2506
      %v2529 = vsel %vm2525, %v2506, %v2508
      %v2530 = vsel %vm2525, %v2508, %v2510
      %v2531 = vsel %vm2525, %v2510, %v2512
      %v2532 = vsel %vm2525, %v2512, %v2514
      %v2533 = vsel %vm2525, %v2514, %v2516
      %v2534 = vsel %vm2525, %v2516, %v2518
      %v2535 = vsel %vm2525, %v2518, %v2520
      %v2536 = vsel %vm2525, %v2520, %v2522
      %v2537 = vsel %vm2525, %v2522, %v2524
      %2550 = vst [vmem:[#allocation3 + $0x900] sm:$0xff] %v2526
      %2551 = vst [vmem:[#allocation3 + $0x908] sm:$0xff] %v2527
      %2552 = vst [vmem:[#allocation3 + $0x910] sm:$0xff] %v2528
      %2553 = vst [vmem:[#allocation3 + $0x918] sm:$0xff] %v2529
      %2554 = vst [vmem:[#allocation3 + $0x920] sm:$0xff] %v2530
      %2555 = vst [vmem:[#allocation3 + $0x928] sm:$0xff] %v2531
      %2556 = vst [vmem:[#allocation3 + $0x930] sm:$0xff] %v2532
      %2557 = vst [vmem:[#allocation3 + $0x938] sm:$0xff] %v2533
      %2558 = vst [vmem:[#allocation3 + $0x940] sm:$0xff] %v2534
      %2559 = vst [vmem:[#allocation3 + $0x948] sm:$0xff] %v2535
      %2560 = vst [vmem:[#allocation3 + $0x950] sm:$0xff] %v2536
      %2561 = vst [vmem:[#allocation3 + $0x958] sm:$0xff] %v2537
      %v2562 = vld [vmem:[#allocation2 + $0x18] sm:$0xff]
      %v2563 = vld [vmem:[#allocation2 + $0x20] sm:$0xff]
      %v2564 = vld [vmem:[#allocation2 + $0x28] sm:$0xff]
      %v2565 = vld [vmem:[#allocation2 + $0x30] sm:$0xff]
      %v2566 = vld [vmem:[#allocation2 + $0x38] sm:$0xff]
      %v2567 = vld [vmem:[#allocation2 + $0x40] sm:$0xff]
      %v2568 = vld [vmem:[#allocation2 + $0x48] sm:$0xff]
      %v2569 = vld [vmem:[#allocation2 + $0x50] sm:$0xff]
      %v2570 = vld [vmem:[#allocation2 + $0x58] sm:$0xff]
      %v2571 = vld [vmem:[#allocation2 + $0x60] sm:$0xff]
      %v2572 = vld [vmem:[#allocation2 + $0x68] sm:$0xff]
      %v2573 = vld [vmem:[#allocation2 + $0x70] sm:$0xff]
      %v2574 = vld [vmem:[#allocation2 + $0x78] sm:$0xff]
      %2588 = vrot.lane.b32.xlu0 %v2562, 115
      %v2589 = vpop.permute.xlu0 %2588
      %2590 = vrot.lane.b32.xlu0 %v2563, 115
      %v2591 = vpop.permute.xlu0 %2590
      %2592 = vrot.lane.b32.xlu0 %v2564, 115
      %v2593 = vpop.permute.xlu0 %2592
      %2594 = vrot.lane.b32.xlu0 %v2565, 115
      %v2595 = vpop.permute.xlu0 %2594
      %2596 = vrot.lane.b32.xlu0 %v2566, 115
      %v2597 = vpop.permute.xlu0 %2596
      %2598 = vrot.lane.b32.xlu0 %v2567, 115
      %v2599 = vpop.permute.xlu0 %2598
      %2600 = vrot.lane.b32.xlu0 %v2568, 115
      %v2601 = vpop.permute.xlu0 %2600
      %2602 = vrot.lane.b32.xlu0 %v2569, 115
      %v2603 = vpop.permute.xlu0 %2602
      %2604 = vrot.lane.b32.xlu0 %v2570, 115
      %v2605 = vpop.permute.xlu0 %2604
      %2606 = vrot.lane.b32.xlu0 %v2571, 115
      %v2607 = vpop.permute.xlu0 %2606
      %2608 = vrot.lane.b32.xlu0 %v2572, 115
      %v2609 = vpop.permute.xlu0 %2608
      %2610 = vrot.lane.b32.xlu0 %v2573, 115
      %v2611 = vpop.permute.xlu0 %2610
      %2612 = vrot.lane.b32.xlu0 %v2574, 115
      %v2613 = vpop.permute.xlu0 %2612
      %vm2614 = vcmask 941056
      %v2615 = vsel %vm2614, %v2589, %v2591
      %v2616 = vsel %vm2614, %v2591, %v2593
      %v2617 = vsel %vm2614, %v2593, %v2595
      %v2618 = vsel %vm2614, %v2595, %v2597
      %v2619 = vsel %vm2614, %v2597, %v2599
      %v2620 = vsel %vm2614, %v2599, %v2601
      %v2621 = vsel %vm2614, %v2601, %v2603
      %v2622 = vsel %vm2614, %v2603, %v2605
      %v2623 = vsel %vm2614, %v2605, %v2607
      %v2624 = vsel %vm2614, %v2607, %v2609
      %v2625 = vsel %vm2614, %v2609, %v2611
      %v2626 = vsel %vm2614, %v2611, %v2613
      %2639 = vst [vmem:[#allocation3 + $0x960] sm:$0xff] %v2615
      %2640 = vst [vmem:[#allocation3 + $0x968] sm:$0xff] %v2616
      %2641 = vst [vmem:[#allocation3 + $0x970] sm:$0xff] %v2617
      %2642 = vst [vmem:[#allocation3 + $0x978] sm:$0xff] %v2618
      %2643 = vst [vmem:[#allocation3 + $0x980] sm:$0xff] %v2619
      %2644 = vst [vmem:[#allocation3 + $0x988] sm:$0xff] %v2620
      %2645 = vst [vmem:[#allocation3 + $0x990] sm:$0xff] %v2621
      %2646 = vst [vmem:[#allocation3 + $0x998] sm:$0xff] %v2622
      %2647 = vst [vmem:[#allocation3 + $0x9a0] sm:$0xff] %v2623
      %2648 = vst [vmem:[#allocation3 + $0x9a8] sm:$0xff] %v2624
      %2649 = vst [vmem:[#allocation3 + $0x9b0] sm:$0xff] %v2625
      %2650 = vst [vmem:[#allocation3 + $0x9b8] sm:$0xff] %v2626
      %v2651 = vld [vmem:[#allocation2 + $0x18] sm:$0xff]
      %v2652 = vld [vmem:[#allocation2 + $0x20] sm:$0xff]
      %v2653 = vld [vmem:[#allocation2 + $0x28] sm:$0xff]
      %v2654 = vld [vmem:[#allocation2 + $0x30] sm:$0xff]
      %v2655 = vld [vmem:[#allocation2 + $0x38] sm:$0xff]
      %v2656 = vld [vmem:[#allocation2 + $0x40] sm:$0xff]
      %v2657 = vld [vmem:[#allocation2 + $0x48] sm:$0xff]
      %v2658 = vld [vmem:[#allocation2 + $0x50] sm:$0xff]
      %v2659 = vld [vmem:[#allocation2 + $0x58] sm:$0xff]
      %v2660 = vld [vmem:[#allocation2 + $0x60] sm:$0xff]
      %v2661 = vld [vmem:[#allocation2 + $0x68] sm:$0xff]
      %v2662 = vld [vmem:[#allocation2 + $0x70] sm:$0xff]
      %v2663 = vld [vmem:[#allocation2 + $0x78] sm:$0xff]
      %2677 = vrot.lane.b32.xlu0 %v2651, 114
      %v2678 = vpop.permute.xlu0 %2677
      %2679 = vrot.lane.b32.xlu0 %v2652, 114
      %v2680 = vpop.permute.xlu0 %2679
      %2681 = vrot.lane.b32.xlu0 %v2653, 114
      %v2682 = vpop.permute.xlu0 %2681
      %2683 = vrot.lane.b32.xlu0 %v2654, 114
      %v2684 = vpop.permute.xlu0 %2683
      %2685 = vrot.lane.b32.xlu0 %v2655, 114
      %v2686 = vpop.permute.xlu0 %2685
      %2687 = vrot.lane.b32.xlu0 %v2656, 114
      %v2688 = vpop.permute.xlu0 %2687
      %2689 = vrot.lane.b32.xlu0 %v2657, 114
      %v2690 = vpop.permute.xlu0 %2689
      %2691 = vrot.lane.b32.xlu0 %v2658, 114
      %v2692 = vpop.permute.xlu0 %2691
      %2693 = vrot.lane.b32.xlu0 %v2659, 114
      %v2694 = vpop.permute.xlu0 %2693
      %2695 = vrot.lane.b32.xlu0 %v2660, 114
      %v2696 = vpop.permute.xlu0 %2695
      %2697 = vrot.lane.b32.xlu0 %v2661, 114
      %v2698 = vpop.permute.xlu0 %2697
      %2699 = vrot.lane.b32.xlu0 %v2662, 114
      %v2700 = vpop.permute.xlu0 %2699
      %2701 = vrot.lane.b32.xlu0 %v2663, 114
      %v2702 = vpop.permute.xlu0 %2701
      %vm2703 = vcmask 932864
      %v2704 = vsel %vm2703, %v2678, %v2680
      %v2705 = vsel %vm2703, %v2680, %v2682
      %v2706 = vsel %vm2703, %v2682, %v2684
      %v2707 = vsel %vm2703, %v2684, %v2686
      %v2708 = vsel %vm2703, %v2686, %v2688
      %v2709 = vsel %vm2703, %v2688, %v2690
      %v2710 = vsel %vm2703, %v2690, %v2692
      %v2711 = vsel %vm2703, %v2692, %v2694
      %v2712 = vsel %vm2703, %v2694, %v2696
      %v2713 = vsel %vm2703, %v2696, %v2698
      %v2714 = vsel %vm2703, %v2698, %v2700
      %v2715 = vsel %vm2703, %v2700, %v2702
      %2728 = vst [vmem:[#allocation3 + $0x9c0] sm:$0xff] %v2704
      %2729 = vst [vmem:[#allocation3 + $0x9c8] sm:$0xff] %v2705
      %2730 = vst [vmem:[#allocation3 + $0x9d0] sm:$0xff] %v2706
      %2731 = vst [vmem:[#allocation3 + $0x9d8] sm:$0xff] %v2707
      %2732 = vst [vmem:[#allocation3 + $0x9e0] sm:$0xff] %v2708
      %2733 = vst [vmem:[#allocation3 + $0x9e8] sm:$0xff] %v2709
      %2734 = vst [vmem:[#allocation3 + $0x9f0] sm:$0xff] %v2710
      %2735 = vst [vmem:[#allocation3 + $0x9f8] sm:$0xff] %v2711
      %2736 = vst [vmem:[#allocation3 + $0xa00] sm:$0xff] %v2712
      %2737 = vst [vmem:[#allocation3 + $0xa08] sm:$0xff] %v2713
      %2738 = vst [vmem:[#allocation3 + $0xa10] sm:$0xff] %v2714
      %2739 = vst [vmem:[#allocation3 + $0xa18] sm:$0xff] %v2715
      %v2740 = vld [vmem:[%s2] sm:$0xff]
      %v2741 = vld [vmem:[%s2 + $0x8] sm:$0xff]
      %v2742 = vld [vmem:[#allocation3] sm:$0xff]
      %v2743 = vld [vmem:[#allocation3 + $0x8] sm:$0xff]
      %v2744 = vld [vmem:[#allocation3 + $0x10] sm:$0xff]
      %v2745 = vld [vmem:[#allocation3 + $0x18] sm:$0xff]
      %v2746 = vld [vmem:[#allocation3 + $0x20] sm:$0xff]
      %v2747 = vld [vmem:[#allocation3 + $0x28] sm:$0xff]
      %v2748 = vld [vmem:[#allocation3 + $0x30] sm:$0xff]
      %v2749 = vld [vmem:[#allocation3 + $0x38] sm:$0xff]
      %v2750 = vld [vmem:[#allocation3 + $0x40] sm:$0xff]
      %v2751 = vld [vmem:[#allocation3 + $0x48] sm:$0xff]
      %v2752 = vld [vmem:[#allocation3 + $0x50] sm:$0xff]
      %v2753 = vld [vmem:[#allocation3 + $0x58] sm:$0xff]
      %v2754 = vld [vmem:[#allocation3 + $0x60] sm:$0xff]
      %v2755 = vld [vmem:[#allocation3 + $0x68] sm:$0xff]
      %v2756 = vld [vmem:[#allocation3 + $0x70] sm:$0xff]
      %v2757 = vld [vmem:[#allocation3 + $0x78] sm:$0xff]
      %v2758 = vld [vmem:[#allocation3 + $0x80] sm:$0xff]
      %v2759 = vld [vmem:[#allocation3 + $0x88] sm:$0xff]
      %v2760 = vld [vmem:[#allocation3 + $0x90] sm:$0xff]
      %v2761 = vld [vmem:[#allocation3 + $0x98] sm:$0xff]
      %v2762 = vld [vmem:[#allocation3 + $0xa0] sm:$0xff]
      %v2763 = vld [vmem:[#allocation3 + $0xa8] sm:$0xff]
      %v2764 = vld [vmem:[#allocation3 + $0xb0] sm:$0xff]
      %v2765 = vld [vmem:[#allocation3 + $0xb8] sm:$0xff]
      %v2766 = vld [vmem:[#allocation3 + $0xc0] sm:$0xff]
      %v2767 = vld [vmem:[#allocation3 + $0xc8] sm:$0xff]
      %v2768 = vld [vmem:[#allocation3 + $0xd0] sm:$0xff]
      %v2769 = vld [vmem:[#allocation3 + $0xd8] sm:$0xff]
      %v2770 = vld [vmem:[#allocation3 + $0xe0] sm:$0xff]
      %v2771 = vld [vmem:[#allocation3 + $0xe8] sm:$0xff]
      %v2772 = vld [vmem:[#allocation3 + $0xf0] sm:$0xff]
      %v2773 = vld [vmem:[#allocation3 + $0xf8] sm:$0xff]
      %v2774 = vld [vmem:[#allocation3 + $0x100] sm:$0xff]
      %v2775 = vld [vmem:[#allocation3 + $0x108] sm:$0xff]
      %v2776 = vld [vmem:[#allocation3 + $0x110] sm:$0xff]
      %v2777 = vld [vmem:[#allocation3 + $0x118] sm:$0xff]
      %v2778 = vld [vmem:[#allocation3 + $0x120] sm:$0xff]
      %v2779 = vld [vmem:[#allocation3 + $0x128] sm:$0xff]
      %v2780 = vld [vmem:[#allocation3 + $0x130] sm:$0xff]
      %v2781 = vld [vmem:[#allocation3 + $0x138] sm:$0xff]
      %v2782 = vld [vmem:[#allocation3 + $0x140] sm:$0xff]
      %v2783 = vld [vmem:[#allocation3 + $0x148] sm:$0xff]
      %v2784 = vld [vmem:[#allocation3 + $0x150] sm:$0xff]
      %v2785 = vld [vmem:[#allocation3 + $0x158] sm:$0xff]
      %v2786 = vld [vmem:[#allocation3 + $0x160] sm:$0xff]
      %v2787 = vld [vmem:[#allocation3 + $0x168] sm:$0xff]
      %v2788 = vld [vmem:[#allocation3 + $0x170] sm:$0xff]
      %v2789 = vld [vmem:[#allocation3 + $0x178] sm:$0xff]
      %v2790 = vld [vmem:[#allocation3 + $0x180] sm:$0xff]
      %v2791 = vld [vmem:[#allocation3 + $0x188] sm:$0xff]
      %v2792 = vld [vmem:[#allocation3 + $0x190] sm:$0xff]
      %v2793 = vld [vmem:[#allocation3 + $0x198] sm:$0xff]
      %v2794 = vld [vmem:[#allocation3 + $0x1a0] sm:$0xff]
      %v2795 = vld [vmem:[#allocation3 + $0x1a8] sm:$0xff]
      %v2796 = vld [vmem:[#allocation3 + $0x1b0] sm:$0xff]
      %v2797 = vld [vmem:[#allocation3 + $0x1b8] sm:$0xff]
      %v2798 = vld [vmem:[#allocation3 + $0x1c0] sm:$0xff]
      %v2799 = vld [vmem:[#allocation3 + $0x1c8] sm:$0xff]
      %v2800 = vld [vmem:[#allocation3 + $0x1d0] sm:$0xff]
      %v2801 = vld [vmem:[#allocation3 + $0x1d8] sm:$0xff]
      %v2802 = vld [vmem:[#allocation3 + $0x1e0] sm:$0xff]
      %v2803 = vld [vmem:[#allocation3 + $0x1e8] sm:$0xff]
      %v2804 = vld [vmem:[#allocation3 + $0x1f0] sm:$0xff]
      %v2805 = vld [vmem:[#allocation3 + $0x1f8] sm:$0xff]
      %v2806 = vld [vmem:[#allocation3 + $0x200] sm:$0xff]
      %v2807 = vld [vmem:[#allocation3 + $0x208] sm:$0xff]
      %v2808 = vld [vmem:[#allocation3 + $0x210] sm:$0xff]
      %v2809 = vld [vmem:[#allocation3 + $0x218] sm:$0xff]
      %v2810 = vld [vmem:[#allocation3 + $0x220] sm:$0xff]
      %v2811 = vld [vmem:[#allocation3 + $0x228] sm:$0xff]
      %v2812 = vld [vmem:[#allocation3 + $0x230] sm:$0xff]
      %v2813 = vld [vmem:[#allocation3 + $0x238] sm:$0xff]
      %v2814 = vld [vmem:[#allocation3 + $0x240] sm:$0xff]
      %v2815 = vld [vmem:[#allocation3 + $0x248] sm:$0xff]
      %v2816 = vld [vmem:[#allocation3 + $0x250] sm:$0xff]
      %v2817 = vld [vmem:[#allocation3 + $0x258] sm:$0xff]
      %v2818 = vld [vmem:[#allocation3 + $0x260] sm:$0xff]
      %v2819 = vld [vmem:[#allocation3 + $0x268] sm:$0xff]
      %v2820 = vld [vmem:[#allocation3 + $0x270] sm:$0xff]
      %v2821 = vld [vmem:[#allocation3 + $0x278] sm:$0xff]
      %v2822 = vld [vmem:[#allocation3 + $0x280] sm:$0xff]
      %v2823 = vld [vmem:[#allocation3 + $0x288] sm:$0xff]
      %v2824 = vld [vmem:[#allocation3 + $0x290] sm:$0xff]
      %v2825 = vld [vmem:[#allocation3 + $0x298] sm:$0xff]
      %v2826 = vld [vmem:[#allocation3 + $0x2a0] sm:$0xff]
      %v2827 = vld [vmem:[#allocation3 + $0x2a8] sm:$0xff]
      %v2828 = vld [vmem:[#allocation3 + $0x2b0] sm:$0xff]
      %v2829 = vld [vmem:[#allocation3 + $0x2b8] sm:$0xff]
      %v2830 = vld [vmem:[#allocation3 + $0x2c0] sm:$0xff]
      %v2831 = vld [vmem:[#allocation3 + $0x2c8] sm:$0xff]
      %v2832 = vld [vmem:[#allocation3 + $0x2d0] sm:$0xff]
      %v2833 = vld [vmem:[#allocation3 + $0x2d8] sm:$0xff]
      %v2834 = vld [vmem:[#allocation3 + $0x2e0] sm:$0xff]
      %v2835 = vld [vmem:[#allocation3 + $0x2e8] sm:$0xff]
      %v2836 = vld [vmem:[#allocation3 + $0x2f0] sm:$0xff]
      %v2837 = vld [vmem:[#allocation3 + $0x2f8] sm:$0xff]
      %v2838 = vld [vmem:[#allocation3 + $0x300] sm:$0xff]
      %v2839 = vld [vmem:[#allocation3 + $0x308] sm:$0xff]
      %v2840 = vld [vmem:[#allocation3 + $0x310] sm:$0xff]
      %v2841 = vld [vmem:[#allocation3 + $0x318] sm:$0xff]
      %v2842 = vld [vmem:[#allocation3 + $0x320] sm:$0xff]
      %v2843 = vld [vmem:[#allocation3 + $0x328] sm:$0xff]
      %v2844 = vld [vmem:[#allocation3 + $0x330] sm:$0xff]
      %v2845 = vld [vmem:[#allocation3 + $0x338] sm:$0xff]
      %v2846 = vld [vmem:[#allocation3 + $0x340] sm:$0xff]
      %v2847 = vld [vmem:[#allocation3 + $0x348] sm:$0xff]
      %v2848 = vld [vmem:[#allocation3 + $0x350] sm:$0xff]
      %v2849 = vld [vmem:[#allocation3 + $0x358] sm:$0xff]
      %v2850 = vld [vmem:[#allocation3 + $0x360] sm:$0xff]
      %v2851 = vld [vmem:[#allocation3 + $0x368] sm:$0xff]
      %v2852 = vld [vmem:[#allocation3 + $0x370] sm:$0xff]
      %v2853 = vld [vmem:[#allocation3 + $0x378] sm:$0xff]
      %v2854 = vld [vmem:[#allocation3 + $0x380] sm:$0xff]
      %v2855 = vld [vmem:[#allocation3 + $0x388] sm:$0xff]
      %v2856 = vld [vmem:[#allocation3 + $0x390] sm:$0xff]
      %v2857 = vld [vmem:[#allocation3 + $0x398] sm:$0xff]
      %v2858 = vld [vmem:[#allocation3 + $0x3a0] sm:$0xff]
      %v2859 = vld [vmem:[#allocation3 + $0x3a8] sm:$0xff]
      %v2860 = vld [vmem:[#allocation3 + $0x3b0] sm:$0xff]
      %v2861 = vld [vmem:[#allocation3 + $0x3b8] sm:$0xff]
      %v2862 = vld [vmem:[#allocation3 + $0x3c0] sm:$0xff]
      %v2863 = vld [vmem:[#allocation3 + $0x3c8] sm:$0xff]
      %v2864 = vld [vmem:[#allocation3 + $0x3d0] sm:$0xff]
      %v2865 = vld [vmem:[#allocation3 + $0x3d8] sm:$0xff]
      %v2866 = vld [vmem:[#allocation3 + $0x3e0] sm:$0xff]
      %v2867 = vld [vmem:[#allocation3 + $0x3e8] sm:$0xff]
      %v2868 = vld [vmem:[#allocation3 + $0x3f0] sm:$0xff]
      %v2869 = vld [vmem:[#allocation3 + $0x3f8] sm:$0xff]
      %v2870 = vld [vmem:[#allocation3 + $0x400] sm:$0xff]
      %v2871 = vld [vmem:[#allocation3 + $0x408] sm:$0xff]
      %v2872 = vld [vmem:[#allocation3 + $0x410] sm:$0xff]
      %v2873 = vld [vmem:[#allocation3 + $0x418] sm:$0xff]
      %v2874 = vld [vmem:[#allocation3 + $0x420] sm:$0xff]
      %v2875 = vld [vmem:[#allocation3 + $0x428] sm:$0xff]
      %v2876 = vld [vmem:[#allocation3 + $0x430] sm:$0xff]
      %v2877 = vld [vmem:[#allocation3 + $0x438] sm:$0xff]
      %v2878 = vld [vmem:[#allocation3 + $0x440] sm:$0xff]
      %v2879 = vld [vmem:[#allocation3 + $0x448] sm:$0xff]
      %v2880 = vld [vmem:[#allocation3 + $0x450] sm:$0xff]
      %v2881 = vld [vmem:[#allocation3 + $0x458] sm:$0xff]
      %v2882 = vld [vmem:[#allocation3 + $0x460] sm:$0xff]
      %v2883 = vld [vmem:[#allocation3 + $0x468] sm:$0xff]
      %v2884 = vld [vmem:[#allocation3 + $0x470] sm:$0xff]
      %v2885 = vld [vmem:[#allocation3 + $0x478] sm:$0xff]
      %v2886 = vld [vmem:[#allocation3 + $0x480] sm:$0xff]
      %v2887 = vld [vmem:[#allocation3 + $0x488] sm:$0xff]
      %v2888 = vld [vmem:[#allocation3 + $0x490] sm:$0xff]
      %v2889 = vld [vmem:[#allocation3 + $0x498] sm:$0xff]
      %v2890 = vld [vmem:[#allocation3 + $0x4a0] sm:$0xff]
      %v2891 = vld [vmem:[#allocation3 + $0x4a8] sm:$0xff]
      %v2892 = vld [vmem:[#allocation3 + $0x4b0] sm:$0xff]
      %v2893 = vld [vmem:[#allocation3 + $0x4b8] sm:$0xff]
      %v2894 = vld [vmem:[#allocation3 + $0x4c0] sm:$0xff]
      %v2895 = vld [vmem:[#allocation3 + $0x4c8] sm:$0xff]
      %v2896 = vld [vmem:[#allocation3 + $0x4d0] sm:$0xff]
      %v2897 = vld [vmem:[#allocation3 + $0x4d8] sm:$0xff]
      %v2898 = vld [vmem:[#allocation3 + $0x4e0] sm:$0xff]
      %v2899 = vld [vmem:[#allocation3 + $0x4e8] sm:$0xff]
      %v2900 = vld [vmem:[#allocation3 + $0x4f0] sm:$0xff]
      %v2901 = vld [vmem:[#allocation3 + $0x4f8] sm:$0xff]
      %v2902 = vld [vmem:[#allocation3 + $0x500] sm:$0xff]
      %v2903 = vld [vmem:[#allocation3 + $0x508] sm:$0xff]
      %v2904 = vld [vmem:[#allocation3 + $0x510] sm:$0xff]
      %v2905 = vld [vmem:[#allocation3 + $0x518] sm:$0xff]
      %v2906 = vld [vmem:[#allocation3 + $0x520] sm:$0xff]
      %v2907 = vld [vmem:[#allocation3 + $0x528] sm:$0xff]
      %v2908 = vld [vmem:[#allocation3 + $0x530] sm:$0xff]
      %v2909 = vld [vmem:[#allocation3 + $0x538] sm:$0xff]
      %v2910 = vld [vmem:[#allocation3 + $0x540] sm:$0xff]
      %v2911 = vld [vmem:[#allocation3 + $0x548] sm:$0xff]
      %v2912 = vld [vmem:[#allocation3 + $0x550] sm:$0xff]
      %v2913 = vld [vmem:[#allocation3 + $0x558] sm:$0xff]
      %v2914 = vld [vmem:[#allocation3 + $0x560] sm:$0xff]
      %v2915 = vld [vmem:[#allocation3 + $0x568] sm:$0xff]
      %v2916 = vld [vmem:[#allocation3 + $0x570] sm:$0xff]
      %v2917 = vld [vmem:[#allocation3 + $0x578] sm:$0xff]
      %v2918 = vld [vmem:[#allocation3 + $0x580] sm:$0xff]
      %v2919 = vld [vmem:[#allocation3 + $0x588] sm:$0xff]
      %v2920 = vld [vmem:[#allocation3 + $0x590] sm:$0xff]
      %v2921 = vld [vmem:[#allocation3 + $0x598] sm:$0xff]
      %v2922 = vld [vmem:[#allocation3 + $0x5a0] sm:$0xff]
      %v2923 = vld [vmem:[#allocation3 + $0x5a8] sm:$0xff]
      %v2924 = vld [vmem:[#allocation3 + $0x5b0] sm:$0xff]
      %v2925 = vld [vmem:[#allocation3 + $0x5b8] sm:$0xff]
      %v2926 = vld [vmem:[#allocation3 + $0x5c0] sm:$0xff]
      %v2927 = vld [vmem:[#allocation3 + $0x5c8] sm:$0xff]
      %v2928 = vld [vmem:[#allocation3 + $0x5d0] sm:$0xff]
      %v2929 = vld [vmem:[#allocation3 + $0x5d8] sm:$0xff]
      %v2930 = vld [vmem:[#allocation3 + $0x5e0] sm:$0xff]
      %v2931 = vld [vmem:[#allocation3 + $0x5e8] sm:$0xff]
      %v2932 = vld [vmem:[#allocation3 + $0x5f0] sm:$0xff]
      %v2933 = vld [vmem:[#allocation3 + $0x5f8] sm:$0xff]
      %v2934 = vld [vmem:[#allocation3 + $0x600] sm:$0xff]
      %v2935 = vld [vmem:[#allocation3 + $0x608] sm:$0xff]
      %v2936 = vld [vmem:[#allocation3 + $0x610] sm:$0xff]
      %v2937 = vld [vmem:[#allocation3 + $0x618] sm:$0xff]
      %v2938 = vld [vmem:[#allocation3 + $0x620] sm:$0xff]
      %v2939 = vld [vmem:[#allocation3 + $0x628] sm:$0xff]
      %v2940 = vld [vmem:[#allocation3 + $0x630] sm:$0xff]
      %v2941 = vld [vmem:[#allocation3 + $0x638] sm:$0xff]
      %v2942 = vld [vmem:[#allocation3 + $0x640] sm:$0xff]
      %v2943 = vld [vmem:[#allocation3 + $0x648] sm:$0xff]
      %v2944 = vld [vmem:[#allocation3 + $0x650] sm:$0xff]
      %v2945 = vld [vmem:[#allocation3 + $0x658] sm:$0xff]
      %v2946 = vld [vmem:[#allocation3 + $0x660] sm:$0xff]
      %v2947 = vld [vmem:[#allocation3 + $0x668] sm:$0xff]
      %v2948 = vld [vmem:[#allocation3 + $0x670] sm:$0xff]
      %v2949 = vld [vmem:[#allocation3 + $0x678] sm:$0xff]
      %v2950 = vld [vmem:[#allocation3 + $0x680] sm:$0xff]
      %v2951 = vld [vmem:[#allocation3 + $0x688] sm:$0xff]
      %v2952 = vld [vmem:[#allocation3 + $0x690] sm:$0xff]
      %v2953 = vld [vmem:[#allocation3 + $0x698] sm:$0xff]
      %v2954 = vld [vmem:[#allocation3 + $0x6a0] sm:$0xff]
      %v2955 = vld [vmem:[#allocation3 + $0x6a8] sm:$0xff]
      %v2956 = vld [vmem:[#allocation3 + $0x6b0] sm:$0xff]
      %v2957 = vld [vmem:[#allocation3 + $0x6b8] sm:$0xff]
      %v2958 = vld [vmem:[#allocation3 + $0x6c0] sm:$0xff]
      %v2959 = vld [vmem:[#allocation3 + $0x6c8] sm:$0xff]
      %v2960 = vld [vmem:[#allocation3 + $0x6d0] sm:$0xff]
      %v2961 = vld [vmem:[#allocation3 + $0x6d8] sm:$0xff]
      %v2962 = vld [vmem:[#allocation3 + $0x6e0] sm:$0xff]
      %v2963 = vld [vmem:[#allocation3 + $0x6e8] sm:$0xff]
      %v2964 = vld [vmem:[#allocation3 + $0x6f0] sm:$0xff]
      %v2965 = vld [vmem:[#allocation3 + $0x6f8] sm:$0xff]
      %v2966 = vld [vmem:[#allocation3 + $0x700] sm:$0xff]
      %v2967 = vld [vmem:[#allocation3 + $0x708] sm:$0xff]
      %v2968 = vld [vmem:[#allocation3 + $0x710] sm:$0xff]
      %v2969 = vld [vmem:[#allocation3 + $0x718] sm:$0xff]
      %v2970 = vld [vmem:[#allocation3 + $0x720] sm:$0xff]
      %v2971 = vld [vmem:[#allocation3 + $0x728] sm:$0xff]
      %v2972 = vld [vmem:[#allocation3 + $0x730] sm:$0xff]
      %v2973 = vld [vmem:[#allocation3 + $0x738] sm:$0xff]
      %v2974 = vld [vmem:[#allocation3 + $0x740] sm:$0xff]
      %v2975 = vld [vmem:[#allocation3 + $0x748] sm:$0xff]
      %v2976 = vld [vmem:[#allocation3 + $0x750] sm:$0xff]
      %v2977 = vld [vmem:[#allocation3 + $0x758] sm:$0xff]
      %v2978 = vld [vmem:[#allocation3 + $0x760] sm:$0xff]
      %v2979 = vld [vmem:[#allocation3 + $0x768] sm:$0xff]
      %v2980 = vld [vmem:[#allocation3 + $0x770] sm:$0xff]
      %v2981 = vld [vmem:[#allocation3 + $0x778] sm:$0xff]
      %v2982 = vld [vmem:[#allocation3 + $0x780] sm:$0xff]
      %v2983 = vld [vmem:[#allocation3 + $0x788] sm:$0xff]
      %v2984 = vld [vmem:[#allocation3 + $0x790] sm:$0xff]
      %v2985 = vld [vmem:[#allocation3 + $0x798] sm:$0xff]
      %v2986 = vld [vmem:[#allocation3 + $0x7a0] sm:$0xff]
      %v2987 = vld [vmem:[#allocation3 + $0x7a8] sm:$0xff]
      %v2988 = vld [vmem:[#allocation3 + $0x7b0] sm:$0xff]
      %v2989 = vld [vmem:[#allocation3 + $0x7b8] sm:$0xff]
      %v2990 = vld [vmem:[#allocation3 + $0x7c0] sm:$0xff]
      %v2991 = vld [vmem:[#allocation3 + $0x7c8] sm:$0xff]
      %v2992 = vld [vmem:[#allocation3 + $0x7d0] sm:$0xff]
      %v2993 = vld [vmem:[#allocation3 + $0x7d8] sm:$0xff]
      %v2994 = vld [vmem:[#allocation3 + $0x7e0] sm:$0xff]
      %v2995 = vld [vmem:[#allocation3 + $0x7e8] sm:$0xff]
      %v2996 = vld [vmem:[#allocation3 + $0x7f0] sm:$0xff]
      %v2997 = vld [vmem:[#allocation3 + $0x7f8] sm:$0xff]
      %v2998 = vld [vmem:[#allocation3 + $0x800] sm:$0xff]
      %v2999 = vld [vmem:[#allocation3 + $0x808] sm:$0xff]
      %v3000 = vld [vmem:[#allocation3 + $0x810] sm:$0xff]
      %v3001 = vld [vmem:[#allocation3 + $0x818] sm:$0xff]
      %v3002 = vld [vmem:[#allocation3 + $0x820] sm:$0xff]
      %v3003 = vld [vmem:[#allocation3 + $0x828] sm:$0xff]
      %v3004 = vld [vmem:[#allocation3 + $0x830] sm:$0xff]
      %v3005 = vld [vmem:[#allocation3 + $0x838] sm:$0xff]
      %v3006 = vld [vmem:[#allocation3 + $0x840] sm:$0xff]
      %v3007 = vld [vmem:[#allocation3 + $0x848] sm:$0xff]
      %v3008 = vld [vmem:[#allocation3 + $0x850] sm:$0xff]
      %v3009 = vld [vmem:[#allocation3 + $0x858] sm:$0xff]
      %v3010 = vld [vmem:[#allocation3 + $0x860] sm:$0xff]
      %v3011 = vld [vmem:[#allocation3 + $0x868] sm:$0xff]
      %v3012 = vld [vmem:[#allocation3 + $0x870] sm:$0xff]
      %v3013 = vld [vmem:[#allocation3 + $0x878] sm:$0xff]
      %v3014 = vld [vmem:[#allocation3 + $0x880] sm:$0xff]
      %v3015 = vld [vmem:[#allocation3 + $0x888] sm:$0xff]
      %v3016 = vld [vmem:[#allocation3 + $0x890] sm:$0xff]
      %v3017 = vld [vmem:[#allocation3 + $0x898] sm:$0xff]
      %v3018 = vld [vmem:[#allocation3 + $0x8a0] sm:$0xff]
      %v3019 = vld [vmem:[#allocation3 + $0x8a8] sm:$0xff]
      %v3020 = vld [vmem:[#allocation3 + $0x8b0] sm:$0xff]
      %v3021 = vld [vmem:[#allocation3 + $0x8b8] sm:$0xff]
      %v3022 = vld [vmem:[#allocation3 + $0x8c0] sm:$0xff]
      %v3023 = vld [vmem:[#allocation3 + $0x8c8] sm:$0xff]
      %v3024 = vld [vmem:[#allocation3 + $0x8d0] sm:$0xff]
      %v3025 = vld [vmem:[#allocation3 + $0x8d8] sm:$0xff]
      %v3026 = vld [vmem:[#allocation3 + $0x8e0] sm:$0xff]
      %v3027 = vld [vmem:[#allocation3 + $0x8e8] sm:$0xff]
      %v3028 = vld [vmem:[#allocation3 + $0x8f0] sm:$0xff]
      %v3029 = vld [vmem:[#allocation3 + $0x8f8] sm:$0xff]
      %v3030 = vld [vmem:[#allocation3 + $0x900] sm:$0xff]
      %v3031 = vld [vmem:[#allocation3 + $0x908] sm:$0xff]
      %v3032 = vld [vmem:[#allocation3 + $0x910] sm:$0xff]
      %v3033 = vld [vmem:[#allocation3 + $0x918] sm:$0xff]
      %v3034 = vld [vmem:[#allocation3 + $0x920] sm:$0xff]
      %v3035 = vld [vmem:[#allocation3 + $0x928] sm:$0xff]
      %v3036 = vld [vmem:[#allocation3 + $0x930] sm:$0xff]
      %v3037 = vld [vmem:[#allocation3 + $0x938] sm:$0xff]
      %v3038 = vld [vmem:[#allocation3 + $0x940] sm:$0xff]
      %v3039 = vld [vmem:[#allocation3 + $0x948] sm:$0xff]
      %v3040 = vld [vmem:[#allocation3 + $0x950] sm:$0xff]
      %v3041 = vld [vmem:[#allocation3 + $0x958] sm:$0xff]
      %v3042 = vld [vmem:[#allocation3 + $0x960] sm:$0xff]
      %v3043 = vld [vmem:[#allocation3 + $0x968] sm:$0xff]
      %v3044 = vld [vmem:[#allocation3 + $0x970] sm:$0xff]
      %v3045 = vld [vmem:[#allocation3 + $0x978] sm:$0xff]
      %v3046 = vld [vmem:[#allocation3 + $0x980] sm:$0xff]
      %v3047 = vld [vmem:[#allocation3 + $0x988] sm:$0xff]
      %v3048 = vld [vmem:[#allocation3 + $0x990] sm:$0xff]
      %v3049 = vld [vmem:[#allocation3 + $0x998] sm:$0xff]
      %v3050 = vld [vmem:[#allocation3 + $0x9a0] sm:$0xff]
      %v3051 = vld [vmem:[#allocation3 + $0x9a8] sm:$0xff]
      %v3052 = vld [vmem:[#allocation3 + $0x9b0] sm:$0xff]
      %v3053 = vld [vmem:[#allocation3 + $0x9b8] sm:$0xff]
      %v3054 = vld [vmem:[#allocation3 + $0x9c0] sm:$0xff]
      %v3055 = vld [vmem:[#allocation3 + $0x9c8] sm:$0xff]
      %v3056 = vld [vmem:[#allocation3 + $0x9d0] sm:$0xff]
      %v3057 = vld [vmem:[#allocation3 + $0x9d8] sm:$0xff]
      %v3058 = vld [vmem:[#allocation3 + $0x9e0] sm:$0xff]
      %v3059 = vld [vmem:[#allocation3 + $0x9e8] sm:$0xff]
      %v3060 = vld [vmem:[#allocation3 + $0x9f0] sm:$0xff]
      %v3061 = vld [vmem:[#allocation3 + $0x9f8] sm:$0xff]
      %v3062 = vld [vmem:[#allocation3 + $0xa00] sm:$0xff]
      %v3063 = vld [vmem:[#allocation3 + $0xa08] sm:$0xff]
      %v3064 = vld [vmem:[#allocation3 + $0xa10] sm:$0xff]
      %v3065 = vld [vmem:[#allocation3 + $0xa18] sm:$0xff]
      %vm3066 = vcmask 719872
      %v3068 = vsel %vm3066, %v2741, 0
      %3070 = vmatpush.msra.mxu0 %v2922
      %3071 = vmatpush.msra.mxu0 %v2910
      %3072 = vmatpush.msra.mxu0 %v2898
      %3073 = vmatpush.msra.mxu0 %v2886
      %3074 = vmatpush.msra.mxu0 %v2874
      %3075 = vmatpush.msra.mxu0 %v2862
      %3076 = vmatpush.msra.mxu0 %v2850
      %3077 = vmatpush.msra.mxu0 %v2838
      %3078 = vmatpush.msra.mxu0 %v2826
      %3079 = vmatpush.msra.mxu0 %v2814
      %3080 = vmatpush.msra.mxu0 %v2802
      %3081 = vmatpush.msra.mxu0 %v2790
      %3082 = vmatpush.msra.mxu0 %v2778
      %3083 = vmatpush.msra.mxu0 %v2766
      %3084 = vmatpush.msra.mxu0 %v2754
      %3085 = vmatpush.msra.mxu0 %v2742
      %3086 = vmatmul.f32.gmra.mxu0 %v2740
      %v3087 = vpop.f32.mrf.mxu0
      %v3088 = vadd.f32 0.0, %v3087
      %3089 = vdwg.mxu0
      %3090 = vmatpush.msra.mxu0 0.0
      %3091 = vmatpush.msra.mxu0 0.0
      %3092 = vmatpush.msra.mxu0 0.0
      %3093 = vmatpush.msra.mxu0 0.0
      %3094 = vmatpush.msra.mxu0 0.0
      %3095 = vmatpush.msra.mxu0 %v3054
      %3096 = vmatpush.msra.mxu0 %v3042
      %3097 = vmatpush.msra.mxu0 %v3030
      %3098 = vmatpush.msra.mxu0 %v3018
      %3099 = vmatpush.msra.mxu0 %v3006
      %3100 = vmatpush.msra.mxu0 %v2994
      %3101 = vmatpush.msra.mxu0 %v2982
      %3102 = vmatpush.msra.mxu0 %v2970
      %3103 = vmatpush.msra.mxu0 %v2958
      %3104 = vmatpush.msra.mxu0 %v2946
      %3105 = vmatpush.msra.mxu0 %v2934
      %3106 = vmatmul.f32.gmra.mxu0 %v3068
      %v3107 = vpop.f32.mrf.mxu0
      %v3108 = vadd.f32 %v3088, %v3107
      %3109 = vdwg.mxu0
      %3110 = vmatpush.msra.mxu0 %v2923
      %3111 = vmatpush.msra.mxu0 %v2911
      %3112 = vmatpush.msra.mxu0 %v2899
      %3113 = vmatpush.msra.mxu0 %v2887
      %3114 = vmatpush.msra.mxu0 %v2875
      %3115 = vmatpush.msra.mxu0 %v2863
      %3116 = vmatpush.msra.mxu0 %v2851
      %3117 = vmatpush.msra.mxu0 %v2839
      %3118 = vmatpush.msra.mxu0 %v2827
      %3119 = vmatpush.msra.mxu0 %v2815
      %3120 = vmatpush.msra.mxu0 %v2803
      %3121 = vmatpush.msra.mxu0 %v2791
      %3122 = vmatpush.msra.mxu0 %v2779
      %3123 = vmatpush.msra.mxu0 %v2767
      %3124 = vmatpush.msra.mxu0 %v2755
      %3125 = vmatpush.msra.mxu0 %v2743
      %3126 = vmatmul.f32.gmra.mxu0 %v2740
      %v3127 = vpop.f32.mrf.mxu0
      %v3128 = vadd.f32 0.0, %v3127
      %3129 = vdwg.mxu0
      %3130 = vmatpush.msra.mxu0 0.0
      %3131 = vmatpush.msra.mxu0 0.0
      %3132 = vmatpush.msra.mxu0 0.0
      %3133 = vmatpush.msra.mxu0 0.0
      %3134 = vmatpush.msra.mxu0 0.0
      %3135 = vmatpush.msra.mxu0 %v3055
      %3136 = vmatpush.msra.mxu0 %v3043
      %3137 = vmatpush.msra.mxu0 %v3031
      %3138 = vmatpush.msra.mxu0 %v3019
      %3139 = vmatpush.msra.mxu0 %v3007
      %3140 = vmatpush.msra.mxu0 %v2995
      %3141 = vmatpush.msra.mxu0 %v2983
      %3142 = vmatpush.msra.mxu0 %v2971
      %3143 = vmatpush.msra.mxu0 %v2959
      %3144 = vmatpush.msra.mxu0 %v2947
      %3145 = vmatpush.msra.mxu0 %v2935
      %3146 = vmatmul.f32.gmra.mxu0 %v3068
      %v3147 = vpop.f32.mrf.mxu0
      %v3148 = vadd.f32 %v3128, %v3147
      %3149 = vdwg.mxu0
      %3150 = vmatpush.msra.mxu0 %v2924
      %3151 = vmatpush.msra.mxu0 %v2912
      %3152 = vmatpush.msra.mxu0 %v2900
      %3153 = vmatpush.msra.mxu0 %v2888
      %3154 = vmatpush.msra.mxu0 %v2876
      %3155 = vmatpush.msra.mxu0 %v2864
      %3156 = vmatpush.msra.mxu0 %v2852
      %3157 = vmatpush.msra.mxu0 %v2840
      %3158 = vmatpush.msra.mxu0 %v2828
      %3159 = vmatpush.msra.mxu0 %v2816
      %3160 = vmatpush.msra.mxu0 %v2804
      %3161 = vmatpush.msra.mxu0 %v2792
      %3162 = vmatpush.msra.mxu0 %v2780
      %3163 = vmatpush.msra.mxu0 %v2768
      %3164 = vmatpush.msra.mxu0 %v2756
      %3165 = vmatpush.msra.mxu0 %v2744
      %3166 = vmatmul.f32.gmra.mxu0 %v2740
      %v3167 = vpop.f32.mrf.mxu0
      %v3168 = vadd.f32 0.0, %v3167
      %3169 = vdwg.mxu0
      %3170 = vmatpush.msra.mxu0 0.0
      %3171 = vmatpush.msra.mxu0 0.0
      %3172 = vmatpush.msra.mxu0 0.0
      %3173 = vmatpush.msra.mxu0 0.0
      %3174 = vmatpush.msra.mxu0 0.0
      %3175 = vmatpush.msra.mxu0 %v3056
      %3176 = vmatpush.msra.mxu0 %v3044
      %3177 = vmatpush.msra.mxu0 %v3032
      %3178 = vmatpush.msra.mxu0 %v3020
      %3179 = vmatpush.msra.mxu0 %v3008
      %3180 = vmatpush.msra.mxu0 %v2996
      %3181 = vmatpush.msra.mxu0 %v2984
      %3182 = vmatpush.msra.mxu0 %v2972
      %3183 = vmatpush.msra.mxu0 %v2960
      %3184 = vmatpush.msra.mxu0 %v2948
      %3185 = vmatpush.msra.mxu0 %v2936
      %3186 = vmatmul.f32.gmra.mxu0 %v3068
      %v3187 = vpop.f32.mrf.mxu0
      %v3188 = vadd.f32 %v3168, %v3187
      %3189 = vdwg.mxu0
      %3190 = vmatpush.msra.mxu0 %v2925
      %3191 = vmatpush.msra.mxu0 %v2913
      %3192 = vmatpush.msra.mxu0 %v2901
      %3193 = vmatpush.msra.mxu0 %v2889
      %3194 = vmatpush.msra.mxu0 %v2877
      %3195 = vmatpush.msra.mxu0 %v2865
      %3196 = vmatpush.msra.mxu0 %v2853
      %3197 = vmatpush.msra.mxu0 %v2841
      %3198 = vmatpush.msra.mxu0 %v2829
      %3199 = vmatpush.msra.mxu0 %v2817
      %3200 = vmatpush.msra.mxu0 %v2805
      %3201 = vmatpush.msra.mxu0 %v2793
      %3202 = vmatpush.msra.mxu0 %v2781
      %3203 = vmatpush.msra.mxu0 %v2769
      %3204 = vmatpush.msra.mxu0 %v2757
      %3205 = vmatpush.msra.mxu0 %v2745
      %3206 = vmatmul.f32.gmra.mxu0 %v2740
      %v3207 = vpop.f32.mrf.mxu0
      %v3208 = vadd.f32 0.0, %v3207
      %3209 = vdwg.mxu0
      %3210 = vmatpush.msra.mxu0 0.0
      %3211 = vmatpush.msra.mxu0 0.0
      %3212 = vmatpush.msra.mxu0 0.0
      %3213 = vmatpush.msra.mxu0 0.0
      %3214 = vmatpush.msra.mxu0 0.0
      %3215 = vmatpush.msra.mxu0 %v3057
      %3216 = vmatpush.msra.mxu0 %v3045
      %3217 = vmatpush.msra.mxu0 %v3033
      %3218 = vmatpush.msra.mxu0 %v3021
      %3219 = vmatpush.msra.mxu0 %v3009
      %3220 = vmatpush.msra.mxu0 %v2997
      %3221 = vmatpush.msra.mxu0 %v2985
      %3222 = vmatpush.msra.mxu0 %v2973
      %3223 = vmatpush.msra.mxu0 %v2961
      %3224 = vmatpush.msra.mxu0 %v2949
      %3225 = vmatpush.msra.mxu0 %v2937
      %3226 = vmatmul.f32.gmra.mxu0 %v3068
      %v3227 = vpop.f32.mrf.mxu0
      %v3228 = vadd.f32 %v3208, %v3227
      %3229 = vdwg.mxu0
      %3230 = vmatpush.msra.mxu0 %v2926
      %3231 = vmatpush.msra.mxu0 %v2914
      %3232 = vmatpush.msra.mxu0 %v2902
      %3233 = vmatpush.msra.mxu0 %v2890
      %3234 = vmatpush.msra.mxu0 %v2878
      %3235 = vmatpush.msra.mxu0 %v2866
      %3236 = vmatpush.msra.mxu0 %v2854
      %3237 = vmatpush.msra.mxu0 %v2842
      %3238 = vmatpush.msra.mxu0 %v2830
      %3239 = vmatpush.msra.mxu0 %v2818
      %3240 = vmatpush.msra.mxu0 %v2806
      %3241 = vmatpush.msra.mxu0 %v2794
      %3242 = vmatpush.msra.mxu0 %v2782
      %3243 = vmatpush.msra.mxu0 %v2770
      %3244 = vmatpush.msra.mxu0 %v2758
      %3245 = vmatpush.msra.mxu0 %v2746
      %3246 = vmatmul.f32.gmra.mxu0 %v2740
      %v3247 = vpop.f32.mrf.mxu0
      %v3248 = vadd.f32 0.0, %v3247
      %3249 = vdwg.mxu0
      %3250 = vmatpush.msra.mxu0 0.0
      %3251 = vmatpush.msra.mxu0 0.0
      %3252 = vmatpush.msra.mxu0 0.0
      %3253 = vmatpush.msra.mxu0 0.0
      %3254 = vmatpush.msra.mxu0 0.0
      %3255 = vmatpush.msra.mxu0 %v3058
      %3256 = vmatpush.msra.mxu0 %v3046
      %3257 = vmatpush.msra.mxu0 %v3034
      %3258 = vmatpush.msra.mxu0 %v3022
      %3259 = vmatpush.msra.mxu0 %v3010
      %3260 = vmatpush.msra.mxu0 %v2998
      %3261 = vmatpush.msra.mxu0 %v2986
      %3262 = vmatpush.msra.mxu0 %v2974
      %3263 = vmatpush.msra.mxu0 %v2962
      %3264 = vmatpush.msra.mxu0 %v2950
      %3265 = vmatpush.msra.mxu0 %v2938
      %3266 = vmatmul.f32.gmra.mxu0 %v3068
      %v3267 = vpop.f32.mrf.mxu0
      %v3268 = vadd.f32 %v3248, %v3267
      %3269 = vdwg.mxu0
      %3270 = vmatpush.msra.mxu0 %v2927
      %3271 = vmatpush.msra.mxu0 %v2915
      %3272 = vmatpush.msra.mxu0 %v2903
      %3273 = vmatpush.msra.mxu0 %v2891
      %3274 = vmatpush.msra.mxu0 %v2879
      %3275 = vmatpush.msra.mxu0 %v2867
      %3276 = vmatpush.msra.mxu0 %v2855
      %3277 = vmatpush.msra.mxu0 %v2843
      %3278 = vmatpush.msra.mxu0 %v2831
      %3279 = vmatpush.msra.mxu0 %v2819
      %3280 = vmatpush.msra.mxu0 %v2807
      %3281 = vmatpush.msra.mxu0 %v2795
      %3282 = vmatpush.msra.mxu0 %v2783
      %3283 = vmatpush.msra.mxu0 %v2771
      %3284 = vmatpush.msra.mxu0 %v2759
      %3285 = vmatpush.msra.mxu0 %v2747
      %3286 = vmatmul.f32.gmra.mxu0 %v2740
      %v3287 = vpop.f32.mrf.mxu0
      %v3288 = vadd.f32 0.0, %v3287
      %3289 = vdwg.mxu0
      %3290 = vmatpush.msra.mxu0 0.0
      %3291 = vmatpush.msra.mxu0 0.0
      %3292 = vmatpush.msra.mxu0 0.0
      %3293 = vmatpush.msra.mxu0 0.0
      %3294 = vmatpush.msra.mxu0 0.0
      %3295 = vmatpush.msra.mxu0 %v3059
      %3296 = vmatpush.msra.mxu0 %v3047
      %3297 = vmatpush.msra.mxu0 %v3035
      %3298 = vmatpush.msra.mxu0 %v3023
      %3299 = vmatpush.msra.mxu0 %v3011
      %3300 = vmatpush.msra.mxu0 %v2999
      %3301 = vmatpush.msra.mxu0 %v2987
      %3302 = vmatpush.msra.mxu0 %v2975
      %3303 = vmatpush.msra.mxu0 %v2963
      %3304 = vmatpush.msra.mxu0 %v2951
      %3305 = vmatpush.msra.mxu0 %v2939
      %3306 = vmatmul.f32.gmra.mxu0 %v3068
      %v3307 = vpop.f32.mrf.mxu0
      %v3308 = vadd.f32 %v3288, %v3307
      %3309 = vdwg.mxu0
      %3310 = vmatpush.msra.mxu0 %v2928
      %3311 = vmatpush.msra.mxu0 %v2916
      %3312 = vmatpush.msra.mxu0 %v2904
      %3313 = vmatpush.msra.mxu0 %v2892
      %3314 = vmatpush.msra.mxu0 %v2880
      %3315 = vmatpush.msra.mxu0 %v2868
      %3316 = vmatpush.msra.mxu0 %v2856
      %3317 = vmatpush.msra.mxu0 %v2844
      %3318 = vmatpush.msra.mxu0 %v2832
      %3319 = vmatpush.msra.mxu0 %v2820
      %3320 = vmatpush.msra.mxu0 %v2808
      %3321 = vmatpush.msra.mxu0 %v2796
      %3322 = vmatpush.msra.mxu0 %v2784
      %3323 = vmatpush.msra.mxu0 %v2772
      %3324 = vmatpush.msra.mxu0 %v2760
      %3325 = vmatpush.msra.mxu0 %v2748
      %3326 = vmatmul.f32.gmra.mxu0 %v2740
      %v3327 = vpop.f32.mrf.mxu0
      %v3328 = vadd.f32 0.0, %v3327
      %3329 = vdwg.mxu0
      %3330 = vmatpush.msra.mxu0 0.0
      %3331 = vmatpush.msra.mxu0 0.0
      %3332 = vmatpush.msra.mxu0 0.0
      %3333 = vmatpush.msra.mxu0 0.0
      %3334 = vmatpush.msra.mxu0 0.0
      %3335 = vmatpush.msra.mxu0 %v3060
      %3336 = vmatpush.msra.mxu0 %v3048
      %3337 = vmatpush.msra.mxu0 %v3036
      %3338 = vmatpush.msra.mxu0 %v3024
      %3339 = vmatpush.msra.mxu0 %v3012
      %3340 = vmatpush.msra.mxu0 %v3000
      %3341 = vmatpush.msra.mxu0 %v2988
      %3342 = vmatpush.msra.mxu0 %v2976
      %3343 = vmatpush.msra.mxu0 %v2964
      %3344 = vmatpush.msra.mxu0 %v2952
      %3345 = vmatpush.msra.mxu0 %v2940
      %3346 = vmatmul.f32.gmra.mxu0 %v3068
      %v3347 = vpop.f32.mrf.mxu0
      %v3348 = vadd.f32 %v3328, %v3347
      %3349 = vdwg.mxu0
      %3350 = vmatpush.msra.mxu0 %v2929
      %3351 = vmatpush.msra.mxu0 %v2917
      %3352 = vmatpush.msra.mxu0 %v2905
      %3353 = vmatpush.msra.mxu0 %v2893
      %3354 = vmatpush.msra.mxu0 %v2881
      %3355 = vmatpush.msra.mxu0 %v2869
      %3356 = vmatpush.msra.mxu0 %v2857
      %3357 = vmatpush.msra.mxu0 %v2845
      %3358 = vmatpush.msra.mxu0 %v2833
      %3359 = vmatpush.msra.mxu0 %v2821
      %3360 = vmatpush.msra.mxu0 %v2809
      %3361 = vmatpush.msra.mxu0 %v2797
      %3362 = vmatpush.msra.mxu0 %v2785
      %3363 = vmatpush.msra.mxu0 %v2773
      %3364 = vmatpush.msra.mxu0 %v2761
      %3365 = vmatpush.msra.mxu0 %v2749
      %3366 = vmatmul.f32.gmra.mxu0 %v2740
      %v3367 = vpop.f32.mrf.mxu0
      %v3368 = vadd.f32 0.0, %v3367
      %3369 = vdwg.mxu0
      %3370 = vmatpush.msra.mxu0 0.0
      %3371 = vmatpush.msra.mxu0 0.0
      %3372 = vmatpush.msra.mxu0 0.0
      %3373 = vmatpush.msra.mxu0 0.0
      %3374 = vmatpush.msra.mxu0 0.0
      %3375 = vmatpush.msra.mxu0 %v3061
      %3376 = vmatpush.msra.mxu0 %v3049
      %3377 = vmatpush.msra.mxu0 %v3037
      %3378 = vmatpush.msra.mxu0 %v3025
      %3379 = vmatpush.msra.mxu0 %v3013
      %3380 = vmatpush.msra.mxu0 %v3001
      %3381 = vmatpush.msra.mxu0 %v2989
      %3382 = vmatpush.msra.mxu0 %v2977
      %3383 = vmatpush.msra.mxu0 %v2965
      %3384 = vmatpush.msra.mxu0 %v2953
      %3385 = vmatpush.msra.mxu0 %v2941
      %3386 = vmatmul.f32.gmra.mxu0 %v3068
      %v3387 = vpop.f32.mrf.mxu0
      %v3388 = vadd.f32 %v3368, %v3387
      %3389 = vdwg.mxu0
      %3390 = vmatpush.msra.mxu0 %v2930
      %3391 = vmatpush.msra.mxu0 %v2918
      %3392 = vmatpush.msra.mxu0 %v2906
      %3393 = vmatpush.msra.mxu0 %v2894
      %3394 = vmatpush.msra.mxu0 %v2882
      %3395 = vmatpush.msra.mxu0 %v2870
      %3396 = vmatpush.msra.mxu0 %v2858
      %3397 = vmatpush.msra.mxu0 %v2846
      %3398 = vmatpush.msra.mxu0 %v2834
      %3399 = vmatpush.msra.mxu0 %v2822
      %3400 = vmatpush.msra.mxu0 %v2810
      %3401 = vmatpush.msra.mxu0 %v2798
      %3402 = vmatpush.msra.mxu0 %v2786
      %3403 = vmatpush.msra.mxu0 %v2774
      %3404 = vmatpush.msra.mxu0 %v2762
      %3405 = vmatpush.msra.mxu0 %v2750
      %3406 = vmatmul.f32.gmra.mxu0 %v2740
      %v3407 = vpop.f32.mrf.mxu0
      %v3408 = vadd.f32 0.0, %v3407
      %3409 = vdwg.mxu0
      %3410 = vmatpush.msra.mxu0 0.0
      %3411 = vmatpush.msra.mxu0 0.0
      %3412 = vmatpush.msra.mxu0 0.0
      %3413 = vmatpush.msra.mxu0 0.0
      %3414 = vmatpush.msra.mxu0 0.0
      %3415 = vmatpush.msra.mxu0 %v3062
      %3416 = vmatpush.msra.mxu0 %v3050
      %3417 = vmatpush.msra.mxu0 %v3038
      %3418 = vmatpush.msra.mxu0 %v3026
      %3419 = vmatpush.msra.mxu0 %v3014
      %3420 = vmatpush.msra.mxu0 %v3002
      %3421 = vmatpush.msra.mxu0 %v2990
      %3422 = vmatpush.msra.mxu0 %v2978
      %3423 = vmatpush.msra.mxu0 %v2966
      %3424 = vmatpush.msra.mxu0 %v2954
      %3425 = vmatpush.msra.mxu0 %v2942
      %3426 = vmatmul.f32.gmra.mxu0 %v3068
      %v3427 = vpop.f32.mrf.mxu0
      %v3428 = vadd.f32 %v3408, %v3427
      %3429 = vdwg.mxu0
      %3430 = vmatpush.msra.mxu0 %v2931
      %3431 = vmatpush.msra.mxu0 %v2919
      %3432 = vmatpush.msra.mxu0 %v2907
      %3433 = vmatpush.msra.mxu0 %v2895
      %3434 = vmatpush.msra.mxu0 %v2883
      %3435 = vmatpush.msra.mxu0 %v2871
      %3436 = vmatpush.msra.mxu0 %v2859
      %3437 = vmatpush.msra.mxu0 %v2847
      %3438 = vmatpush.msra.mxu0 %v2835
      %3439 = vmatpush.msra.mxu0 %v2823
      %3440 = vmatpush.msra.mxu0 %v2811
      %3441 = vmatpush.msra.mxu0 %v2799
      %3442 = vmatpush.msra.mxu0 %v2787
      %3443 = vmatpush.msra.mxu0 %v2775
      %3444 = vmatpush.msra.mxu0 %v2763
      %3445 = vmatpush.msra.mxu0 %v2751
      %3446 = vmatmul.f32.gmra.mxu0 %v2740
      %v3447 = vpop.f32.mrf.mxu0
      %v3448 = vadd.f32 0.0, %v3447
      %3449 = vdwg.mxu0
      %3450 = vmatpush.msra.mxu0 0.0
      %3451 = vmatpush.msra.mxu0 0.0
      %3452 = vmatpush.msra.mxu0 0.0
      %3453 = vmatpush.msra.mxu0 0.0
      %3454 = vmatpush.msra.mxu0 0.0
      %3455 = vmatpush.msra.mxu0 %v3063
      %3456 = vmatpush.msra.mxu0 %v3051
      %3457 = vmatpush.msra.mxu0 %v3039
      %3458 = vmatpush.msra.mxu0 %v3027
      %3459 = vmatpush.msra.mxu0 %v3015
      %3460 = vmatpush.msra.mxu0 %v3003
      %3461 = vmatpush.msra.mxu0 %v2991
      %3462 = vmatpush.msra.mxu0 %v2979
      %3463 = vmatpush.msra.mxu0 %v2967
      %3464 = vmatpush.msra.mxu0 %v2955
      %3465 = vmatpush.msra.mxu0 %v2943
      %3466 = vmatmul.f32.gmra.mxu0 %v3068
      %v3467 = vpop.f32.mrf.mxu0
      %v3468 = vadd.f32 %v3448, %v3467
      %3469 = vdwg.mxu0
      %3470 = vmatpush.msra.mxu0 %v2932
      %3471 = vmatpush.msra.mxu0 %v2920
      %3472 = vmatpush.msra.mxu0 %v2908
      %3473 = vmatpush.msra.mxu0 %v2896
      %3474 = vmatpush.msra.mxu0 %v2884
      %3475 = vmatpush.msra.mxu0 %v2872
      %3476 = vmatpush.msra.mxu0 %v2860
      %3477 = vmatpush.msra.mxu0 %v2848
      %3478 = vmatpush.msra.mxu0 %v2836
      %3479 = vmatpush.msra.mxu0 %v2824
      %3480 = vmatpush.msra.mxu0 %v2812
      %3481 = vmatpush.msra.mxu0 %v2800
      %3482 = vmatpush.msra.mxu0 %v2788
      %3483 = vmatpush.msra.mxu0 %v2776
      %3484 = vmatpush.msra.mxu0 %v2764
      %3485 = vmatpush.msra.mxu0 %v2752
      %3486 = vmatmul.f32.gmra.mxu0 %v2740
      %v3487 = vpop.f32.mrf.mxu0
      %v3488 = vadd.f32 0.0, %v3487
      %3489 = vdwg.mxu0
      %3490 = vmatpush.msra.mxu0 0.0
      %3491 = vmatpush.msra.mxu0 0.0
      %3492 = vmatpush.msra.mxu0 0.0
      %3493 = vmatpush.msra.mxu0 0.0
      %3494 = vmatpush.msra.mxu0 0.0
      %3495 = vmatpush.msra.mxu0 %v3064
      %3496 = vmatpush.msra.mxu0 %v3052
      %3497 = vmatpush.msra.mxu0 %v3040
      %3498 = vmatpush.msra.mxu0 %v3028
      %3499 = vmatpush.msra.mxu0 %v3016
      %3500 = vmatpush.msra.mxu0 %v3004
      %3501 = vmatpush.msra.mxu0 %v2992
      %3502 = vmatpush.msra.mxu0 %v2980
      %3503 = vmatpush.msra.mxu0 %v2968
      %3504 = vmatpush.msra.mxu0 %v2956
      %3505 = vmatpush.msra.mxu0 %v2944
      %3506 = vmatmul.f32.gmra.mxu0 %v3068
      %v3507 = vpop.f32.mrf.mxu0
      %v3508 = vadd.f32 %v3488, %v3507
      %3509 = vdwg.mxu0
      %3510 = vmatpush.msra.mxu0 %v2933
      %3511 = vmatpush.msra.mxu0 %v2921
      %3512 = vmatpush.msra.mxu0 %v2909
      %3513 = vmatpush.msra.mxu0 %v2897
      %3514 = vmatpush.msra.mxu0 %v2885
      %3515 = vmatpush.msra.mxu0 %v2873
      %3516 = vmatpush.msra.mxu0 %v2861
      %3517 = vmatpush.msra.mxu0 %v2849
      %3518 = vmatpush.msra.mxu0 %v2837
      %3519 = vmatpush.msra.mxu0 %v2825
      %3520 = vmatpush.msra.mxu0 %v2813
      %3521 = vmatpush.msra.mxu0 %v2801
      %3522 = vmatpush.msra.mxu0 %v2789
      %3523 = vmatpush.msra.mxu0 %v2777
      %3524 = vmatpush.msra.mxu0 %v2765
      %3525 = vmatpush.msra.mxu0 %v2753
      %3526 = vmatmul.f32.gmra.mxu0 %v2740
      %v3527 = vpop.f32.mrf.mxu0
      %v3528 = vadd.f32 0.0, %v3527
      %3529 = vdwg.mxu0
      %3530 = vmatpush.msra.mxu0 0.0
      %3531 = vmatpush.msra.mxu0 0.0
      %3532 = vmatpush.msra.mxu0 0.0
      %3533 = vmatpush.msra.mxu0 0.0
      %3534 = vmatpush.msra.mxu0 0.0
      %3535 = vmatpush.msra.mxu0 %v3065
      %3536 = vmatpush.msra.mxu0 %v3053
      %3537 = vmatpush.msra.mxu0 %v3041
      %3538 = vmatpush.msra.mxu0 %v3029
      %3539 = vmatpush.msra.mxu0 %v3017
      %3540 = vmatpush.msra.mxu0 %v3005
      %3541 = vmatpush.msra.mxu0 %v2993
      %3542 = vmatpush.msra.mxu0 %v2981
      %3543 = vmatpush.msra.mxu0 %v2969
      %3544 = vmatpush.msra.mxu0 %v2957
      %3545 = vmatpush.msra.mxu0 %v2945
      %3546 = vmatmul.f32.gmra.mxu0 %v3068
      %v3547 = vpop.f32.mrf.mxu0
      %v3548 = vadd.f32 %v3528, %v3547
      %3549 = vdwg.mxu0
      %v3550 = vld [vmem:[%s4] sm:$0xff]
      %3552 = vset.pattern.permute.xlu0 0
      %3553 = vperm.xlu0 %3552, %v3550
      %v3554 = vpop.permute.xlu0 %3553
      %v3556 = vmul.f32 %v3108, %v3554
      %v3557 = vmul.f32 %v3148, %v3554
      %v3558 = vmul.f32 %v3188, %v3554
      %v3559 = vmul.f32 %v3228, %v3554
      %v3560 = vmul.f32 %v3268, %v3554
      %v3561 = vmul.f32 %v3308, %v3554
      %v3562 = vmul.f32 %v3348, %v3554
      %v3563 = vmul.f32 %v3388, %v3554
      %v3564 = vmul.f32 %v3428, %v3554
      %v3565 = vmul.f32 %v3468, %v3554
      %v3566 = vmul.f32 %v3508, %v3554
      %v3567 = vmul.f32 %v3548, %v3554
      %3568 = vset.pattern.permute.xlu0 1
      %3569 = vperm.xlu0 %3568, %v3550
      %v3570 = vpop.permute.xlu0 %3569
      %v3572 = vadd.f32 %v3556, %v3570
      %v3573 = vadd.f32 %v3557, %v3570
      %v3574 = vadd.f32 %v3558, %v3570
      %v3575 = vadd.f32 %v3559, %v3570
      %v3576 = vadd.f32 %v3560, %v3570
      %v3577 = vadd.f32 %v3561, %v3570
      %v3578 = vadd.f32 %v3562, %v3570
      %v3579 = vadd.f32 %v3563, %v3570
      %v3580 = vadd.f32 %v3564, %v3570
      %v3581 = vadd.f32 %v3565, %v3570
      %v3582 = vadd.f32 %v3566, %v3570
      %v3583 = vadd.f32 %v3567, %v3570
      %v3584 = vmax.f32 %v3572, 0.0
      %v3585 = vmax.f32 %v3573, 0.0
      %v3586 = vmax.f32 %v3574, 0.0
      %v3587 = vmax.f32 %v3575, 0.0
      %v3588 = vmax.f32 %v3576, 0.0
      %v3589 = vmax.f32 %v3577, 0.0
      %v3590 = vmax.f32 %v3578, 0.0
      %v3591 = vmax.f32 %v3579, 0.0
      %v3592 = vmax.f32 %v3580, 0.0
      %v3593 = vmax.f32 %v3581, 0.0
      %v3594 = vmax.f32 %v3582, 0.0
      %v3595 = vmax.f32 %v3583, 0.0
      %v3596 = vld [vmem:[%s3] sm:$0xff]
      %vm3597 = vcmask 64512
      %v3599 = vsel %vm3597, %v3596, 0
      %3601 = vmatpush.msra.mxu0 0.0
      %3602 = vmatpush.msra.mxu0 0.0
      %3603 = vmatpush.msra.mxu0 0.0
      %3604 = vmatpush.msra.mxu0 0.0
      %3605 = vmatpush.msra.mxu0 0.0
      %3606 = vmatpush.msra.mxu0 0.0
      %3607 = vmatpush.msra.mxu0 0.0
      %3608 = vmatpush.msra.mxu0 0.0
      %3609 = vmatpush.msra.mxu0 0.0
      %3610 = vmatpush.msra.mxu0 0.0
      %3611 = vmatpush.msra.mxu0 0.0
      %3612 = vmatpush.msra.mxu0 0.0
      %3613 = vmatpush.msra.mxu0 0.0
      %3614 = vmatpush.msra.mxu0 0.0
      %3615 = vmatpush.msra.mxu0 0.0
      %3616 = vmatpush.msra.mxu0 %v3584
      %3617 = vmatmul.f32.gmra.mxu0 %v3599
      %v3618 = vpop.f32.mrf.mxu0
      %v3619 = vadd.f32 0.0, %v3618
      %3620 = vdwg.mxu0
      %3621 = vmatpush.msra.mxu0 0.0
      %3622 = vmatpush.msra.mxu0 0.0
      %3623 = vmatpush.msra.mxu0 0.0
      %3624 = vmatpush.msra.mxu0 0.0
      %3625 = vmatpush.msra.mxu0 0.0
      %3626 = vmatpush.msra.mxu0 0.0
      %3627 = vmatpush.msra.mxu0 0.0
      %3628 = vmatpush.msra.mxu0 0.0
      %3629 = vmatpush.msra.mxu0 0.0
      %3630 = vmatpush.msra.mxu0 0.0
      %3631 = vmatpush.msra.mxu0 0.0
      %3632 = vmatpush.msra.mxu0 0.0
      %3633 = vmatpush.msra.mxu0 0.0
      %3634 = vmatpush.msra.mxu0 0.0
      %3635 = vmatpush.msra.mxu0 0.0
      %3636 = vmatpush.msra.mxu0 %v3585
      %3637 = vmatmul.f32.gmra.mxu0 %v3599
      %v3638 = vpop.f32.mrf.mxu0
      %v3639 = vadd.f32 0.0, %v3638
      %3640 = vdwg.mxu0
      %3641 = vmatpush.msra.mxu0 0.0
      %3642 = vmatpush.msra.mxu0 0.0
      %3643 = vmatpush.msra.mxu0 0.0
      %3644 = vmatpush.msra.mxu0 0.0
      %3645 = vmatpush.msra.mxu0 0.0
      %3646 = vmatpush.msra.mxu0 0.0
      %3647 = vmatpush.msra.mxu0 0.0
      %3648 = vmatpush.msra.mxu0 0.0
      %3649 = vmatpush.msra.mxu0 0.0
      %3650 = vmatpush.msra.mxu0 0.0
      %3651 = vmatpush.msra.mxu0 0.0
      %3652 = vmatpush.msra.mxu0 0.0
      %3653 = vmatpush.msra.mxu0 0.0
      %3654 = vmatpush.msra.mxu0 0.0
      %3655 = vmatpush.msra.mxu0 0.0
      %3656 = vmatpush.msra.mxu0 %v3586
      %3657 = vmatmul.f32.gmra.mxu0 %v3599
      %v3658 = vpop.f32.mrf.mxu0
      %v3659 = vadd.f32 0.0, %v3658
      %3660 = vdwg.mxu0
      %3661 = vmatpush.msra.mxu0 0.0
      %3662 = vmatpush.msra.mxu0 0.0
      %3663 = vmatpush.msra.mxu0 0.0
      %3664 = vmatpush.msra.mxu0 0.0
      %3665 = vmatpush.msra.mxu0 0.0
      %3666 = vmatpush.msra.mxu0 0.0
      %3667 = vmatpush.msra.mxu0 0.0
      %3668 = vmatpush.msra.mxu0 0.0
      %3669 = vmatpush.msra.mxu0 0.0
      %3670 = vmatpush.msra.mxu0 0.0
      %3671 = vmatpush.msra.mxu0 0.0
      %3672 = vmatpush.msra.mxu0 0.0
      %3673 = vmatpush.msra.mxu0 0.0
      %3674 = vmatpush.msra.mxu0 0.0
      %3675 = vmatpush.msra.mxu0 0.0
      %3676 = vmatpush.msra.mxu0 %v3587
      %3677 = vmatmul.f32.gmra.mxu0 %v3599
      %v3678 = vpop.f32.mrf.mxu0
      %v3679 = vadd.f32 0.0, %v3678
      %3680 = vdwg.mxu0
      %3681 = vmatpush.msra.mxu0 0.0
      %3682 = vmatpush.msra.mxu0 0.0
      %3683 = vmatpush.msra.mxu0 0.0
      %3684 = vmatpush.msra.mxu0 0.0
      %3685 = vmatpush.msra.mxu0 0.0
      %3686 = vmatpush.msra.mxu0 0.0
      %3687 = vmatpush.msra.mxu0 0.0
      %3688 = vmatpush.msra.mxu0 0.0
      %3689 = vmatpush.msra.mxu0 0.0
      %3690 = vmatpush.msra.mxu0 0.0
      %3691 = vmatpush.msra.mxu0 0.0
      %3692 = vmatpush.msra.mxu0 0.0
      %3693 = vmatpush.msra.mxu0 0.0
      %3694 = vmatpush.msra.mxu0 0.0
      %3695 = vmatpush.msra.mxu0 0.0
      %3696 = vmatpush.msra.mxu0 %v3588
      %3697 = vmatmul.f32.gmra.mxu0 %v3599
      %v3698 = vpop.f32.mrf.mxu0
      %v3699 = vadd.f32 0.0, %v3698
      %3700 = vdwg.mxu0
      %3701 = vmatpush.msra.mxu0 0.0
      %3702 = vmatpush.msra.mxu0 0.0
      %3703 = vmatpush.msra.mxu0 0.0
      %3704 = vmatpush.msra.mxu0 0.0
      %3705 = vmatpush.msra.mxu0 0.0
      %3706 = vmatpush.msra.mxu0 0.0
      %3707 = vmatpush.msra.mxu0 0.0
      %3708 = vmatpush.msra.mxu0 0.0
      %3709 = vmatpush.msra.mxu0 0.0
      %3710 = vmatpush.msra.mxu0 0.0
      %3711 = vmatpush.msra.mxu0 0.0
      %3712 = vmatpush.msra.mxu0 0.0
      %3713 = vmatpush.msra.mxu0 0.0
      %3714 = vmatpush.msra.mxu0 0.0
      %3715 = vmatpush.msra.mxu0 0.0
      %3716 = vmatpush.msra.mxu0 %v3589
      %3717 = vmatmul.f32.gmra.mxu0 %v3599
      %v3718 = vpop.f32.mrf.mxu0
      %v3719 = vadd.f32 0.0, %v3718
      %3720 = vdwg.mxu0
      %3721 = vmatpush.msra.mxu0 0.0
      %3722 = vmatpush.msra.mxu0 0.0
      %3723 = vmatpush.msra.mxu0 0.0
      %3724 = vmatpush.msra.mxu0 0.0
      %3725 = vmatpush.msra.mxu0 0.0
      %3726 = vmatpush.msra.mxu0 0.0
      %3727 = vmatpush.msra.mxu0 0.0
      %3728 = vmatpush.msra.mxu0 0.0
      %3729 = vmatpush.msra.mxu0 0.0
      %3730 = vmatpush.msra.mxu0 0.0
      %3731 = vmatpush.msra.mxu0 0.0
      %3732 = vmatpush.msra.mxu0 0.0
      %3733 = vmatpush.msra.mxu0 0.0
      %3734 = vmatpush.msra.mxu0 0.0
      %3735 = vmatpush.msra.mxu0 0.0
      %3736 = vmatpush.msra.mxu0 %v3590
      %3737 = vmatmul.f32.gmra.mxu0 %v3599
      %v3738 = vpop.f32.mrf.mxu0
      %v3739 = vadd.f32 0.0, %v3738
      %3740 = vdwg.mxu0
      %3741 = vmatpush.msra.mxu0 0.0
      %3742 = vmatpush.msra.mxu0 0.0
      %3743 = vmatpush.msra.mxu0 0.0
      %3744 = vmatpush.msra.mxu0 0.0
      %3745 = vmatpush.msra.mxu0 0.0
      %3746 = vmatpush.msra.mxu0 0.0
      %3747 = vmatpush.msra.mxu0 0.0
      %3748 = vmatpush.msra.mxu0 0.0
      %3749 = vmatpush.msra.mxu0 0.0
      %3750 = vmatpush.msra.mxu0 0.0
      %3751 = vmatpush.msra.mxu0 0.0
      %3752 = vmatpush.msra.mxu0 0.0
      %3753 = vmatpush.msra.mxu0 0.0
      %3754 = vmatpush.msra.mxu0 0.0
      %3755 = vmatpush.msra.mxu0 0.0
      %3756 = vmatpush.msra.mxu0 %v3591
      %3757 = vmatmul.f32.gmra.mxu0 %v3599
      %v3758 = vpop.f32.mrf.mxu0
      %v3759 = vadd.f32 0.0, %v3758
      %3760 = vdwg.mxu0
      %3761 = vmatpush.msra.mxu0 0.0
      %3762 = vmatpush.msra.mxu0 0.0
      %3763 = vmatpush.msra.mxu0 0.0
      %3764 = vmatpush.msra.mxu0 0.0
      %3765 = vmatpush.msra.mxu0 0.0
      %3766 = vmatpush.msra.mxu0 0.0
      %3767 = vmatpush.msra.mxu0 0.0
      %3768 = vmatpush.msra.mxu0 0.0
      %3769 = vmatpush.msra.mxu0 0.0
      %3770 = vmatpush.msra.mxu0 0.0
      %3771 = vmatpush.msra.mxu0 0.0
      %3772 = vmatpush.msra.mxu0 0.0
      %3773 = vmatpush.msra.mxu0 0.0
      %3774 = vmatpush.msra.mxu0 0.0
      %3775 = vmatpush.msra.mxu0 0.0
      %3776 = vmatpush.msra.mxu0 %v3592
      %3777 = vmatmul.f32.gmra.mxu0 %v3599
      %v3778 = vpop.f32.mrf.mxu0
      %v3779 = vadd.f32 0.0, %v3778
      %3780 = vdwg.mxu0
      %3781 = vmatpush.msra.mxu0 0.0
      %3782 = vmatpush.msra.mxu0 0.0
      %3783 = vmatpush.msra.mxu0 0.0
      %3784 = vmatpush.msra.mxu0 0.0
      %3785 = vmatpush.msra.mxu0 0.0
      %3786 = vmatpush.msra.mxu0 0.0
      %3787 = vmatpush.msra.mxu0 0.0
      %3788 = vmatpush.msra.mxu0 0.0
      %3789 = vmatpush.msra.mxu0 0.0
      %3790 = vmatpush.msra.mxu0 0.0
      %3791 = vmatpush.msra.mxu0 0.0
      %3792 = vmatpush.msra.mxu0 0.0
      %3793 = vmatpush.msra.mxu0 0.0
      %3794 = vmatpush.msra.mxu0 0.0
      %3795 = vmatpush.msra.mxu0 0.0
      %3796 = vmatpush.msra.mxu0 %v3593
      %3797 = vmatmul.f32.gmra.mxu0 %v3599
      %v3798 = vpop.f32.mrf.mxu0
      %v3799 = vadd.f32 0.0, %v3798
      %3800 = vdwg.mxu0
      %3801 = vmatpush.msra.mxu0 0.0
      %3802 = vmatpush.msra.mxu0 0.0
      %3803 = vmatpush.msra.mxu0 0.0
      %3804 = vmatpush.msra.mxu0 0.0
      %3805 = vmatpush.msra.mxu0 0.0
      %3806 = vmatpush.msra.mxu0 0.0
      %3807 = vmatpush.msra.mxu0 0.0
      %3808 = vmatpush.msra.mxu0 0.0
      %3809 = vmatpush.msra.mxu0 0.0
      %3810 = vmatpush.msra.mxu0 0.0
      %3811 = vmatpush.msra.mxu0 0.0
      %3812 = vmatpush.msra.mxu0 0.0
      %3813 = vmatpush.msra.mxu0 0.0
      %3814 = vmatpush.msra.mxu0 0.0
      %3815 = vmatpush.msra.mxu0 0.0
      %3816 = vmatpush.msra.mxu0 %v3594
      %3817 = vmatmul.f32.gmra.mxu0 %v3599
      %v3818 = vpop.f32.mrf.mxu0
      %v3819 = vadd.f32 0.0, %v3818
      %3820 = vdwg.mxu0
      %3821 = vmatpush.msra.mxu0 0.0
      %3822 = vmatpush.msra.mxu0 0.0
      %3823 = vmatpush.msra.mxu0 0.0
      %3824 = vmatpush.msra.mxu0 0.0
      %3825 = vmatpush.msra.mxu0 0.0
      %3826 = vmatpush.msra.mxu0 0.0
      %3827 = vmatpush.msra.mxu0 0.0
      %3828 = vmatpush.msra.mxu0 0.0
      %3829 = vmatpush.msra.mxu0 0.0
      %3830 = vmatpush.msra.mxu0 0.0
      %3831 = vmatpush.msra.mxu0 0.0
      %3832 = vmatpush.msra.mxu0 0.0
      %3833 = vmatpush.msra.mxu0 0.0
      %3834 = vmatpush.msra.mxu0 0.0
      %3835 = vmatpush.msra.mxu0 0.0
      %3836 = vmatpush.msra.mxu0 %v3595
      %3837 = vmatmul.f32.gmra.mxu0 %v3599
      %v3838 = vpop.f32.mrf.mxu0
      %v3839 = vadd.f32 0.0, %v3838
      %3840 = vdwg.mxu0
      %3841 = vset.pattern.permute.xlu0 2
      %3842 = vperm.xlu0 %3841, %v3550
      %v3843 = vpop.permute.xlu0 %3842
      %v3845 = vmul.f32 %v3619, %v3843
      %v3846 = vmul.f32 %v3639, %v3843
      %v3847 = vmul.f32 %v3659, %v3843
      %v3848 = vmul.f32 %v3679, %v3843
      %v3849 = vmul.f32 %v3699, %v3843
      %v3850 = vmul.f32 %v3719, %v3843
      %v3851 = vmul.f32 %v3739, %v3843
      %v3852 = vmul.f32 %v3759, %v3843
      %v3853 = vmul.f32 %v3779, %v3843
      %v3854 = vmul.f32 %v3799, %v3843
      %v3855 = vmul.f32 %v3819, %v3843
      %v3856 = vmul.f32 %v3839, %v3843
      %3857 = vset.pattern.permute.xlu0 3
      %3858 = vperm.xlu0 %3857, %v3550
      %v3859 = vpop.permute.xlu0 %3858
      %v3861 = vadd.f32 %v3845, %v3859
      %v3862 = vadd.f32 %v3846, %v3859
      %v3863 = vadd.f32 %v3847, %v3859
      %v3864 = vadd.f32 %v3848, %v3859
      %v3865 = vadd.f32 %v3849, %v3859
      %v3866 = vadd.f32 %v3850, %v3859
      %v3867 = vadd.f32 %v3851, %v3859
      %v3868 = vadd.f32 %v3852, %v3859
      %v3869 = vadd.f32 %v3853, %v3859
      %v3870 = vadd.f32 %v3854, %v3859
      %v3871 = vadd.f32 %v3855, %v3859
      %v3872 = vadd.f32 %v3856, %v3859
      %v3873 = vld [vmem:[%s316 + $0x8] sm:$0xff]
      %v3874 = vld [vmem:[%s316 + $0x10] sm:$0xff]
      %v3875 = vld [vmem:[%s316 + $0x18] sm:$0xff]
      %v3876 = vld [vmem:[%s316 + $0x20] sm:$0xff]
      %v3877 = vld [vmem:[%s316 + $0x28] sm:$0xff]
      %v3878 = vld [vmem:[%s316 + $0x30] sm:$0xff]
      %v3879 = vld [vmem:[%s316 + $0x38] sm:$0xff]
      %v3880 = vld [vmem:[%s316 + $0x40] sm:$0xff]
      %v3881 = vld [vmem:[%s316 + $0x48] sm:$0xff]
      %v3882 = vld [vmem:[%s316 + $0x50] sm:$0xff]
      %v3883 = vld [vmem:[%s316 + $0x58] sm:$0xff]
      %v3884 = vld [vmem:[%s336] sm:$0xff]
      %v3885 = vld [vmem:[%s336 + $0x8] sm:$0xff]
      %3897 = vrot.lane.b32.xlu0 %v3873, 57
      %v3898 = vpop.permute.xlu0 %3897
      %3899 = vrot.lane.b32.xlu0 %v3874, 57
      %v3900 = vpop.permute.xlu0 %3899
      %3901 = vrot.lane.b32.xlu0 %v3875, 57
      %v3902 = vpop.permute.xlu0 %3901
      %3903 = vrot.lane.b32.xlu0 %v3876, 57
      %v3904 = vpop.permute.xlu0 %3903
      %3905 = vrot.lane.b32.xlu0 %v3877, 57
      %v3906 = vpop.permute.xlu0 %3905
      %3907 = vrot.lane.b32.xlu0 %v3878, 57
      %v3908 = vpop.permute.xlu0 %3907
      %3909 = vrot.lane.b32.xlu0 %v3879, 57
      %v3910 = vpop.permute.xlu0 %3909
      %3911 = vrot.lane.b32.xlu0 %v3880, 57
      %v3912 = vpop.permute.xlu0 %3911
      %3913 = vrot.lane.b32.xlu0 %v3881, 57
      %v3914 = vpop.permute.xlu0 %3913
      %3915 = vrot.lane.b32.xlu0 %v3882, 57
      %v3916 = vpop.permute.xlu0 %3915
      %3917 = vrot.lane.b32.xlu0 %v3883, 57
      %v3918 = vpop.permute.xlu0 %3917
      %v3919 = vsel %vm1546, %v3898, %v3900
      %v3920 = vsel %vm1546, %v3900, %v3902
      %v3921 = vsel %vm1546, %v3902, %v3904
      %v3922 = vsel %vm1546, %v3904, %v3906
      %v3923 = vsel %vm1546, %v3906, %v3908
      %v3924 = vsel %vm1546, %v3908, %v3910
      %v3925 = vsel %vm1546, %v3910, %v3912
      %v3926 = vsel %vm1546, %v3912, %v3914
      %v3927 = vsel %vm1546, %v3914, %v3916
      %v3928 = vsel %vm1546, %v3916, %v3918
      %3942 = vrot.lane.b32.xlu0 %v3884, 57
      %v3943 = vpop.permute.xlu0 %3942
      %3944 = vrot.lane.b32.xlu0 %v3885, 57
      %v3945 = vpop.permute.xlu0 %3944
      %v3946 = vsel %vm1546, %v3943, %v3945
      %v3949 = vsel %vm1546, %v3918, %v3943
      %v3950 = vadd.f32 %v3919, %v3861
      %v3951 = vadd.f32 %v3920, %v3862
      %v3952 = vadd.f32 %v3921, %v3863
      %v3953 = vadd.f32 %v3922, %v3864
      %v3954 = vadd.f32 %v3923, %v3865
      %v3955 = vadd.f32 %v3924, %v3866
      %v3956 = vadd.f32 %v3925, %v3867
      %v3957 = vadd.f32 %v3926, %v3868
      %v3958 = vadd.f32 %v3927, %v3869
      %v3959 = vadd.f32 %v3928, %v3870
      %v3960 = vadd.f32 %v3949, %v3871
      %v3961 = vadd.f32 %v3946, %v3872
      %3962 = vst [vmem:[%s352] sm:$0xff] %v3950
      %3963 = vst [vmem:[%s352 + $0x8] sm:$0xff] %v3951
      %3964 = vst [vmem:[%s352 + $0x10] sm:$0xff] %v3952
      %3965 = vst [vmem:[%s352 + $0x18] sm:$0xff] %v3953
      %3966 = vst [vmem:[%s352 + $0x20] sm:$0xff] %v3954
      %3967 = vst [vmem:[%s352 + $0x28] sm:$0xff] %v3955
      %3968 = vst [vmem:[%s352 + $0x30] sm:$0xff] %v3956
      %3969 = vst [vmem:[%s352 + $0x38] sm:$0xff] %v3957
      %3970 = vst [vmem:[%s352 + $0x40] sm:$0xff] %v3958
      %3971 = vst [vmem:[%s352 + $0x48] sm:$0xff] %v3959
      %3972 = vst [vmem:[%s352 + $0x50] sm:$0xff] %v3960
      %3973 = vst [vmem:[%s352 + $0x58] sm:$0xff] %v3961
      %s3974 = smul.u32 12, %s20
      %p3975 = scmp.lt.s32.totalorder %s21, 1
      %s3976 = scalar_select %p3975, %s21, 1
      %p3977 = scmp.lt.s32.totalorder %s3974, 11
      %s3978 = scalar_select %p3977, %s3974, 11
      %s3979 = smul.addr %s3976, 12
      %s3980 = sadd.s32 %s3978, %s3979
      %s3981 = smul.addr %s3980, 8
      %s3982 = scalar_lea.vmem %s5, %s3981
      // Predicated region
      $region41: #{resblock3d_pallas.1} parent=39 // pred_check
        %p3983 = pneg %p171
      $region42: #{resblock3d_pallas.1} parent=39 // pred_check_branch
        %3985 = sbr.rel (%p3983) target = $region44
      $region43: #{resblock3d_pallas.1} parent=39 // pred_region
        %s3986 = smul.u32 12, %s20
      $region44: #{resblock3d_pallas.1} parent=39 // pred_fallthru
        _
    $region40: #{resblock3d_pallas.1} parent=5 // pred_fallthru
      _
    %p3987 = scmp.le.s32.totalorder 2, %s11
    // Predicated region
    $region45: #{resblock3d_pallas.1} parent=5 // pred_check
      %p3988 = pneg %p3987
    $region46: #{resblock3d_pallas.1} parent=5 // pred_check_branch
      %3990 = sbr.rel (%p3988) target = $region48
    $region47: #{resblock3d_pallas.1} parent=5 // pred_region
      %s3991 = ssub.s32 %s11, 2
      // Predicated region
      $region49: #{resblock3d_pallas.1} parent=47 // pred_check
        %p3992 = pneg %p177
      $region50: #{resblock3d_pallas.1} parent=47 // pred_check_branch
        %3994 = sbr.rel (%p3992) target = $region52
      $region51: #{resblock3d_pallas.1} parent=47 // pred_region
        %s3995 = smul.u32 12, %s22
        %p3996 = scmp.lt.s32.totalorder %s23, 1
        %s3997 = scalar_select %p3996, %s23, 1
        %p3998 = scmp.lt.s32.totalorder %s3995, 11
        %s3999 = scalar_select %p3998, %s3995, 11
        %s4000 = smul.addr %s3997, 12
        %s4001 = sadd.s32 %s3999, %s4000
        %s4002 = smul.addr %s4001, 8
        %s4003 = scalar_lea.vmem %s5, %s4002
      $region52: #{resblock3d_pallas.1} parent=47 // pred_fallthru
        _
    $region48: #{resblock3d_pallas.1} parent=5 // pred_fallthru
      _
  $region6: #{resblock3d_pallas.1} parent=0 // loop_footer
    %s15 = sadd.s32 1, %s11
  $region7: #{resblock3d_pallas.1} parent=0 // loop_footer_branch
    %10 = sbr.rel target = $region3
  $region8: #{resblock3d_pallas.1} parent=0 // loop_exit
    _

</llo_original>
